<compile_context>
chip_gen: v7x
topology: tpu7x:2x2x1
jax: 0.10.0
libtpu: 0.0.40
codegen_flags: <defaults>
</compile_context>

<pallas_src>
import jax
import jax.numpy as jnp
from jax import lax
from jax.experimental import pallas as pl
from jax.experimental.pallas import tpu as pltpu


# ---------------------------------------------------------------------------
# Fused kernel: per grid step = one image, everything resident in VMEM.
# ---------------------------------------------------------------------------
def _lenet_kernel(x_ref, t1_ref, b1_ref, t2_ref, b2_ref,
                  s1re_ref, s1ro_ref, s1ce_ref, s1co_ref,
                  s2re_ref, s2ro_ref, s2ce_ref, s2co_ref,
                  fc1w_ref, fc1b_ref, fc2w_ref, fc2b_ref, fc3w_ref, fc3b_ref,
                  out_ref):
    f32 = jnp.float32
    x = x_ref[0]                                               # (28, 28)

    # ---- conv1 (1->6, 5x5, valid) as 5 banded matmuls: (24,28)@(28,144) ----
    # y1[m, 24*c + w] = conv1 pre-activation at channel c, row m, col w.
    y1 = jnp.zeros((24, 144), f32)
    for ki in range(5):
        y1 = y1 + jnp.dot(x[ki:ki + 24, :], t1_ref[ki],
                          preferred_element_type=f32)
    # ---- fused 2x2 max-pool (even/odd selection matmuls) + bias + relu ----
    cm = jnp.maximum(jnp.dot(y1, s1ce_ref[...], preferred_element_type=f32),
                     jnp.dot(y1, s1co_ref[...], preferred_element_type=f32))   # (24, 72)
    pm = jnp.maximum(jnp.dot(s1re_ref[...], cm, preferred_element_type=f32),
                     jnp.dot(s1ro_ref[...], cm, preferred_element_type=f32))   # (12, 72)
    p1 = jnp.maximum(pm + b1_ref[...], 0.0)                    # (12, 72): [h, 12*c + w]

    # ---- conv2 (6->16, 5x5, valid) as 5 banded matmuls: (8,72)@(72,128) ----
    # y2[e, 16*f + d] = conv2 pre-activation at channel d, row e, col f.
    y2 = jnp.zeros((8, 128), f32)
    for ki in range(5):
        y2 = y2 + jnp.dot(p1[ki:ki + 8, :], t2_ref[ki],
                          preferred_element_type=f32)
    cm2 = jnp.maximum(jnp.dot(y2, s2ce_ref[...], preferred_element_type=f32),
                      jnp.dot(y2, s2co_ref[...], preferred_element_type=f32))  # (8, 64)
    pm2 = jnp.maximum(jnp.dot(s2re_ref[...], cm2, preferred_element_type=f32),
                      jnp.dot(s2ro_ref[...], cm2, preferred_element_type=f32)) # (4, 64)
    p2 = jnp.maximum(pm2 + b2_ref[...], 0.0)                   # (4, 64): [U, 16*V + d]

    # ---- fc1 (256->120): contraction over (U, 16V+d); weight rows were
    # pre-permuted to this layout, so 4 chained (1,64)@(64,120) matmuls. ----
    h = jnp.zeros((1, 120), f32)
    for u in range(4):
        h = h + jnp.dot(p2[u:u + 1, :], fc1w_ref[u],
                        preferred_element_type=f32)
    h = jnp.maximum(h + fc1b_ref[...], 0.0)
    # ---- fc2 (120->84) + relu, fc3 (84->10) ----
    h = jnp.maximum(jnp.dot(h, fc2w_ref[...], preferred_element_type=f32)
                    + fc2b_ref[...], 0.0)
    out = jnp.dot(h, fc3w_ref[...], preferred_element_type=f32) + fc3b_ref[...]
    out_ref[0] = out                                            # (1, 10)


# ---------------------------------------------------------------------------
# One-time parameter preparation (banded conv matrices, pooling selectors,
# tiled biases, pre-transposed / pre-permuted FC weights).
# ---------------------------------------------------------------------------
def _build_conv1_bands(w1):
    # w1: torch layout (6, 1, 5, 5) -> T1 (5, 28, 144),
    # T1[ki, n, 24*c + w] = w1[c, 0, ki, n - w] for 0 <= n - w < 5 else 0.
    w1s = w1[:, 0]                                  # (6, 5, 5)
    col = jnp.arange(6 * 24)
    c_of, w_of = col // 24, col % 24
    n_of = jnp.arange(28)
    kj = n_of[:, None] - w_of[None, :]              # (28, 144)
    valid = (kj >= 0) & (kj < 5)
    kj_c = jnp.clip(kj, 0, 4)
    ki = jnp.arange(5)
    vals = w1s[c_of[None, None, :], ki[:, None, None], kj_c[None, :, :]]
    return jnp.where(valid[None], vals, 0.0).astype(jnp.float32)


def _build_conv2_bands(w2):
    # w2: torch layout (16, 6, 5, 5) -> T2 (5, 72, 128),
    # T2[ki, 12*c + m, 16*f + d] = w2[d, c, ki, m - f] for 0 <= m - f < 5 else 0.
    icol = jnp.arange(6 * 12)
    c_in, m = icol // 12, icol % 12
    ocol = jnp.arange(8 * 16)
    f, d = ocol // 16, ocol % 16
    kj = m[:, None] - f[None, :]                    # (72, 128)
    valid = (kj >= 0) & (kj < 5)
    kj_c = jnp.clip(kj, 0, 4)
    ki = jnp.arange(5)
    vals = w2[d[None, None, :], c_in[None, :, None],
              ki[:, None, None], kj_c[None, :, :]]
    return jnp.where(valid[None], vals, 0.0).astype(jnp.float32)


def _row_pool_select(n_out, n_in, offset):
    # S[i, 2*i + offset] = 1  (picks even/odd rows for the 2x2 pool).
    r = jnp.arange(n_out)[:, None]
    c = jnp.arange(n_in)[None, :]
    return (c == 2 * r + offset).astype(jnp.float32)


def _col_pool_select_conv1(offset):
    # input col = 24*c + w, output col = 12*c + v; select w == 2*v + offset.
    icol, ocol = jnp.arange(144), jnp.arange(72)
    ci, wi = icol // 24, icol % 24
    co, vo = ocol // 12, ocol % 12
    return ((ci[:, None] == co[None, :]) &
            (wi[:, None] == 2 * vo[None, :] + offset)).astype(jnp.float32)


def _col_pool_select_conv2(offset):
    # input col = 16*f + d, output col = 16*V + d; select f == 2*V + offset.
    icol, ocol = jnp.arange(128), jnp.arange(64)
    fi, di = icol // 16, icol % 16
    vo, do = ocol // 16, ocol % 16
    return ((di[:, None] == do[None, :]) &
            (fi[:, None] == 2 * vo[None, :] + offset)).astype(jnp.float32)


def prepare_params(params):
    """Convert PyTorch-layout params into kernel-ready operands (done once)."""
    # fc1 consumes torch's NCHW flatten (feat = 16*d + 4*U + V); the kernel's
    # pooled activation is laid out as [U, 16*V + d] -> permute fc1 rows once.
    fc1p = params["fc1_w"].T.reshape(16, 4, 4, 120)       # [d, U, V, o]
    fc1p = jnp.transpose(fc1p, (1, 2, 0, 3)).reshape(4, 64, 120)  # [U, 16V+d, o]
    return {
        "t1": _build_conv1_bands(params["conv1_w"]),
        "b1": jnp.repeat(params["conv1_b"], 12)[None, :].astype(jnp.float32),
        "t2": _build_conv2_bands(params["conv2_w"]),
        "b2": jnp.tile(params["conv2_b"], 4)[None, :].astype(jnp.float32),
        "s1re": _row_pool_select(12, 24, 0),
        "s1ro": _row_pool_select(12, 24, 1),
        "s1ce": _col_pool_select_conv1(0),
        "s1co": _col_pool_select_conv1(1),
        "s2re": _row_pool_select(4, 8, 0),
        "s2ro": _row_pool_select(4, 8, 1),
        "s2ce": _col_pool_select_conv2(0),
        "s2co": _col_pool_select_conv2(1),
        "fc1w": fc1p.astype(jnp.float32),
        "fc1b": params["fc1_b"][None, :].astype(jnp.float32),
        "fc2w": params["fc2_w"].T.astype(jnp.float32),
        "fc2b": params["fc2_b"][None, :].astype(jnp.float32),
        "fc3w": params["fc3_w"].T.astype(jnp.float32),
        "fc3b": params["fc3_b"][None, :].astype(jnp.float32),
    }


# ---------------------------------------------------------------------------
# Forward pass (single fused pallas_call, gridded over batch).
# ---------------------------------------------------------------------------
def cnn_classifier_forward(kp, x_nchw):
    n = x_nchw.shape[0]
    x = x_nchw.reshape(n, 28, 28).astype(jnp.float32)
    zero2 = lambda i: (0, 0)
    zero3 = lambda i: (0, 0, 0)
    out = pl.pallas_call(
        _lenet_kernel,
        out_shape=jax.ShapeDtypeStruct((n, 1, 10), jnp.float32),
        grid=(n,),
        in_specs=[
            pl.BlockSpec((1, 28, 28), lambda i: (i, 0, 0)),   # x (1 image / step)
            pl.BlockSpec((5, 28, 144), zero3),                # conv1 band matrices
            pl.BlockSpec((1, 72), zero2),                     # conv1 bias (tiled)
            pl.BlockSpec((5, 72, 128), zero3),                # conv2 band matrices
            pl.BlockSpec((1, 64), zero2),                     # conv2 bias (tiled)
            pl.BlockSpec((12, 24), zero2),                    # pool1 row selectors
            pl.BlockSpec((12, 24), zero2),
            pl.BlockSpec((144, 72), zero2),                   # pool1 col selectors
            pl.BlockSpec((144, 72), zero2),
            pl.BlockSpec((4, 8), zero2),                      # pool2 row selectors
            pl.BlockSpec((4, 8), zero2),
            pl.BlockSpec((128, 64), zero2),                   # pool2 col selectors
            pl.BlockSpec((128, 64), zero2),
            pl.BlockSpec((4, 64, 120), zero3),                # fc1 (permuted)
            pl.BlockSpec((1, 120), zero2),
            pl.BlockSpec((120, 84), zero2),                   # fc2 (pre-transposed)
            pl.BlockSpec((1, 84), zero2),
            pl.BlockSpec((84, 10), zero2),                    # fc3 (pre-transposed)
            pl.BlockSpec((1, 10), zero2),
        ],
        out_specs=pl.BlockSpec((1, 1, 10), lambda i: (i, 0, 0)),
        compiler_params=pltpu.CompilerParams(
            dimension_semantics=("parallel",)),
    )(x, kp["t1"], kp["b1"], kp["t2"], kp["b2"],
      kp["s1re"], kp["s1ro"], kp["s1ce"], kp["s1co"],
      kp["s2re"], kp["s2ro"], kp["s2ce"], kp["s2co"],
      kp["fc1w"], kp["fc1b"], kp["fc2w"], kp["fc2b"], kp["fc3w"], kp["fc3b"])
    return out[:, 0, :]                                        # (N, 10)


# ---------------------------------------------------------------------------
# Parameters (deterministic, PyTorch-shaped) and a pure-JAX reference.
# ---------------------------------------------------------------------------
def init_params(key):
    ks = jax.random.split(key, 10)

    def u(k, shape, fan_in):
        bound = 1.0 / jnp.sqrt(jnp.float32(fan_in))
        return jax.random.uniform(k, shape, jnp.float32, -bound, bound)

    return {
        "conv1_w": u(ks[0], (6, 1, 5, 5), 1 * 5 * 5),
        "conv1_b": u(ks[1], (6,), 1 * 5 * 5),
        "conv2_w": u(ks[2], (16, 6, 5, 5), 6 * 5 * 5),
        "conv2_b": u(ks[3], (16,), 6 * 5 * 5),
        "fc1_w": u(ks[4], (120, 16 * 4 * 4), 16 * 4 * 4),
        "fc1_b": u(ks[5], (120,), 16 * 4 * 4),
        "fc2_w": u(ks[6], (84, 120), 120),
        "fc2_b": u(ks[7], (84,), 120),
        "fc3_w": u(ks[8], (10, 84), 84),
        "fc3_b": u(ks[9], (10,), 84),
    }


def _reference_forward(params, x_nchw):
    dn = ("NCHW", "OIHW", "NCHW")
    y = lax.conv_general_dilated(x_nchw, params["conv1_w"], (1, 1), "VALID",
                                 dimension_numbers=dn)
    y = jax.nn.relu(y + params["conv1_b"][None, :, None, None])
    y = lax.reduce_window(y, -jnp.inf, lax.max, (1, 1, 2, 2), (1, 1, 2, 2), "VALID")
    y = lax.conv_general_dilated(y, params["conv2_w"], (1, 1), "VALID",
                                 dimension_numbers=dn)
    y = jax.nn.relu(y + params["conv2_b"][None, :, None, None])
    y = lax.reduce_window(y, -jnp.inf, lax.max, (1, 1, 2, 2), (1, 1, 2, 2), "VALID")
    y = y.reshape(y.shape[0], -1)
    y = jax.nn.relu(y @ params["fc1_w"].T + params["fc1_b"])
    y = jax.nn.relu(y @ params["fc2_w"].T + params["fc2_b"])
    return y @ params["fc3_w"].T + params["fc3_b"]


if __name__ == "__main__":
    key = jax.random.PRNGKey(0)
    pkey, xkey = jax.random.split(key)
    params = init_params(pkey)
    kparams = prepare_params(params)          # one-time weight preprocessing
    x = jax.random.normal(xkey, (2, 1, 28, 28), jnp.float32)

    fwd = jax.jit(cnn_classifier_forward)
    out = jax.block_until_ready(fwd(kparams, x))
    assert out.shape == (2, 10) and out.dtype == jnp.float32

    ref = _reference_forward(params, x)
    assert bool(jnp.allclose(out, ref, atol=5e-2, rtol=5e-2)), (
        "mismatch vs reference, max abs err = "
        f"{float(jnp.max(jnp.abs(out - ref)))}")
    print("KERNEL_OK")
</pallas_src>

<mosaic_0001>
module attributes {stable_mosaic.version = 11 : i64} {
  func.func @_lenet_kernel(%arg0: i32, %arg1: memref<1x28x28xf32, #tpu.memory_space<vmem>>, %arg2: memref<5x28x144xf32, #tpu.memory_space<vmem>>, %arg3: memref<1x72xf32, #tpu.memory_space<vmem>>, %arg4: memref<5x72x128xf32, #tpu.memory_space<vmem>>, %arg5: memref<1x64xf32, #tpu.memory_space<vmem>>, %arg6: memref<12x24xf32, #tpu.memory_space<vmem>>, %arg7: memref<12x24xf32, #tpu.memory_space<vmem>>, %arg8: memref<144x72xf32, #tpu.memory_space<vmem>>, %arg9: memref<144x72xf32, #tpu.memory_space<vmem>>, %arg10: memref<4x8xf32, #tpu.memory_space<vmem>>, %arg11: memref<4x8xf32, #tpu.memory_space<vmem>>, %arg12: memref<128x64xf32, #tpu.memory_space<vmem>>, %arg13: memref<128x64xf32, #tpu.memory_space<vmem>>, %arg14: memref<4x64x120xf32, #tpu.memory_space<vmem>>, %arg15: memref<1x120xf32, #tpu.memory_space<vmem>>, %arg16: memref<120x84xf32, #tpu.memory_space<vmem>>, %arg17: memref<1x84xf32, #tpu.memory_space<vmem>>, %arg18: memref<84x10xf32, #tpu.memory_space<vmem>>, %arg19: memref<1x10xf32, #tpu.memory_space<vmem>>, %arg20: memref<1x1x10xf32, #tpu.memory_space<vmem>>) attributes {dimension_semantics = [#tpu.dimension_semantics<parallel>], iteration_bounds = array<i64: 2>, scalar_prefetch = 0 : i64, scratch_operands = 0 : i64, tpu.core_type = #tpu.core_type<tc>, window_params = [{transform_indices = @transform_0, window_bounds = array<i64: 1, 28, 28>}, {pipeline_mode = #tpu.pipeline_mode<synchronous>, transform_indices = @transform_1, window_bounds = array<i64: 5, 28, 144>}, {pipeline_mode = #tpu.pipeline_mode<synchronous>, transform_indices = @transform_2, window_bounds = array<i64: 1, 72>}, {pipeline_mode = #tpu.pipeline_mode<synchronous>, transform_indices = @transform_3, window_bounds = array<i64: 5, 72, 128>}, {pipeline_mode = #tpu.pipeline_mode<synchronous>, transform_indices = @transform_4, window_bounds = array<i64: 1, 64>}, {pipeline_mode = #tpu.pipeline_mode<synchronous>, transform_indices = @transform_5, window_bounds = array<i64: 12, 24>}, {pipeline_mode = #tpu.pipeline_mode<synchronous>, transform_indices = @transform_6, window_bounds = array<i64: 12, 24>}, {pipeline_mode = #tpu.pipeline_mode<synchronous>, transform_indices = @transform_7, window_bounds = array<i64: 144, 72>}, {pipeline_mode = #tpu.pipeline_mode<synchronous>, transform_indices = @transform_8, window_bounds = array<i64: 144, 72>}, {pipeline_mode = #tpu.pipeline_mode<synchronous>, transform_indices = @transform_9, window_bounds = array<i64: 4, 8>}, {pipeline_mode = #tpu.pipeline_mode<synchronous>, transform_indices = @transform_10, window_bounds = array<i64: 4, 8>}, {pipeline_mode = #tpu.pipeline_mode<synchronous>, transform_indices = @transform_11, window_bounds = array<i64: 128, 64>}, {pipeline_mode = #tpu.pipeline_mode<synchronous>, transform_indices = @transform_12, window_bounds = array<i64: 128, 64>}, {pipeline_mode = #tpu.pipeline_mode<synchronous>, transform_indices = @transform_13, window_bounds = array<i64: 4, 64, 120>}, {pipeline_mode = #tpu.pipeline_mode<synchronous>, transform_indices = @transform_14, window_bounds = array<i64: 1, 120>}, {pipeline_mode = #tpu.pipeline_mode<synchronous>, transform_indices = @transform_15, window_bounds = array<i64: 120, 84>}, {pipeline_mode = #tpu.pipeline_mode<synchronous>, transform_indices = @transform_16, window_bounds = array<i64: 1, 84>}, {pipeline_mode = #tpu.pipeline_mode<synchronous>, transform_indices = @transform_17, window_bounds = array<i64: 84, 10>}, {pipeline_mode = #tpu.pipeline_mode<synchronous>, transform_indices = @transform_18, window_bounds = array<i64: 1, 10>}, {transform_indices = @transform_19, window_bounds = array<i64: 1, 1, 10>}]} {
    %c0 = arith.constant 0 : index
    %c0_0 = arith.constant 0 : index
    %c0_1 = arith.constant 0 : index
    %0 = vector.load %arg1[%c0, %c0_0, %c0_1] : memref<1x28x28xf32, #tpu.memory_space<vmem>>, vector<1x28x28xf32>
    %1 = vector.shape_cast %0 : vector<1x28x28xf32> to vector<28x28xf32>
    %cst = arith.constant 0.000000e+00 : f32
    %2 = vector.broadcast %cst : f32 to vector<24x144xf32>
    %3 = vector.extract_strided_slice %1 {offsets = [0, 0], sizes = [24, 28], strides = [1, 1]} : vector<28x28xf32> to vector<24x28xf32>
    %c0_2 = arith.constant 0 : index
    %c0_3 = arith.constant 0 : index
    %c0_4 = arith.constant 0 : index
    %4 = vector.load %arg2[%c0_2, %c0_3, %c0_4] : memref<5x28x144xf32, #tpu.memory_space<vmem>>, vector<1x28x144xf32>
    %5 = vector.shape_cast %4 : vector<1x28x144xf32> to vector<28x144xf32>
    %cst_5 = arith.constant dense<0.000000e+00> : vector<24x144xf32>
    %6 = tpu.matmul %3, %5, %cst_5 {dimension_numbers = #tpu.dot_dimension_numbers<[1], [0], [0], [1], [0, 0, 1, 1], [], []>} : vector<24x28xf32>, vector<28x144xf32>, vector<24x144xf32> -> vector<24x144xf32>
    %7 = arith.addf %2, %6 : vector<24x144xf32>
    %8 = vector.extract_strided_slice %1 {offsets = [1, 0], sizes = [24, 28], strides = [1, 1]} : vector<28x28xf32> to vector<24x28xf32>
    %c1 = arith.constant 1 : index
    %c0_6 = arith.constant 0 : index
    %c0_7 = arith.constant 0 : index
    %9 = vector.load %arg2[%c1, %c0_6, %c0_7] : memref<5x28x144xf32, #tpu.memory_space<vmem>>, vector<1x28x144xf32>
    %10 = vector.shape_cast %9 : vector<1x28x144xf32> to vector<28x144xf32>
    %cst_8 = arith.constant dense<0.000000e+00> : vector<24x144xf32>
    %11 = tpu.matmul %8, %10, %cst_8 {dimension_numbers = #tpu.dot_dimension_numbers<[1], [0], [0], [1], [0, 0, 1, 1], [], []>} : vector<24x28xf32>, vector<28x144xf32>, vector<24x144xf32> -> vector<24x144xf32>
    %12 = arith.addf %7, %11 : vector<24x144xf32>
    %13 = vector.extract_strided_slice %1 {offsets = [2, 0], sizes = [24, 28], strides = [1, 1]} : vector<28x28xf32> to vector<24x28xf32>
    %c2 = arith.constant 2 : index
    %c0_9 = arith.constant 0 : index
    %c0_10 = arith.constant 0 : index
    %14 = vector.load %arg2[%c2, %c0_9, %c0_10] : memref<5x28x144xf32, #tpu.memory_space<vmem>>, vector<1x28x144xf32>
    %15 = vector.shape_cast %14 : vector<1x28x144xf32> to vector<28x144xf32>
    %cst_11 = arith.constant dense<0.000000e+00> : vector<24x144xf32>
    %16 = tpu.matmul %13, %15, %cst_11 {dimension_numbers = #tpu.dot_dimension_numbers<[1], [0], [0], [1], [0, 0, 1, 1], [], []>} : vector<24x28xf32>, vector<28x144xf32>, vector<24x144xf32> -> vector<24x144xf32>
    %17 = arith.addf %12, %16 : vector<24x144xf32>
    %18 = vector.extract_strided_slice %1 {offsets = [3, 0], sizes = [24, 28], strides = [1, 1]} : vector<28x28xf32> to vector<24x28xf32>
    %c3 = arith.constant 3 : index
    %c0_12 = arith.constant 0 : index
    %c0_13 = arith.constant 0 : index
    %19 = vector.load %arg2[%c3, %c0_12, %c0_13] : memref<5x28x144xf32, #tpu.memory_space<vmem>>, vector<1x28x144xf32>
    %20 = vector.shape_cast %19 : vector<1x28x144xf32> to vector<28x144xf32>
    %cst_14 = arith.constant dense<0.000000e+00> : vector<24x144xf32>
    %21 = tpu.matmul %18, %20, %cst_14 {dimension_numbers = #tpu.dot_dimension_numbers<[1], [0], [0], [1], [0, 0, 1, 1], [], []>} : vector<24x28xf32>, vector<28x144xf32>, vector<24x144xf32> -> vector<24x144xf32>
    %22 = arith.addf %17, %21 : vector<24x144xf32>
    %23 = vector.extract_strided_slice %1 {offsets = [4, 0], sizes = [24, 28], strides = [1, 1]} : vector<28x28xf32> to vector<24x28xf32>
    %c4 = arith.constant 4 : index
    %c0_15 = arith.constant 0 : index
    %c0_16 = arith.constant 0 : index
    %24 = vector.load %arg2[%c4, %c0_15, %c0_16] : memref<5x28x144xf32, #tpu.memory_space<vmem>>, vector<1x28x144xf32>
    %25 = vector.shape_cast %24 : vector<1x28x144xf32> to vector<28x144xf32>
    %cst_17 = arith.constant dense<0.000000e+00> : vector<24x144xf32>
    %26 = tpu.matmul %23, %25, %cst_17 {dimension_numbers = #tpu.dot_dimension_numbers<[1], [0], [0], [1], [0, 0, 1, 1], [], []>} : vector<24x28xf32>, vector<28x144xf32>, vector<24x144xf32> -> vector<24x144xf32>
    %27 = arith.addf %22, %26 : vector<24x144xf32>
    %c0_18 = arith.constant 0 : index
    %c0_19 = arith.constant 0 : index
    %28 = vector.load %arg8[%c0_18, %c0_19] : memref<144x72xf32, #tpu.memory_space<vmem>>, vector<144x72xf32>
    %cst_20 = arith.constant dense<0.000000e+00> : vector<24x72xf32>
    %29 = tpu.matmul %27, %28, %cst_20 {dimension_numbers = #tpu.dot_dimension_numbers<[1], [0], [0], [1], [0, 0, 1, 1], [], []>} : vector<24x144xf32>, vector<144x72xf32>, vector<24x72xf32> -> vector<24x72xf32>
    %c0_21 = arith.constant 0 : index
    %c0_22 = arith.constant 0 : index
    %30 = vector.load %arg9[%c0_21, %c0_22] : memref<144x72xf32, #tpu.memory_space<vmem>>, vector<144x72xf32>
    %cst_23 = arith.constant dense<0.000000e+00> : vector<24x72xf32>
    %31 = tpu.matmul %27, %30, %cst_23 {dimension_numbers = #tpu.dot_dimension_numbers<[1], [0], [0], [1], [0, 0, 1, 1], [], []>} : vector<24x144xf32>, vector<144x72xf32>, vector<24x72xf32> -> vector<24x72xf32>
    %32 = arith.maximumf %29, %31 : vector<24x72xf32>
    %c0_24 = arith.constant 0 : index
    %c0_25 = arith.constant 0 : index
    %33 = vector.load %arg6[%c0_24, %c0_25] : memref<12x24xf32, #tpu.memory_space<vmem>>, vector<12x24xf32>
    %cst_26 = arith.constant dense<0.000000e+00> : vector<12x72xf32>
    %34 = tpu.matmul %33, %32, %cst_26 {dimension_numbers = #tpu.dot_dimension_numbers<[1], [0], [0], [1], [0, 0, 1, 1], [], []>} : vector<12x24xf32>, vector<24x72xf32>, vector<12x72xf32> -> vector<12x72xf32>
    %c0_27 = arith.constant 0 : index
    %c0_28 = arith.constant 0 : index
    %35 = vector.load %arg7[%c0_27, %c0_28] : memref<12x24xf32, #tpu.memory_space<vmem>>, vector<12x24xf32>
    %cst_29 = arith.constant dense<0.000000e+00> : vector<12x72xf32>
    %36 = tpu.matmul %35, %32, %cst_29 {dimension_numbers = #tpu.dot_dimension_numbers<[1], [0], [0], [1], [0, 0, 1, 1], [], []>} : vector<12x24xf32>, vector<24x72xf32>, vector<12x72xf32> -> vector<12x72xf32>
    %37 = arith.maximumf %34, %36 : vector<12x72xf32>
    %c0_30 = arith.constant 0 : index
    %c0_31 = arith.constant 0 : index
    %38 = vector.load %arg3[%c0_30, %c0_31] : memref<1x72xf32, #tpu.memory_space<vmem>>, vector<1x72xf32>
    %39 = vector.broadcast %38 : vector<1x72xf32> to vector<12x72xf32>
    %40 = arith.addf %37, %39 : vector<12x72xf32>
    %cst_32 = arith.constant 0.000000e+00 : f32
    %41 = vector.broadcast %cst_32 : f32 to vector<12x72xf32>
    %42 = arith.maximumf %40, %41 : vector<12x72xf32>
    %cst_33 = arith.constant 0.000000e+00 : f32
    %43 = vector.broadcast %cst_33 : f32 to vector<8x128xf32>
    %44 = vector.extract_strided_slice %42 {offsets = [0, 0], sizes = [8, 72], strides = [1, 1]} : vector<12x72xf32> to vector<8x72xf32>
    %c0_34 = arith.constant 0 : index
    %c0_35 = arith.constant 0 : index
    %c0_36 = arith.constant 0 : index
    %45 = vector.load %arg4[%c0_34, %c0_35, %c0_36] : memref<5x72x128xf32, #tpu.memory_space<vmem>>, vector<1x72x128xf32>
    %46 = vector.shape_cast %45 : vector<1x72x128xf32> to vector<72x128xf32>
    %cst_37 = arith.constant dense<0.000000e+00> : vector<8x128xf32>
    %47 = tpu.matmul %44, %46, %cst_37 {dimension_numbers = #tpu.dot_dimension_numbers<[1], [0], [0], [1], [0, 0, 1, 1], [], []>} : vector<8x72xf32>, vector<72x128xf32>, vector<8x128xf32> -> vector<8x128xf32>
    %48 = arith.addf %43, %47 : vector<8x128xf32>
    %49 = vector.extract_strided_slice %42 {offsets = [1, 0], sizes = [8, 72], strides = [1, 1]} : vector<12x72xf32> to vector<8x72xf32>
    %c1_38 = arith.constant 1 : index
    %c0_39 = arith.constant 0 : index
    %c0_40 = arith.constant 0 : index
    %50 = vector.load %arg4[%c1_38, %c0_39, %c0_40] : memref<5x72x128xf32, #tpu.memory_space<vmem>>, vector<1x72x128xf32>
    %51 = vector.shape_cast %50 : vector<1x72x128xf32> to vector<72x128xf32>
    %cst_41 = arith.constant dense<0.000000e+00> : vector<8x128xf32>
    %52 = tpu.matmul %49, %51, %cst_41 {dimension_numbers = #tpu.dot_dimension_numbers<[1], [0], [0], [1], [0, 0, 1, 1], [], []>} : vector<8x72xf32>, vector<72x128xf32>, vector<8x128xf32> -> vector<8x128xf32>
    %53 = arith.addf %48, %52 : vector<8x128xf32>
    %54 = vector.extract_strided_slice %42 {offsets = [2, 0], sizes = [8, 72], strides = [1, 1]} : vector<12x72xf32> to vector<8x72xf32>
    %c2_42 = arith.constant 2 : index
    %c0_43 = arith.constant 0 : index
    %c0_44 = arith.constant 0 : index
    %55 = vector.load %arg4[%c2_42, %c0_43, %c0_44] : memref<5x72x128xf32, #tpu.memory_space<vmem>>, vector<1x72x128xf32>
    %56 = vector.shape_cast %55 : vector<1x72x128xf32> to vector<72x128xf32>
    %cst_45 = arith.constant dense<0.000000e+00> : vector<8x128xf32>
    %57 = tpu.matmul %54, %56, %cst_45 {dimension_numbers = #tpu.dot_dimension_numbers<[1], [0], [0], [1], [0, 0, 1, 1], [], []>} : vector<8x72xf32>, vector<72x128xf32>, vector<8x128xf32> -> vector<8x128xf32>
    %58 = arith.addf %53, %57 : vector<8x128xf32>
    %59 = vector.extract_strided_slice %42 {offsets = [3, 0], sizes = [8, 72], strides = [1, 1]} : vector<12x72xf32> to vector<8x72xf32>
    %c3_46 = arith.constant 3 : index
    %c0_47 = arith.constant 0 : index
    %c0_48 = arith.constant 0 : index
    %60 = vector.load %arg4[%c3_46, %c0_47, %c0_48] : memref<5x72x128xf32, #tpu.memory_space<vmem>>, vector<1x72x128xf32>
    %61 = vector.shape_cast %60 : vector<1x72x128xf32> to vector<72x128xf32>
    %cst_49 = arith.constant dense<0.000000e+00> : vector<8x128xf32>
    %62 = tpu.matmul %59, %61, %cst_49 {dimension_numbers = #tpu.dot_dimension_numbers<[1], [0], [0], [1], [0, 0, 1, 1], [], []>} : vector<8x72xf32>, vector<72x128xf32>, vector<8x128xf32> -> vector<8x128xf32>
    %63 = arith.addf %58, %62 : vector<8x128xf32>
    %64 = vector.extract_strided_slice %42 {offsets = [4, 0], sizes = [8, 72], strides = [1, 1]} : vector<12x72xf32> to vector<8x72xf32>
    %c4_50 = arith.constant 4 : index
    %c0_51 = arith.constant 0 : index
    %c0_52 = arith.constant 0 : index
    %65 = vector.load %arg4[%c4_50, %c0_51, %c0_52] : memref<5x72x128xf32, #tpu.memory_space<vmem>>, vector<1x72x128xf32>
    %66 = vector.shape_cast %65 : vector<1x72x128xf32> to vector<72x128xf32>
    %cst_53 = arith.constant dense<0.000000e+00> : vector<8x128xf32>
    %67 = tpu.matmul %64, %66, %cst_53 {dimension_numbers = #tpu.dot_dimension_numbers<[1], [0], [0], [1], [0, 0, 1, 1], [], []>} : vector<8x72xf32>, vector<72x128xf32>, vector<8x128xf32> -> vector<8x128xf32>
    %68 = arith.addf %63, %67 : vector<8x128xf32>
    %c0_54 = arith.constant 0 : index
    %c0_55 = arith.constant 0 : index
    %69 = vector.load %arg12[%c0_54, %c0_55] : memref<128x64xf32, #tpu.memory_space<vmem>>, vector<128x64xf32>
    %cst_56 = arith.constant dense<0.000000e+00> : vector<8x64xf32>
    %70 = tpu.matmul %68, %69, %cst_56 {dimension_numbers = #tpu.dot_dimension_numbers<[1], [0], [0], [1], [0, 0, 1, 1], [], []>} : vector<8x128xf32>, vector<128x64xf32>, vector<8x64xf32> -> vector<8x64xf32>
    %c0_57 = arith.constant 0 : index
    %c0_58 = arith.constant 0 : index
    %71 = vector.load %arg13[%c0_57, %c0_58] : memref<128x64xf32, #tpu.memory_space<vmem>>, vector<128x64xf32>
    %cst_59 = arith.constant dense<0.000000e+00> : vector<8x64xf32>
    %72 = tpu.matmul %68, %71, %cst_59 {dimension_numbers = #tpu.dot_dimension_numbers<[1], [0], [0], [1], [0, 0, 1, 1], [], []>} : vector<8x128xf32>, vector<128x64xf32>, vector<8x64xf32> -> vector<8x64xf32>
    %73 = arith.maximumf %70, %72 : vector<8x64xf32>
    %c0_60 = arith.constant 0 : index
    %c0_61 = arith.constant 0 : index
    %74 = vector.load %arg10[%c0_60, %c0_61] : memref<4x8xf32, #tpu.memory_space<vmem>>, vector<4x8xf32>
    %cst_62 = arith.constant dense<0.000000e+00> : vector<4x64xf32>
    %75 = tpu.matmul %74, %73, %cst_62 {dimension_numbers = #tpu.dot_dimension_numbers<[1], [0], [0], [1], [0, 0, 1, 1], [], []>} : vector<4x8xf32>, vector<8x64xf32>, vector<4x64xf32> -> vector<4x64xf32>
    %c0_63 = arith.constant 0 : index
    %c0_64 = arith.constant 0 : index
    %76 = vector.load %arg11[%c0_63, %c0_64] : memref<4x8xf32, #tpu.memory_space<vmem>>, vector<4x8xf32>
    %cst_65 = arith.constant dense<0.000000e+00> : vector<4x64xf32>
    %77 = tpu.matmul %76, %73, %cst_65 {dimension_numbers = #tpu.dot_dimension_numbers<[1], [0], [0], [1], [0, 0, 1, 1], [], []>} : vector<4x8xf32>, vector<8x64xf32>, vector<4x64xf32> -> vector<4x64xf32>
    %78 = arith.maximumf %75, %77 : vector<4x64xf32>
    %c0_66 = arith.constant 0 : index
    %c0_67 = arith.constant 0 : index
    %79 = vector.load %arg5[%c0_66, %c0_67] : memref<1x64xf32, #tpu.memory_space<vmem>>, vector<1x64xf32>
    %80 = vector.broadcast %79 : vector<1x64xf32> to vector<4x64xf32>
    %81 = arith.addf %78, %80 : vector<4x64xf32>
    %cst_68 = arith.constant 0.000000e+00 : f32
    %82 = vector.broadcast %cst_68 : f32 to vector<4x64xf32>
    %83 = arith.maximumf %81, %82 : vector<4x64xf32>
    %cst_69 = arith.constant 0.000000e+00 : f32
    %84 = vector.broadcast %cst_69 : f32 to vector<1x120xf32>
    %85 = vector.extract_strided_slice %83 {offsets = [0, 0], sizes = [1, 64], strides = [1, 1]} : vector<4x64xf32> to vector<1x64xf32>
    %c0_70 = arith.constant 0 : index
    %c0_71 = arith.constant 0 : index
    %c0_72 = arith.constant 0 : index
    %86 = vector.load %arg14[%c0_70, %c0_71, %c0_72] : memref<4x64x120xf32, #tpu.memory_space<vmem>>, vector<1x64x120xf32>
    %87 = vector.shape_cast %86 : vector<1x64x120xf32> to vector<64x120xf32>
    %cst_73 = arith.constant dense<0.000000e+00> : vector<1x120xf32>
    %88 = tpu.matmul %85, %87, %cst_73 {dimension_numbers = #tpu.dot_dimension_numbers<[1], [0], [0], [1], [0, 0, 1, 1], [], []>} : vector<1x64xf32>, vector<64x120xf32>, vector<1x120xf32> -> vector<1x120xf32>
    %89 = arith.addf %84, %88 : vector<1x120xf32>
    %90 = vector.extract_strided_slice %83 {offsets = [1, 0], sizes = [1, 64], strides = [1, 1]} : vector<4x64xf32> to vector<1x64xf32>
    %c1_74 = arith.constant 1 : index
    %c0_75 = arith.constant 0 : index
    %c0_76 = arith.constant 0 : index
    %91 = vector.load %arg14[%c1_74, %c0_75, %c0_76] : memref<4x64x120xf32, #tpu.memory_space<vmem>>, vector<1x64x120xf32>
    %92 = vector.shape_cast %91 : vector<1x64x120xf32> to vector<64x120xf32>
    %cst_77 = arith.constant dense<0.000000e+00> : vector<1x120xf32>
    %93 = tpu.matmul %90, %92, %cst_77 {dimension_numbers = #tpu.dot_dimension_numbers<[1], [0], [0], [1], [0, 0, 1, 1], [], []>} : vector<1x64xf32>, vector<64x120xf32>, vector<1x120xf32> -> vector<1x120xf32>
    %94 = arith.addf %89, %93 : vector<1x120xf32>
    %95 = vector.extract_strided_slice %83 {offsets = [2, 0], sizes = [1, 64], strides = [1, 1]} : vector<4x64xf32> to vector<1x64xf32>
    %c2_78 = arith.constant 2 : index
    %c0_79 = arith.constant 0 : index
    %c0_80 = arith.constant 0 : index
    %96 = vector.load %arg14[%c2_78, %c0_79, %c0_80] : memref<4x64x120xf32, #tpu.memory_space<vmem>>, vector<1x64x120xf32>
    %97 = vector.shape_cast %96 : vector<1x64x120xf32> to vector<64x120xf32>
    %cst_81 = arith.constant dense<0.000000e+00> : vector<1x120xf32>
    %98 = tpu.matmul %95, %97, %cst_81 {dimension_numbers = #tpu.dot_dimension_numbers<[1], [0], [0], [1], [0, 0, 1, 1], [], []>} : vector<1x64xf32>, vector<64x120xf32>, vector<1x120xf32> -> vector<1x120xf32>
    %99 = arith.addf %94, %98 : vector<1x120xf32>
    %100 = vector.extract_strided_slice %83 {offsets = [3, 0], sizes = [1, 64], strides = [1, 1]} : vector<4x64xf32> to vector<1x64xf32>
    %c3_82 = arith.constant 3 : index
    %c0_83 = arith.constant 0 : index
    %c0_84 = arith.constant 0 : index
    %101 = vector.load %arg14[%c3_82, %c0_83, %c0_84] : memref<4x64x120xf32, #tpu.memory_space<vmem>>, vector<1x64x120xf32>
    %102 = vector.shape_cast %101 : vector<1x64x120xf32> to vector<64x120xf32>
    %cst_85 = arith.constant dense<0.000000e+00> : vector<1x120xf32>
    %103 = tpu.matmul %100, %102, %cst_85 {dimension_numbers = #tpu.dot_dimension_numbers<[1], [0], [0], [1], [0, 0, 1, 1], [], []>} : vector<1x64xf32>, vector<64x120xf32>, vector<1x120xf32> -> vector<1x120xf32>
    %104 = arith.addf %99, %103 : vector<1x120xf32>
    %c0_86 = arith.constant 0 : index
    %c0_87 = arith.constant 0 : index
    %105 = vector.load %arg15[%c0_86, %c0_87] : memref<1x120xf32, #tpu.memory_space<vmem>>, vector<1x120xf32>
    %106 = arith.addf %104, %105 : vector<1x120xf32>
    %cst_88 = arith.constant 0.000000e+00 : f32
    %107 = vector.broadcast %cst_88 : f32 to vector<1x120xf32>
    %108 = arith.maximumf %106, %107 : vector<1x120xf32>
    %c0_89 = arith.constant 0 : index
    %c0_90 = arith.constant 0 : index
    %109 = vector.load %arg16[%c0_89, %c0_90] : memref<120x84xf32, #tpu.memory_space<vmem>>, vector<120x84xf32>
    %cst_91 = arith.constant dense<0.000000e+00> : vector<1x84xf32>
    %110 = tpu.matmul %108, %109, %cst_91 {dimension_numbers = #tpu.dot_dimension_numbers<[1], [0], [0], [1], [0, 0, 1, 1], [], []>} : vector<1x120xf32>, vector<120x84xf32>, vector<1x84xf32> -> vector<1x84xf32>
    %c0_92 = arith.constant 0 : index
    %c0_93 = arith.constant 0 : index
    %111 = vector.load %arg17[%c0_92, %c0_93] : memref<1x84xf32, #tpu.memory_space<vmem>>, vector<1x84xf32>
    %112 = arith.addf %110, %111 : vector<1x84xf32>
    %cst_94 = arith.constant 0.000000e+00 : f32
    %113 = vector.broadcast %cst_94 : f32 to vector<1x84xf32>
    %114 = arith.maximumf %112, %113 : vector<1x84xf32>
    %c0_95 = arith.constant 0 : index
    %c0_96 = arith.constant 0 : index
    %115 = vector.load %arg18[%c0_95, %c0_96] : memref<84x10xf32, #tpu.memory_space<vmem>>, vector<84x10xf32>
    %cst_97 = arith.constant dense<0.000000e+00> : vector<1x10xf32>
    %116 = tpu.matmul %114, %115, %cst_97 {dimension_numbers = #tpu.dot_dimension_numbers<[1], [0], [0], [1], [0, 0, 1, 1], [], []>} : vector<1x84xf32>, vector<84x10xf32>, vector<1x10xf32> -> vector<1x10xf32>
    %c0_98 = arith.constant 0 : index
    %c0_99 = arith.constant 0 : index
    %117 = vector.load %arg19[%c0_98, %c0_99] : memref<1x10xf32, #tpu.memory_space<vmem>>, vector<1x10xf32>
    %118 = arith.addf %116, %117 : vector<1x10xf32>
    %c0_100 = arith.constant 0 : index
    %c0_101 = arith.constant 0 : index
    %c0_102 = arith.constant 0 : index
    %119 = vector.load %arg20[%c0_100, %c0_101, %c0_102] : memref<1x1x10xf32, #tpu.memory_space<vmem>>, vector<1x1x10xf32>
    %120 = vector.shape_cast %119 : vector<1x1x10xf32> to vector<1x10xf32>
    %121 = vector.shape_cast %118 : vector<1x10xf32> to vector<1x1x10xf32>
    tpu.vector_store %arg20[%c0_100, %c0_101, %c0_102], %121 {strides = array<i32>} : memref<1x1x10xf32, #tpu.memory_space<vmem>>, vector<1x1x10xf32>,
    return
  }
  func.func @transform_0(%arg0: i32) -> (i32, i32, i32) {
    %c0_i32 = arith.constant 0 : i32
    %c0_i32_0 = arith.constant 0 : i32
    %c0_i32_1 = arith.constant 0 : i32
    return %arg0, %c0_i32, %c0_i32_0 : i32, i32, i32
  }
  func.func @transform_1(%arg0: i32) -> (i32, i32, i32) {
    %c0_i32 = arith.constant 0 : i32
    %c0_i32_0 = arith.constant 0 : i32
    %c0_i32_1 = arith.constant 0 : i32
    %c0_i32_2 = arith.constant 0 : i32
    return %c0_i32, %c0_i32_0, %c0_i32_1 : i32, i32, i32
  }
  func.func @transform_2(%arg0: i32) -> (i32, i32) {
    %c0_i32 = arith.constant 0 : i32
    %c0_i32_0 = arith.constant 0 : i32
    %c0_i32_1 = arith.constant 0 : i32
    return %c0_i32, %c0_i32_0 : i32, i32
  }
  func.func @transform_3(%arg0: i32) -> (i32, i32, i32) {
    %c0_i32 = arith.constant 0 : i32
    %c0_i32_0 = arith.constant 0 : i32
    %c0_i32_1 = arith.constant 0 : i32
    %c0_i32_2 = arith.constant 0 : i32
    return %c0_i32, %c0_i32_0, %c0_i32_1 : i32, i32, i32
  }
  func.func @transform_4(%arg0: i32) -> (i32, i32) {
    %c0_i32 = arith.constant 0 : i32
    %c0_i32_0 = arith.constant 0 : i32
    %c0_i32_1 = arith.constant 0 : i32
    return %c0_i32, %c0_i32_0 : i32, i32
  }
  func.func @transform_5(%arg0: i32) -> (i32, i32) {
    %c0_i32 = arith.constant 0 : i32
    %c0_i32_0 = arith.constant 0 : i32
    %c0_i32_1 = arith.constant 0 : i32
    return %c0_i32, %c0_i32_0 : i32, i32
  }
  func.func @transform_6(%arg0: i32) -> (i32, i32) {
    %c0_i32 = arith.constant 0 : i32
    %c0_i32_0 = arith.constant 0 : i32
    %c0_i32_1 = arith.constant 0 : i32
    return %c0_i32, %c0_i32_0 : i32, i32
  }
  func.func @transform_7(%arg0: i32) -> (i32, i32) {
    %c0_i32 = arith.constant 0 : i32
    %c0_i32_0 = arith.constant 0 : i32
    %c0_i32_1 = arith.constant 0 : i32
    return %c0_i32, %c0_i32_0 : i32, i32
  }
  func.func @transform_8(%arg0: i32) -> (i32, i32) {
    %c0_i32 = arith.constant 0 : i32
    %c0_i32_0 = arith.constant 0 : i32
    %c0_i32_1 = arith.constant 0 : i32
    return %c0_i32, %c0_i32_0 : i32, i32
  }
  func.func @transform_9(%arg0: i32) -> (i32, i32) {
    %c0_i32 = arith.constant 0 : i32
    %c0_i32_0 = arith.constant 0 : i32
    %c0_i32_1 = arith.constant 0 : i32
    return %c0_i32, %c0_i32_0 : i32, i32
  }
  func.func @transform_10(%arg0: i32) -> (i32, i32) {
    %c0_i32 = arith.constant 0 : i32
    %c0_i32_0 = arith.constant 0 : i32
    %c0_i32_1 = arith.constant 0 : i32
    return %c0_i32, %c0_i32_0 : i32, i32
  }
  func.func @transform_11(%arg0: i32) -> (i32, i32) {
    %c0_i32 = arith.constant 0 : i32
    %c0_i32_0 = arith.constant 0 : i32
    %c0_i32_1 = arith.constant 0 : i32
    return %c0_i32, %c0_i32_0 : i32, i32
  }
  func.func @transform_12(%arg0: i32) -> (i32, i32) {
    %c0_i32 = arith.constant 0 : i32
    %c0_i32_0 = arith.constant 0 : i32
    %c0_i32_1 = arith.constant 0 : i32
    return %c0_i32, %c0_i32_0 : i32, i32
  }
  func.func @transform_13(%arg0: i32) -> (i32, i32, i32) {
    %c0_i32 = arith.constant 0 : i32
    %c0_i32_0 = arith.constant 0 : i32
    %c0_i32_1 = arith.constant 0 : i32
    %c0_i32_2 = arith.constant 0 : i32
    return %c0_i32, %c0_i32_0, %c0_i32_1 : i32, i32, i32
  }
  func.func @transform_14(%arg0: i32) -> (i32, i32) {
    %c0_i32 = arith.constant 0 : i32
    %c0_i32_0 = arith.constant 0 : i32
    %c0_i32_1 = arith.constant 0 : i32
    return %c0_i32, %c0_i32_0 : i32, i32
  }
  func.func @transform_15(%arg0: i32) -> (i32, i32) {
    %c0_i32 = arith.constant 0 : i32
    %c0_i32_0 = arith.constant 0 : i32
    %c0_i32_1 = arith.constant 0 : i32
    return %c0_i32, %c0_i32_0 : i32, i32
  }
  func.func @transform_16(%arg0: i32) -> (i32, i32) {
    %c0_i32 = arith.constant 0 : i32
    %c0_i32_0 = arith.constant 0 : i32
    %c0_i32_1 = arith.constant 0 : i32
    return %c0_i32, %c0_i32_0 : i32, i32
  }
  func.func @transform_17(%arg0: i32) -> (i32, i32) {
    %c0_i32 = arith.constant 0 : i32
    %c0_i32_0 = arith.constant 0 : i32
    %c0_i32_1 = arith.constant 0 : i32
    return %c0_i32, %c0_i32_0 : i32, i32
  }
  func.func @transform_18(%arg0: i32) -> (i32, i32) {
    %c0_i32 = arith.constant 0 : i32
    %c0_i32_0 = arith.constant 0 : i32
    %c0_i32_1 = arith.constant 0 : i32
    return %c0_i32, %c0_i32_0 : i32, i32
  }
  func.func @transform_19(%arg0: i32) -> (i32, i32, i32) {
    %c0_i32 = arith.constant 0 : i32
    %c0_i32_0 = arith.constant 0 : i32
    %c0_i32_1 = arith.constant 0 : i32
    return %arg0, %c0_i32, %c0_i32_0 : i32, i32, i32
  }
}

</mosaic_0001>

<llo_original>
// kernel: cnn_classifier_forward.1
$region0: #{cnn_classifier_forward.1}
  #allocation0 [shape = 'u32[]', space=smem, size = 0x4, offset = 0x4, fixed_abs, tag = 'smem constant byte address 0x4 - core index']
  #allocation1 [shape = 'u32[144,128]{1,0:T(1,128)}', space=vmem, size = 0x12000, scoped, tag = 'internal scratch']
  %s0 = inlined_call_operand.vmem [shape: f32[2,28,28], index: 0, kind: input, shape index: {}]
  %s1 = inlined_call_operand.vmem [shape: f32[5,28,144], index: 1, kind: input, shape index: {}]
  %s2 = inlined_call_operand.hbm [shape: f32[1,72], index: 2, kind: input, shape index: {}]
  %s3 = inlined_call_operand.vmem [shape: f32[5,72,128], index: 3, kind: input, shape index: {}]
  %s4 = inlined_call_operand.hbm [shape: f32[1,64], index: 4, kind: input, shape index: {}]
  %s5 = inlined_call_operand.hbm [shape: f32[12,24], index: 5, kind: input, shape index: {}]
  %s6 = inlined_call_operand.hbm [shape: f32[12,24], index: 6, kind: input, shape index: {}]
  %s7 = inlined_call_operand.hbm [shape: f32[144,72], index: 7, kind: input, shape index: {}]
  %s8 = inlined_call_operand.hbm [shape: f32[144,72], index: 8, kind: input, shape index: {}]
  %s9 = inlined_call_operand.vmem [shape: f32[4,8], index: 9, kind: input, shape index: {}]
  %s10 = inlined_call_operand.hbm [shape: f32[4,8], index: 10, kind: input, shape index: {}]
  %s11 = inlined_call_operand.vmem [shape: f32[128,64], index: 11, kind: input, shape index: {}]
  %s12 = inlined_call_operand.vmem [shape: f32[128,64], index: 12, kind: input, shape index: {}]
  %s13 = inlined_call_operand.vmem [shape: f32[4,64,120], index: 13, kind: input, shape index: {}]
  %s14 = inlined_call_operand.hbm [shape: f32[1,120], index: 14, kind: input, shape index: {}]
  %s15 = inlined_call_operand.vmem [shape: f32[120,84], index: 15, kind: input, shape index: {}]
  %s16 = inlined_call_operand.hbm [shape: f32[1,84], index: 16, kind: input, shape index: {}]
  %s17 = inlined_call_operand.vmem [shape: f32[84,10], index: 17, kind: input, shape index: {}]
  %s18 = inlined_call_operand.hbm [shape: f32[1,10], index: 18, kind: input, shape index: {}]
  %s19 = inlined_call_operand.hbm [shape: f32[2,1,10], index: 19, kind: output, shape index: {}]
  %s20 = sld [smem:[#allocation0]]
  $region149: #{cnn_classifier_forward.1} parent=0
    _
  %s22 = ssub.s32 1, %s20
  %s23 = scalar_select 0, %s22, %s20
  $region1: #{cnn_classifier_forward.1} parent=0
    #allocation2 [shape = 'u8[512]{0}', space=vmem, size = 0x400, scoped, tag = 'input window, operand 2, single buffered']
    #allocation3 [shape = 's32[2]{0}', space=sflag, size = 0x8, scoped, tag = 'scoped memory for cnn_classifier_forward.1']
    #allocation4 [shape = 's32[2]{0}', space=sflag, size = 0x8, scoped, tag = 'scoped memory for cnn_classifier_forward.1']
    #allocation5 [shape = 'u8[512]{0}', space=vmem, size = 0x400, scoped, tag = 'input window, operand 4, single buffered']
    #allocation6 [shape = 's32[1]{0}', space=sflag, size = 0x4, scoped, tag = 'scoped memory for cnn_classifier_forward.1']
    #allocation7 [shape = 'u8[8192]{0}', space=vmem, size = 0x2000, scoped, tag = 'input window, operand 5, single buffered']
    #allocation8 [shape = 'u8[8192]{0}', space=vmem, size = 0x2000, scoped, tag = 'input window, operand 6, single buffered']
    #allocation9 [shape = 's32[1]{0}', space=sflag, size = 0x4, scoped, tag = 'scoped memory for cnn_classifier_forward.1']
    #allocation10 [shape = 'u8[73728]{0}', space=vmem, size = 0x12000, scoped, tag = 'input window, operand 7, single buffered']
    #allocation11 [shape = 'u8[73728]{0}', space=vmem, size = 0x12000, scoped, tag = 'input window, operand 8, single buffered']
    #allocation12 [shape = 's32[1]{0}', space=sflag, size = 0x4, scoped, tag = 'scoped memory for cnn_classifier_forward.1']
    #allocation13 [shape = 'u8[2048]{0}', space=vmem, size = 0x800, scoped, tag = 'input window, operand 10, single buffered']
    #allocation14 [shape = 'u8[512]{0}', space=vmem, size = 0x400, scoped, tag = 'input window, operand 14, single buffered']
    #allocation15 [shape = 's32[1]{0}', space=sflag, size = 0x4, scoped, tag = 'scoped memory for cnn_classifier_forward.1']
    #allocation16 [shape = 'u8[512]{0}', space=vmem, size = 0x400, scoped, tag = 'input window, operand 16, single buffered']
    #allocation17 [shape = 'u8[512]{0}', space=vmem, size = 0x400, scoped, tag = 'input window, operand 18, single buffered']
    #allocation18 [shape = 's32[1]{0}', space=sflag, size = 0x4, scoped, tag = 'scoped memory for cnn_classifier_forward.1']
    #allocation19 [shape = 'u8[1024]{0}', space=vmem, size = 0x400, scoped, tag = 'output window, operand 0']
    %24 = vsyncpa [#allocation3], 0
    %25 = vsyncpa [#allocation6], 0
    %26 = vsyncpa [#allocation9], 0
    %27 = vsyncpa [#allocation12], 0
    %28 = vsyncpa [#allocation15], 0
    %29 = vsyncpa [#allocation18], 0
    %30 = vsyncpa [#allocation4], 0
    %s31 = scalar_lea.sflag [#allocation4], 1
    %32 = vsyncpa %s31, 0
    loop: start=0, step=1, limit=4
    $region2: #{cnn_classifier_forward.1} parent=1 // loop_pre_header
      _
    $region3: #{cnn_classifier_forward.1} parent=1 // loop_header
      %s34 = sphi 0, %s38
      %p35 = scmp.ge.s32.totalorder %s34, 4
      %s44 = sphi 0, %s46
      %s47 = sphi 0, %s44
      %s48 = sphi 0, %s47
      %s64 = sphi 0, %s48
      %s68 = sphi 0, %s68
      %s70 = sphi 0, %s68
      %s71 = sphi 0, %s70
      %s85 = sphi 0, %s71
      %s89 = sphi 0, %s89
      %s91 = sphi 0, %s89
      %s92 = sphi 0, %s91
      %s106 = sphi 0, %s92
      %s110 = sphi 0, %s110
      %s112 = sphi 0, %s110
      %s113 = sphi 0, %s112
      %s127 = sphi 0, %s113
      %s131 = sphi 0, %s131
      %s133 = sphi 0, %s131
      %s134 = sphi 0, %s133
      %s148 = sphi 0, %s134
      %s152 = sphi 0, %s152
      %s154 = sphi 0, %s152
      %s155 = sphi 0, %s154
      %s169 = sphi 0, %s155
      %s173 = sphi 0, %s173
      %s175 = sphi 0, %s173
      %s176 = sphi 0, %s175
      %s190 = sphi 0, %s176
      %s194 = sphi 0, %s194
      %s196 = sphi 0, %s194
      %s197 = sphi 0, %s196
      %s211 = sphi 0, %s197
      %s215 = sphi 0, %s215
      %s217 = sphi 0, %s215
      %s218 = sphi 0, %s217
      %s232 = sphi 0, %s218
      %s236 = sphi 0, %s236
      %s238 = sphi 0, %s236
      %s239 = sphi 0, %s238
      %s253 = sphi 0, %s239
      %s257 = sphi 0, %s257
      %s259 = sphi 0, %s257
      %s260 = sphi 0, %s259
      %s274 = sphi 0, %s260
      %s278 = sphi 0, %s278
      %s280 = sphi 0, %s278
      %s281 = sphi 0, %s280
      %s295 = sphi 0, %s281
      %s299 = sphi 0, %s299
      %s301 = sphi 0, %s299
      %s302 = sphi 0, %s301
      %s316 = sphi 0, %s302
      %s320 = sphi 0, %s320
      %s322 = sphi 0, %s320
      %s323 = sphi 0, %s322
      %s337 = sphi 0, %s323
      %s341 = sphi 0, %s341
      %s343 = sphi 0, %s341
      %s344 = sphi 0, %s343
      %s358 = sphi 0, %s344
      %s362 = sphi 0, %s362
      %s364 = sphi 0, %s362
      %s365 = sphi 0, %s364
      %s379 = sphi 0, %s365
      %s383 = sphi 0, %s383
      %s385 = sphi 0, %s383
      %s386 = sphi 0, %s385
      %s400 = sphi 0, %s386
      %s404 = sphi 0, %s404
      %s406 = sphi 0, %s404
      %s407 = sphi 0, %s406
      %s421 = sphi 0, %s407
      %s425 = sphi 0, %s425
      %s427 = sphi 0, %s425
      %s428 = sphi 0, %s427
      %s442 = sphi 0, %s428
      %s448 = sphi 0, %s450
      %s451 = sphi 0, %s448
      %s452 = sphi 0, %s451
      %s468 = sphi 0, %s452
    $region4: #{cnn_classifier_forward.1} parent=1 // loop_header_branch
      %37 = sbr.rel (%p35) target = $region8
    $region5: #{cnn_classifier_forward.1} parent=1 // loop_body
      %s39 = ssub.s32 %s34, 1
      %s40 = ssub.s32 %s34, 2
      %s41 = sadd.s32 %s34, 1
      %s42 = ssub.s32 %s34, %s41
      %p43 = scmp.eq.s32.totalorder %s42, 0
      %s45 = sadd.s32 %s44, 1
      %s46 = scalar_select %p43, %s44, %s45
      %p49 = pneg %p43
      %p50 = scmp.eq.s32.totalorder %s34, 1
      %p51 = por %p49, %p50
      %p52 = scmp.ne.s32.totalorder %s44, %s47
      %p53 = scmp.eq.s32.totalorder %s34, 0
      %p54 = por %p52, %p53
      %p55 = scmp.ne.s32.totalorder %s44, %s47
      %p56 = scmp.eq.s32.totalorder %s39, 1
      %p57 = por %p55, %p56
      %p58 = scmp.ne.s32.totalorder %s47, %s48
      %p59 = scmp.eq.s32.totalorder %s39, 0
      %p60 = por %p58, %p59
      %p61 = scmp.ne.s32.totalorder %s47, %s48
      %p62 = scmp.eq.s32.totalorder %s40, 1
      %p63 = por %p61, %p62
      %p65 = scmp.ne.s32.totalorder %s48, %s64
      %p66 = scmp.eq.s32.totalorder %s40, 0
      %p67 = por %p65, %p66
      %s69 = sadd.s32 %s68, 1
      %p72 = scmp.eq.s32.totalorder %s34, 1
      %p73 = scmp.ne.s32.totalorder %s68, %s70
      %p74 = scmp.eq.s32.totalorder %s34, 0
      %p75 = por %p73, %p74
      %p76 = scmp.ne.s32.totalorder %s68, %s70
      %p77 = scmp.eq.s32.totalorder %s39, 1
      %p78 = por %p76, %p77
      %p79 = scmp.ne.s32.totalorder %s70, %s71
      %p80 = scmp.eq.s32.totalorder %s39, 0
      %p81 = por %p79, %p80
      %p82 = scmp.ne.s32.totalorder %s70, %s71
      %p83 = scmp.eq.s32.totalorder %s40, 1
      %p84 = por %p82, %p83
      %p86 = scmp.ne.s32.totalorder %s71, %s85
      %p87 = scmp.eq.s32.totalorder %s40, 0
      %p88 = por %p86, %p87
      %s90 = sadd.s32 %s89, 1
      %p93 = scmp.eq.s32.totalorder %s34, 1
      %p94 = scmp.ne.s32.totalorder %s89, %s91
      %p95 = scmp.eq.s32.totalorder %s34, 0
      %p96 = por %p94, %p95
      %p97 = scmp.ne.s32.totalorder %s89, %s91
      %p98 = scmp.eq.s32.totalorder %s39, 1
      %p99 = por %p97, %p98
      %p100 = scmp.ne.s32.totalorder %s91, %s92
      %p101 = scmp.eq.s32.totalorder %s39, 0
      %p102 = por %p100, %p101
      %p103 = scmp.ne.s32.totalorder %s91, %s92
      %p104 = scmp.eq.s32.totalorder %s40, 1
      %p105 = por %p103, %p104
      %p107 = scmp.ne.s32.totalorder %s92, %s106
      %p108 = scmp.eq.s32.totalorder %s40, 0
      %p109 = por %p107, %p108
      %s111 = sadd.s32 %s110, 1
      %p114 = scmp.eq.s32.totalorder %s34, 1
      %p115 = scmp.ne.s32.totalorder %s110, %s112
      %p116 = scmp.eq.s32.totalorder %s34, 0
      %p117 = por %p115, %p116
      %p118 = scmp.ne.s32.totalorder %s110, %s112
      %p119 = scmp.eq.s32.totalorder %s39, 1
      %p120 = por %p118, %p119
      %p121 = scmp.ne.s32.totalorder %s112, %s113
      %p122 = scmp.eq.s32.totalorder %s39, 0
      %p123 = por %p121, %p122
      %p124 = scmp.ne.s32.totalorder %s112, %s113
      %p125 = scmp.eq.s32.totalorder %s40, 1
      %p126 = por %p124, %p125
      %p128 = scmp.ne.s32.totalorder %s113, %s127
      %p129 = scmp.eq.s32.totalorder %s40, 0
      %p130 = por %p128, %p129
      %s132 = sadd.s32 %s131, 1
      %p135 = scmp.eq.s32.totalorder %s34, 1
      %p136 = scmp.ne.s32.totalorder %s131, %s133
      %p137 = scmp.eq.s32.totalorder %s34, 0
      %p138 = por %p136, %p137
      %p139 = scmp.ne.s32.totalorder %s131, %s133
      %p140 = scmp.eq.s32.totalorder %s39, 1
      %p141 = por %p139, %p140
      %p142 = scmp.ne.s32.totalorder %s133, %s134
      %p143 = scmp.eq.s32.totalorder %s39, 0
      %p144 = por %p142, %p143
      %p145 = scmp.ne.s32.totalorder %s133, %s134
      %p146 = scmp.eq.s32.totalorder %s40, 1
      %p147 = por %p145, %p146
      %p149 = scmp.ne.s32.totalorder %s134, %s148
      %p150 = scmp.eq.s32.totalorder %s40, 0
      %p151 = por %p149, %p150
      %s153 = sadd.s32 %s152, 1
      %p156 = scmp.eq.s32.totalorder %s34, 1
      %p157 = scmp.ne.s32.totalorder %s152, %s154
      %p158 = scmp.eq.s32.totalorder %s34, 0
      %p159 = por %p157, %p158
      %p160 = scmp.ne.s32.totalorder %s152, %s154
      %p161 = scmp.eq.s32.totalorder %s39, 1
      %p162 = por %p160, %p161
      %p163 = scmp.ne.s32.totalorder %s154, %s155
      %p164 = scmp.eq.s32.totalorder %s39, 0
      %p165 = por %p163, %p164
      %p166 = scmp.ne.s32.totalorder %s154, %s155
      %p167 = scmp.eq.s32.totalorder %s40, 1
      %p168 = por %p166, %p167
      %p170 = scmp.ne.s32.totalorder %s155, %s169
      %p171 = scmp.eq.s32.totalorder %s40, 0
      %p172 = por %p170, %p171
      %s174 = sadd.s32 %s173, 1
      %p177 = scmp.eq.s32.totalorder %s34, 1
      %p178 = scmp.ne.s32.totalorder %s173, %s175
      %p179 = scmp.eq.s32.totalorder %s34, 0
      %p180 = por %p178, %p179
      %p181 = scmp.ne.s32.totalorder %s173, %s175
      %p182 = scmp.eq.s32.totalorder %s39, 1
      %p183 = por %p181, %p182
      %p184 = scmp.ne.s32.totalorder %s175, %s176
      %p185 = scmp.eq.s32.totalorder %s39, 0
      %p186 = por %p184, %p185
      %p187 = scmp.ne.s32.totalorder %s175, %s176
      %p188 = scmp.eq.s32.totalorder %s40, 1
      %p189 = por %p187, %p188
      %p191 = scmp.ne.s32.totalorder %s176, %s190
      %p192 = scmp.eq.s32.totalorder %s40, 0
      %p193 = por %p191, %p192
      %s195 = sadd.s32 %s194, 1
      %p198 = scmp.eq.s32.totalorder %s34, 1
      %p199 = scmp.ne.s32.totalorder %s194, %s196
      %p200 = scmp.eq.s32.totalorder %s34, 0
      %p201 = por %p199, %p200
      %p202 = scmp.ne.s32.totalorder %s194, %s196
      %p203 = scmp.eq.s32.totalorder %s39, 1
      %p204 = por %p202, %p203
      %p205 = scmp.ne.s32.totalorder %s196, %s197
      %p206 = scmp.eq.s32.totalorder %s39, 0
      %p207 = por %p205, %p206
      %p208 = scmp.ne.s32.totalorder %s196, %s197
      %p209 = scmp.eq.s32.totalorder %s40, 1
      %p210 = por %p208, %p209
      %p212 = scmp.ne.s32.totalorder %s197, %s211
      %p213 = scmp.eq.s32.totalorder %s40, 0
      %p214 = por %p212, %p213
      %s216 = sadd.s32 %s215, 1
      %p219 = scmp.eq.s32.totalorder %s34, 1
      %p220 = scmp.ne.s32.totalorder %s215, %s217
      %p221 = scmp.eq.s32.totalorder %s34, 0
      %p222 = por %p220, %p221
      %p223 = scmp.ne.s32.totalorder %s215, %s217
      %p224 = scmp.eq.s32.totalorder %s39, 1
      %p225 = por %p223, %p224
      %p226 = scmp.ne.s32.totalorder %s217, %s218
      %p227 = scmp.eq.s32.totalorder %s39, 0
      %p228 = por %p226, %p227
      %p229 = scmp.ne.s32.totalorder %s217, %s218
      %p230 = scmp.eq.s32.totalorder %s40, 1
      %p231 = por %p229, %p230
      %p233 = scmp.ne.s32.totalorder %s218, %s232
      %p234 = scmp.eq.s32.totalorder %s40, 0
      %p235 = por %p233, %p234
      %s237 = sadd.s32 %s236, 1
      %p240 = scmp.eq.s32.totalorder %s34, 1
      %p241 = scmp.ne.s32.totalorder %s236, %s238
      %p242 = scmp.eq.s32.totalorder %s34, 0
      %p243 = por %p241, %p242
      %p244 = scmp.ne.s32.totalorder %s236, %s238
      %p245 = scmp.eq.s32.totalorder %s39, 1
      %p246 = por %p244, %p245
      %p247 = scmp.ne.s32.totalorder %s238, %s239
      %p248 = scmp.eq.s32.totalorder %s39, 0
      %p249 = por %p247, %p248
      %p250 = scmp.ne.s32.totalorder %s238, %s239
      %p251 = scmp.eq.s32.totalorder %s40, 1
      %p252 = por %p250, %p251
      %p254 = scmp.ne.s32.totalorder %s239, %s253
      %p255 = scmp.eq.s32.totalorder %s40, 0
      %p256 = por %p254, %p255
      %s258 = sadd.s32 %s257, 1
      %p261 = scmp.eq.s32.totalorder %s34, 1
      %p262 = scmp.ne.s32.totalorder %s257, %s259
      %p263 = scmp.eq.s32.totalorder %s34, 0
      %p264 = por %p262, %p263
      %p265 = scmp.ne.s32.totalorder %s257, %s259
      %p266 = scmp.eq.s32.totalorder %s39, 1
      %p267 = por %p265, %p266
      %p268 = scmp.ne.s32.totalorder %s259, %s260
      %p269 = scmp.eq.s32.totalorder %s39, 0
      %p270 = por %p268, %p269
      %p271 = scmp.ne.s32.totalorder %s259, %s260
      %p272 = scmp.eq.s32.totalorder %s40, 1
      %p273 = por %p271, %p272
      %p275 = scmp.ne.s32.totalorder %s260, %s274
      %p276 = scmp.eq.s32.totalorder %s40, 0
      %p277 = por %p275, %p276
      %s279 = sadd.s32 %s278, 1
      %p282 = scmp.eq.s32.totalorder %s34, 1
      %p283 = scmp.ne.s32.totalorder %s278, %s280
      %p284 = scmp.eq.s32.totalorder %s34, 0
      %p285 = por %p283, %p284
      %p286 = scmp.ne.s32.totalorder %s278, %s280
      %p287 = scmp.eq.s32.totalorder %s39, 1
      %p288 = por %p286, %p287
      %p289 = scmp.ne.s32.totalorder %s280, %s281
      %p290 = scmp.eq.s32.totalorder %s39, 0
      %p291 = por %p289, %p290
      %p292 = scmp.ne.s32.totalorder %s280, %s281
      %p293 = scmp.eq.s32.totalorder %s40, 1
      %p294 = por %p292, %p293
      %p296 = scmp.ne.s32.totalorder %s281, %s295
      %p297 = scmp.eq.s32.totalorder %s40, 0
      %p298 = por %p296, %p297
      %s300 = sadd.s32 %s299, 1
      %p303 = scmp.eq.s32.totalorder %s34, 1
      %p304 = scmp.ne.s32.totalorder %s299, %s301
      %p305 = scmp.eq.s32.totalorder %s34, 0
      %p306 = por %p304, %p305
      %p307 = scmp.ne.s32.totalorder %s299, %s301
      %p308 = scmp.eq.s32.totalorder %s39, 1
      %p309 = por %p307, %p308
      %p310 = scmp.ne.s32.totalorder %s301, %s302
      %p311 = scmp.eq.s32.totalorder %s39, 0
      %p312 = por %p310, %p311
      %p313 = scmp.ne.s32.totalorder %s301, %s302
      %p314 = scmp.eq.s32.totalorder %s40, 1
      %p315 = por %p313, %p314
      %p317 = scmp.ne.s32.totalorder %s302, %s316
      %p318 = scmp.eq.s32.totalorder %s40, 0
      %p319 = por %p317, %p318
      %s321 = sadd.s32 %s320, 1
      %p324 = scmp.eq.s32.totalorder %s34, 1
      %p325 = scmp.ne.s32.totalorder %s320, %s322
      %p326 = scmp.eq.s32.totalorder %s34, 0
      %p327 = por %p325, %p326
      %p328 = scmp.ne.s32.totalorder %s320, %s322
      %p329 = scmp.eq.s32.totalorder %s39, 1
      %p330 = por %p328, %p329
      %p331 = scmp.ne.s32.totalorder %s322, %s323
      %p332 = scmp.eq.s32.totalorder %s39, 0
      %p333 = por %p331, %p332
      %p334 = scmp.ne.s32.totalorder %s322, %s323
      %p335 = scmp.eq.s32.totalorder %s40, 1
      %p336 = por %p334, %p335
      %p338 = scmp.ne.s32.totalorder %s323, %s337
      %p339 = scmp.eq.s32.totalorder %s40, 0
      %p340 = por %p338, %p339
      %s342 = sadd.s32 %s341, 1
      %p345 = scmp.eq.s32.totalorder %s34, 1
      %p346 = scmp.ne.s32.totalorder %s341, %s343
      %p347 = scmp.eq.s32.totalorder %s34, 0
      %p348 = por %p346, %p347
      %p349 = scmp.ne.s32.totalorder %s341, %s343
      %p350 = scmp.eq.s32.totalorder %s39, 1
      %p351 = por %p349, %p350
      %p352 = scmp.ne.s32.totalorder %s343, %s344
      %p353 = scmp.eq.s32.totalorder %s39, 0
      %p354 = por %p352, %p353
      %p355 = scmp.ne.s32.totalorder %s343, %s344
      %p356 = scmp.eq.s32.totalorder %s40, 1
      %p357 = por %p355, %p356
      %p359 = scmp.ne.s32.totalorder %s344, %s358
      %p360 = scmp.eq.s32.totalorder %s40, 0
      %p361 = por %p359, %p360
      %s363 = sadd.s32 %s362, 1
      %p366 = scmp.eq.s32.totalorder %s34, 1
      %p367 = scmp.ne.s32.totalorder %s362, %s364
      %p368 = scmp.eq.s32.totalorder %s34, 0
      %p369 = por %p367, %p368
      %p370 = scmp.ne.s32.totalorder %s362, %s364
      %p371 = scmp.eq.s32.totalorder %s39, 1
      %p372 = por %p370, %p371
      %p373 = scmp.ne.s32.totalorder %s364, %s365
      %p374 = scmp.eq.s32.totalorder %s39, 0
      %p375 = por %p373, %p374
      %p376 = scmp.ne.s32.totalorder %s364, %s365
      %p377 = scmp.eq.s32.totalorder %s40, 1
      %p378 = por %p376, %p377
      %p380 = scmp.ne.s32.totalorder %s365, %s379
      %p381 = scmp.eq.s32.totalorder %s40, 0
      %p382 = por %p380, %p381
      %s384 = sadd.s32 %s383, 1
      %p387 = scmp.eq.s32.totalorder %s34, 1
      %p388 = scmp.ne.s32.totalorder %s383, %s385
      %p389 = scmp.eq.s32.totalorder %s34, 0
      %p390 = por %p388, %p389
      %p391 = scmp.ne.s32.totalorder %s383, %s385
      %p392 = scmp.eq.s32.totalorder %s39, 1
      %p393 = por %p391, %p392
      %p394 = scmp.ne.s32.totalorder %s385, %s386
      %p395 = scmp.eq.s32.totalorder %s39, 0
      %p396 = por %p394, %p395
      %p397 = scmp.ne.s32.totalorder %s385, %s386
      %p398 = scmp.eq.s32.totalorder %s40, 1
      %p399 = por %p397, %p398
      %p401 = scmp.ne.s32.totalorder %s386, %s400
      %p402 = scmp.eq.s32.totalorder %s40, 0
      %p403 = por %p401, %p402
      %s405 = sadd.s32 %s404, 1
      %p408 = scmp.eq.s32.totalorder %s34, 1
      %p409 = scmp.ne.s32.totalorder %s404, %s406
      %p410 = scmp.eq.s32.totalorder %s34, 0
      %p411 = por %p409, %p410
      %p412 = scmp.ne.s32.totalorder %s404, %s406
      %p413 = scmp.eq.s32.totalorder %s39, 1
      %p414 = por %p412, %p413
      %p415 = scmp.ne.s32.totalorder %s406, %s407
      %p416 = scmp.eq.s32.totalorder %s39, 0
      %p417 = por %p415, %p416
      %p418 = scmp.ne.s32.totalorder %s406, %s407
      %p419 = scmp.eq.s32.totalorder %s40, 1
      %p420 = por %p418, %p419
      %p422 = scmp.ne.s32.totalorder %s407, %s421
      %p423 = scmp.eq.s32.totalorder %s40, 0
      %p424 = por %p422, %p423
      %s426 = sadd.s32 %s425, 1
      %p429 = scmp.eq.s32.totalorder %s34, 1
      %p430 = scmp.ne.s32.totalorder %s425, %s427
      %p431 = scmp.eq.s32.totalorder %s34, 0
      %p432 = por %p430, %p431
      %p433 = scmp.ne.s32.totalorder %s425, %s427
      %p434 = scmp.eq.s32.totalorder %s39, 1
      %p435 = por %p433, %p434
      %p436 = scmp.ne.s32.totalorder %s427, %s428
      %p437 = scmp.eq.s32.totalorder %s39, 0
      %p438 = por %p436, %p437
      %p439 = scmp.ne.s32.totalorder %s427, %s428
      %p440 = scmp.eq.s32.totalorder %s40, 1
      %p441 = por %p439, %p440
      %p443 = scmp.ne.s32.totalorder %s428, %s442
      %p444 = scmp.eq.s32.totalorder %s40, 0
      %p445 = por %p443, %p444
      %s446 = ssub.s32 %s34, %s41
      %p447 = scmp.eq.s32.totalorder %s446, 0
      %s449 = sadd.s32 %s448, 1
      %s450 = scalar_select %p447, %s448, %s449
      %p453 = pneg %p447
      %p454 = scmp.eq.s32.totalorder %s34, 1
      %p455 = por %p453, %p454
      %p456 = scmp.ne.s32.totalorder %s448, %s451
      %p457 = scmp.eq.s32.totalorder %s34, 0
      %p458 = por %p456, %p457
      %p459 = scmp.ne.s32.totalorder %s448, %s451
      %p460 = scmp.eq.s32.totalorder %s39, 1
      %p461 = por %p459, %p460
      %p462 = scmp.ne.s32.totalorder %s451, %s452
      %p463 = scmp.eq.s32.totalorder %s39, 0
      %p464 = por %p462, %p463
      %p465 = scmp.ne.s32.totalorder %s451, %s452
      %p466 = scmp.eq.s32.totalorder %s40, 1
      %p467 = por %p465, %p466
      %p469 = scmp.ne.s32.totalorder %s452, %s468
      %p470 = scmp.eq.s32.totalorder %s40, 0
      %p471 = por %p469, %p470
      %p472 = scmp.le.s32.totalorder 1, %s34
      %p473 = scmp.lt.s32.totalorder %s34, 3
      %p474 = pnand %p472, %p473
      %p475 = pneg %p474
      // Predicated region
      $region9: #{cnn_classifier_forward.1} parent=5 // pred_check
        _
      $region10: #{cnn_classifier_forward.1} parent=5 // pred_check_branch
        %477 = sbr.rel (%p474) target = $region12
      $region11: #{cnn_classifier_forward.1} parent=5 // pred_region
        %s478 = ssub.s32 %s34, 1
        // Predicated region
        $region13: #{cnn_classifier_forward.1} parent=11 // pred_check
          %p479 = pneg %p81
        $region14: #{cnn_classifier_forward.1} parent=11 // pred_check_branch
          %481 = sbr.rel (%p479) target = $region16
        $region15: #{cnn_classifier_forward.1} parent=11 // pred_region
          _
        $region16: #{cnn_classifier_forward.1} parent=11 // pred_fallthru
          _
        // Predicated region
        $region17: #{cnn_classifier_forward.1} parent=11 // pred_check
          %p482 = pneg %p102
        $region18: #{cnn_classifier_forward.1} parent=11 // pred_check_branch
          %484 = sbr.rel (%p482) target = $region20
        $region19: #{cnn_classifier_forward.1} parent=11 // pred_region
          %s486 = ssub.s32 16, 16
          %487 = vsyncadd [#allocation3], %s486
          %s489 = sshll.u32 [#allocation2], 4
          %s490 = int_to_ptr.vmem [resolvable:$true] %s489
          %492 = dma.hbm_to_vmem [thread:$0]  %s2, 16, %s490, [#allocation3]
        $region20: #{cnn_classifier_forward.1} parent=11 // pred_fallthru
          _
        // Predicated region
        $region21: #{cnn_classifier_forward.1} parent=11 // pred_check
          %p493 = pneg %p123
        $region22: #{cnn_classifier_forward.1} parent=11 // pred_check_branch
          %495 = sbr.rel (%p493) target = $region24
        $region23: #{cnn_classifier_forward.1} parent=11 // pred_region
          _
        $region24: #{cnn_classifier_forward.1} parent=11 // pred_fallthru
          _
        // Predicated region
        $region25: #{cnn_classifier_forward.1} parent=11 // pred_check
          %p496 = pneg %p144
        $region26: #{cnn_classifier_forward.1} parent=11 // pred_check_branch
          %498 = sbr.rel (%p496) target = $region28
        $region27: #{cnn_classifier_forward.1} parent=11 // pred_region
          %s500 = ssub.s32 16, 16
          %501 = vsyncadd [#allocation6], %s500
          %s503 = sshll.u32 [#allocation5], 4
          %s504 = int_to_ptr.vmem [resolvable:$true] %s503
          %506 = dma.hbm_to_vmem [thread:$0]  %s4, 16, %s504, [#allocation6]
        $region28: #{cnn_classifier_forward.1} parent=11 // pred_fallthru
          _
        // Predicated region
        $region29: #{cnn_classifier_forward.1} parent=11 // pred_check
          %p507 = pneg %p165
        $region30: #{cnn_classifier_forward.1} parent=11 // pred_check_branch
          %509 = sbr.rel (%p507) target = $region32
        $region31: #{cnn_classifier_forward.1} parent=11 // pred_region
          %s511 = ssub.s32 256, 256
          %512 = vsyncadd [#allocation6], %s511
          %s513 = sshll.u32 [#allocation7], 4
          %s514 = int_to_ptr.vmem [resolvable:$true] %s513
          %519 = dma.hbm_to_vmem [thread:$0]  %s5, 256, %s514, [#allocation6], 128, 128, 8
        $region32: #{cnn_classifier_forward.1} parent=11 // pred_fallthru
          _
        // Predicated region
        $region33: #{cnn_classifier_forward.1} parent=11 // pred_check
          %p520 = pneg %p186
        $region34: #{cnn_classifier_forward.1} parent=11 // pred_check_branch
          %522 = sbr.rel (%p520) target = $region36
        $region35: #{cnn_classifier_forward.1} parent=11 // pred_region
          %s524 = ssub.s32 256, 256
          %525 = vsyncadd [#allocation9], %s524
          %s526 = sshll.u32 [#allocation8], 4
          %s527 = int_to_ptr.vmem [resolvable:$true] %s526
          %532 = dma.hbm_to_vmem [thread:$0]  %s6, 256, %s527, [#allocation9], 128, 128, 8
        $region36: #{cnn_classifier_forward.1} parent=11 // pred_fallthru
          _
        // Predicated region
        $region37: #{cnn_classifier_forward.1} parent=11 // pred_check
          %p533 = pneg %p207
        $region38: #{cnn_classifier_forward.1} parent=11 // pred_check_branch
          %535 = sbr.rel (%p533) target = $region40
        $region39: #{cnn_classifier_forward.1} parent=11 // pred_region
          %s537 = ssub.s32 2304, 2304
          %538 = vsyncadd [#allocation9], %s537
          %s539 = sshll.u32 [#allocation10], 4
          %s540 = int_to_ptr.vmem [resolvable:$true] %s539
          %545 = dma.hbm_to_vmem [thread:$0]  %s7, 2304, %s540, [#allocation9], 128, 128, 8
        $region40: #{cnn_classifier_forward.1} parent=11 // pred_fallthru
          _
        // Predicated region
        $region41: #{cnn_classifier_forward.1} parent=11 // pred_check
          %p546 = pneg %p228
        $region42: #{cnn_classifier_forward.1} parent=11 // pred_check_branch
          %548 = sbr.rel (%p546) target = $region44
        $region43: #{cnn_classifier_forward.1} parent=11 // pred_region
          %s550 = ssub.s32 2304, 2304
          %551 = vsyncadd [#allocation12], %s550
          %s552 = sshll.u32 [#allocation11], 4
          %s553 = int_to_ptr.vmem [resolvable:$true] %s552
          %558 = dma.hbm_to_vmem [thread:$0]  %s8, 2304, %s553, [#allocation12], 128, 128, 8
        $region44: #{cnn_classifier_forward.1} parent=11 // pred_fallthru
          _
        // Predicated region
        $region45: #{cnn_classifier_forward.1} parent=11 // pred_check
          %p559 = pneg %p249
        $region46: #{cnn_classifier_forward.1} parent=11 // pred_check_branch
          %561 = sbr.rel (%p559) target = $region48
        $region47: #{cnn_classifier_forward.1} parent=11 // pred_region
          _
        $region48: #{cnn_classifier_forward.1} parent=11 // pred_fallthru
          _
        // Predicated region
        $region49: #{cnn_classifier_forward.1} parent=11 // pred_check
          %p562 = pneg %p270
        $region50: #{cnn_classifier_forward.1} parent=11 // pred_check_branch
          %564 = sbr.rel (%p562) target = $region52
        $region51: #{cnn_classifier_forward.1} parent=11 // pred_region
          %s566 = ssub.s32 64, 64
          %567 = vsyncadd [#allocation12], %s566
          %s569 = sshll.u32 [#allocation13], 4
          %s570 = int_to_ptr.vmem [resolvable:$true] %s569
          %572 = dma.hbm_to_vmem [thread:$0]  %s10, 64, %s570, [#allocation12]
        $region52: #{cnn_classifier_forward.1} parent=11 // pred_fallthru
          _
        // Predicated region
        $region53: #{cnn_classifier_forward.1} parent=11 // pred_check
          %p573 = pneg %p291
        $region54: #{cnn_classifier_forward.1} parent=11 // pred_check_branch
          %575 = sbr.rel (%p573) target = $region56
        $region55: #{cnn_classifier_forward.1} parent=11 // pred_region
          _
        $region56: #{cnn_classifier_forward.1} parent=11 // pred_fallthru
          _
        // Predicated region
        $region57: #{cnn_classifier_forward.1} parent=11 // pred_check
          %p576 = pneg %p312
        $region58: #{cnn_classifier_forward.1} parent=11 // pred_check_branch
          %578 = sbr.rel (%p576) target = $region60
        $region59: #{cnn_classifier_forward.1} parent=11 // pred_region
          _
        $region60: #{cnn_classifier_forward.1} parent=11 // pred_fallthru
          _
        // Predicated region
        $region61: #{cnn_classifier_forward.1} parent=11 // pred_check
          %p579 = pneg %p333
        $region62: #{cnn_classifier_forward.1} parent=11 // pred_check_branch
          %581 = sbr.rel (%p579) target = $region64
        $region63: #{cnn_classifier_forward.1} parent=11 // pred_region
          _
        $region64: #{cnn_classifier_forward.1} parent=11 // pred_fallthru
          _
        // Predicated region
        $region65: #{cnn_classifier_forward.1} parent=11 // pred_check
          %p582 = pneg %p354
        $region66: #{cnn_classifier_forward.1} parent=11 // pred_check_branch
          %584 = sbr.rel (%p582) target = $region68
        $region67: #{cnn_classifier_forward.1} parent=11 // pred_region
          %s586 = ssub.s32 16, 16
          %587 = vsyncadd [#allocation15], %s586
          %s589 = sshll.u32 [#allocation14], 4
          %s590 = int_to_ptr.vmem [resolvable:$true] %s589
          %592 = dma.hbm_to_vmem [thread:$0]  %s14, 16, %s590, [#allocation15]
        $region68: #{cnn_classifier_forward.1} parent=11 // pred_fallthru
          _
        // Predicated region
        $region69: #{cnn_classifier_forward.1} parent=11 // pred_check
          %p593 = pneg %p375
        $region70: #{cnn_classifier_forward.1} parent=11 // pred_check_branch
          %595 = sbr.rel (%p593) target = $region72
        $region71: #{cnn_classifier_forward.1} parent=11 // pred_region
          _
        $region72: #{cnn_classifier_forward.1} parent=11 // pred_fallthru
          _
        // Predicated region
        $region73: #{cnn_classifier_forward.1} parent=11 // pred_check
          %p596 = pneg %p396
        $region74: #{cnn_classifier_forward.1} parent=11 // pred_check_branch
          %598 = sbr.rel (%p596) target = $region76
        $region75: #{cnn_classifier_forward.1} parent=11 // pred_region
          %s600 = ssub.s32 16, 16
          %601 = vsyncadd [#allocation15], %s600
          %s603 = sshll.u32 [#allocation16], 4
          %s604 = int_to_ptr.vmem [resolvable:$true] %s603
          %606 = dma.hbm_to_vmem [thread:$0]  %s16, 16, %s604, [#allocation15]
        $region76: #{cnn_classifier_forward.1} parent=11 // pred_fallthru
          _
        // Predicated region
        $region77: #{cnn_classifier_forward.1} parent=11 // pred_check
          %p607 = pneg %p417
        $region78: #{cnn_classifier_forward.1} parent=11 // pred_check_branch
          %609 = sbr.rel (%p607) target = $region80
        $region79: #{cnn_classifier_forward.1} parent=11 // pred_region
          _
        $region80: #{cnn_classifier_forward.1} parent=11 // pred_fallthru
          _
        // Predicated region
        $region81: #{cnn_classifier_forward.1} parent=11 // pred_check
          %p610 = pneg %p438
        $region82: #{cnn_classifier_forward.1} parent=11 // pred_check_branch
          %612 = sbr.rel (%p610) target = $region84
        $region83: #{cnn_classifier_forward.1} parent=11 // pred_region
          %s614 = ssub.s32 16, 16
          %615 = vsyncadd [#allocation18], %s614
          %s617 = sshll.u32 [#allocation17], 4
          %s618 = int_to_ptr.vmem [resolvable:$true] %s617
          %620 = dma.hbm_to_vmem [thread:$0]  %s18, 16, %s618, [#allocation18]
        $region84: #{cnn_classifier_forward.1} parent=11 // pred_fallthru
          _
      $region12: #{cnn_classifier_forward.1} parent=5 // pred_fallthru
        _
      %p621 = scmp.lt.s32.totalorder %s34, 2
      // Predicated region
      $region85: #{cnn_classifier_forward.1} parent=5 // pred_check
        %p622 = pneg %p621
      $region86: #{cnn_classifier_forward.1} parent=5 // pred_check_branch
        %624 = sbr.rel (%p622) target = $region88
      $region87: #{cnn_classifier_forward.1} parent=5 // pred_region
        // Predicated region
        $region89: #{cnn_classifier_forward.1} parent=87 // pred_check
          %p625 = pneg %p54
        $region90: #{cnn_classifier_forward.1} parent=87 // pred_check_branch
          %627 = sbr.rel (%p625) target = $region92
        $region91: #{cnn_classifier_forward.1} parent=87 // pred_region
          %p628 = scmp.lt.s32.totalorder %s34, 1
          %s629 = scalar_select %p628, %s34, 1
          %s630 = smul.addr %s629, 4
          %s631 = smul.addr %s630, 8
          %s632 = scalar_lea.vmem %s0, %s631
        $region92: #{cnn_classifier_forward.1} parent=87 // pred_fallthru
          _
      $region88: #{cnn_classifier_forward.1} parent=5 // pred_fallthru
        _
      %p633 = scmp.le.s32.totalorder 1, %s34
      %p634 = scmp.lt.s32.totalorder %s34, 3
      %p635 = pnand %p633, %p634
      %p636 = pneg %p635
      // Predicated region
      $region93: #{cnn_classifier_forward.1} parent=5 // pred_check
        _
      $region94: #{cnn_classifier_forward.1} parent=5 // pred_check_branch
        %638 = sbr.rel (%p635) target = $region96
      $region95: #{cnn_classifier_forward.1} parent=5 // pred_region
        %s639 = ssub.s32 %s34, 1
        // Predicated region
        $region97: #{cnn_classifier_forward.1} parent=95 // pred_check
          %p640 = pneg %p102
        $region98: #{cnn_classifier_forward.1} parent=95 // pred_check_branch
          %642 = sbr.rel (%p640) target = $region100
        $region99: #{cnn_classifier_forward.1} parent=95 // pred_region
          %643 = dma.done [#allocation3], 16
        $region100: #{cnn_classifier_forward.1} parent=95 // pred_fallthru
          _
        // Predicated region
        $region101: #{cnn_classifier_forward.1} parent=95 // pred_check
          %p644 = pneg %p144
        $region102: #{cnn_classifier_forward.1} parent=95 // pred_check_branch
          %646 = sbr.rel (%p644) target = $region104
        $region103: #{cnn_classifier_forward.1} parent=95 // pred_region
          %647 = dma.done [#allocation6], 16
        $region104: #{cnn_classifier_forward.1} parent=95 // pred_fallthru
          _
        // Predicated region
        $region105: #{cnn_classifier_forward.1} parent=95 // pred_check
          %p648 = pneg %p165
        $region106: #{cnn_classifier_forward.1} parent=95 // pred_check_branch
          %650 = sbr.rel (%p648) target = $region108
        $region107: #{cnn_classifier_forward.1} parent=95 // pred_region
          %651 = dma.done [#allocation6], 256
        $region108: #{cnn_classifier_forward.1} parent=95 // pred_fallthru
          _
        // Predicated region
        $region109: #{cnn_classifier_forward.1} parent=95 // pred_check
          %p652 = pneg %p186
        $region110: #{cnn_classifier_forward.1} parent=95 // pred_check_branch
          %654 = sbr.rel (%p652) target = $region112
        $region111: #{cnn_classifier_forward.1} parent=95 // pred_region
          %655 = dma.done [#allocation9], 256
        $region112: #{cnn_classifier_forward.1} parent=95 // pred_fallthru
          _
        // Predicated region
        $region113: #{cnn_classifier_forward.1} parent=95 // pred_check
          %p656 = pneg %p207
        $region114: #{cnn_classifier_forward.1} parent=95 // pred_check_branch
          %658 = sbr.rel (%p656) target = $region116
        $region115: #{cnn_classifier_forward.1} parent=95 // pred_region
          %659 = dma.done [#allocation9], 2304
        $region116: #{cnn_classifier_forward.1} parent=95 // pred_fallthru
          _
        // Predicated region
        $region117: #{cnn_classifier_forward.1} parent=95 // pred_check
          %p660 = pneg %p228
        $region118: #{cnn_classifier_forward.1} parent=95 // pred_check_branch
          %662 = sbr.rel (%p660) target = $region120
        $region119: #{cnn_classifier_forward.1} parent=95 // pred_region
          %663 = dma.done [#allocation12], 2304
        $region120: #{cnn_classifier_forward.1} parent=95 // pred_fallthru
          _
        // Predicated region
        $region121: #{cnn_classifier_forward.1} parent=95 // pred_check
          %p664 = pneg %p270
        $region122: #{cnn_classifier_forward.1} parent=95 // pred_check_branch
          %666 = sbr.rel (%p664) target = $region124
        $region123: #{cnn_classifier_forward.1} parent=95 // pred_region
          %667 = dma.done [#allocation12], 64
        $region124: #{cnn_classifier_forward.1} parent=95 // pred_fallthru
          _
        // Predicated region
        $region125: #{cnn_classifier_forward.1} parent=95 // pred_check
          %p668 = pneg %p354
        $region126: #{cnn_classifier_forward.1} parent=95 // pred_check_branch
          %670 = sbr.rel (%p668) target = $region128
        $region127: #{cnn_classifier_forward.1} parent=95 // pred_region
          %671 = dma.done [#allocation15], 16
        $region128: #{cnn_classifier_forward.1} parent=95 // pred_fallthru
          _
        // Predicated region
        $region129: #{cnn_classifier_forward.1} parent=95 // pred_check
          %p672 = pneg %p396
        $region130: #{cnn_classifier_forward.1} parent=95 // pred_check_branch
          %674 = sbr.rel (%p672) target = $region132
        $region131: #{cnn_classifier_forward.1} parent=95 // pred_region
          %675 = dma.done [#allocation15], 16
        $region132: #{cnn_classifier_forward.1} parent=95 // pred_fallthru
          _
        // Predicated region
        $region133: #{cnn_classifier_forward.1} parent=95 // pred_check
          %p676 = pneg %p438
        $region134: #{cnn_classifier_forward.1} parent=95 // pred_check_branch
          %678 = sbr.rel (%p676) target = $region136
        $region135: #{cnn_classifier_forward.1} parent=95 // pred_region
          %679 = dma.done [#allocation18], 16
        $region136: #{cnn_classifier_forward.1} parent=95 // pred_fallthru
          _
        %p680 = scmp.lt.s32.totalorder %s39, 1
        %s681 = scalar_select %p680, %s39, 1
        %s682 = smul.addr %s681, 4
        %s683 = smul.addr %s682, 8
        %s684 = scalar_lea.vmem %s0, %s683
        %p685 = pneg %p60
        %p686 = pneg %p57
        %p687 = pneg %p81
        %p688 = pneg %p78
        %p689 = pneg %p102
        %p690 = pneg %p99
        %p691 = pneg %p123
        %p692 = pneg %p120
        %p693 = pneg %p144
        %p694 = pneg %p141
        %p695 = pneg %p165
        %p696 = pneg %p162
        %p697 = pneg %p186
        %p698 = pneg %p183
        %p699 = pneg %p207
        %p700 = pneg %p204
        %p701 = pneg %p228
        %p702 = pneg %p225
        %p703 = pneg %p249
        %p704 = pneg %p246
        %p705 = pneg %p270
        %p706 = pneg %p267
        %p707 = pneg %p291
        %p708 = pneg %p288
        %p709 = pneg %p312
        %p710 = pneg %p309
        %p711 = pneg %p333
        %p712 = pneg %p330
        %p713 = pneg %p354
        %p714 = pneg %p351
        %p715 = pneg %p375
        %p716 = pneg %p372
        %p717 = pneg %p396
        %p718 = pneg %p393
        %p719 = pneg %p417
        %p720 = pneg %p414
        %p721 = pneg %p438
        %p722 = pneg %p435
        %p723 = pneg %p464
        %p724 = pneg %p461
        %s725 = sand.u32 %s451, 1
        %s726 = scalar_lea.sflag [#allocation4], %s725
        %s727 = sand.u32 %s451, 1
        %s728 = scalar_lea.vmem [#allocation19], %s727
        %p729 = scmp.lt.s32.totalorder %s39, 1
        %s730 = scalar_select %p729, %s39, 1
        %s731 = smul.addr %s730, 4
        %s732 = smul.addr %s731, 8
        %s733 = scalar_lea.vmem %s0, %s732
        %v734 = vld [vmem:[%s733] sm:$0xff]
        %v735 = vld [vmem:[%s733 + $0x8] sm:$0xff]
        %v736 = vld [vmem:[%s733 + $0x10] sm:$0xff]
        %v737 = vld [vmem:[%s733 + $0x18] sm:$0xf]
        %v738 = vld [vmem:[%s1] sm:$0xff]
        %v739 = vld [vmem:[%s1 + $0x8] sm:$0xff]
        %v740 = vld [vmem:[%s1 + $0x10] sm:$0xff]
        %v741 = vld [vmem:[%s1 + $0x18] sm:$0xff]
        %v742 = vld [vmem:[%s1 + $0x20] sm:$0xff]
        %v743 = vld [vmem:[%s1 + $0x28] sm:$0xff]
        %v744 = vld [vmem:[%s1 + $0x30] sm:$0xf]
        %v745 = vld [vmem:[%s1 + $0x38] sm:$0xf]
        %s746 = scalar_lea.vmem %s1, 64
        %v747 = vld [vmem:[%s746] sm:$0xff]
        %v748 = vld [vmem:[%s746 + $0x8] sm:$0xff]
        %v749 = vld [vmem:[%s746 + $0x10] sm:$0xff]
        %v750 = vld [vmem:[%s746 + $0x18] sm:$0xff]
        %v751 = vld [vmem:[%s746 + $0x20] sm:$0xff]
        %v752 = vld [vmem:[%s746 + $0x28] sm:$0xff]
        %v753 = vld [vmem:[%s746 + $0x30] sm:$0xf]
        %v754 = vld [vmem:[%s746 + $0x38] sm:$0xf]
        %vm759 = vcmask 1046528
        %v760 = vrot.slane %v734, 1
        %v761 = vrot.slane %v735, 1
        %v762 = vsel %vm759, %v760, %v761
        %v763 = vrot.slane %v736, 1
        %v764 = vsel %vm759, %v761, %v763
        %v765 = vrot.slane %v737, 1
        %v766 = vsel %vm759, %v763, %v765
        %vm767 = vcmask 228352
        %v768 = vsel %vm767, %v762, 0
        %v770 = vsel %vm767, %v764, 0
        %v772 = vsel %vm767, %v766, 0
        %vm774 = vcmask 1043456
        %v776 = vsel %vm774, %v753, 0
        %v779 = vsel %vm774, %v754, 0
        %781 = vmatprep.subr.mxu0 %v748
        %782 = vmatpush1.msra.mxu0 %v747
        %783 = vmatprep.subr.mxu0 %v750
        %784 = vmatpush1.msra.mxu0 %v749
        %785 = vmatprep.subr.mxu0 %v752
        %786 = vmatpush1.msra.mxu0 %v751
        %787 = vmatprep.subr.mxu0 %v779
        %788 = vmatpush1.msra.mxu0 %v776
        %789 = vmatprep.subr.mxu0 0.0
        %790 = vmatpush1.msra.mxu0 0.0
        %791 = vmatprep.subr.mxu0 0.0
        %792 = vmatpush1.msra.mxu0 0.0
        %793 = vmatprep.subr.mxu0 0.0
        %794 = vmatpush1.msra.mxu0 0.0
        %795 = vmatprep.subr.mxu0 0.0
        %796 = vmatpush1.msra.mxu0 0.0
        %797 = vmatprep.subr.mxu0 0.0
        %798 = vmatpush1.msra.mxu0 0.0
        %799 = vmatprep.subr.mxu0 0.0
        %800 = vmatpush1.msra.mxu0 0.0
        %801 = vmatprep.subr.mxu0 0.0
        %802 = vmatpush1.msra.mxu0 0.0
        %803 = vmatprep.subr.mxu0 0.0
        %804 = vmatpush1.msra.mxu0 0.0
        %805 = vmatprep.subr.mxu0 0.0
        %806 = vmatpush1.msra.mxu0 0.0
        %807 = vmatprep.subr.mxu0 0.0
        %808 = vmatpush1.msra.mxu0 0.0
        %809 = vmatprep.subr.mxu0 0.0
        %810 = vmatpush1.msra.mxu0 0.0
        %811 = vmatprep.subr.mxu0 0.0
        %812 = vmatpush1.msra.mxu0 0.0
        %813 = vmatprep.subr.mxu0 0.0
        %814 = vmatpush1.msra.mxu0 0.0
        %815 = vmatprep.subr.mxu0 0.0
        %816 = vmatpush1.msra.mxu0 0.0
        %817 = vmatprep.subr.mxu0 0.0
        %818 = vmatpush1.msra.mxu0 0.0
        %819 = vmatprep.subr.mxu0 0.0
        %820 = vmatpush1.msra.mxu0 0.0
        %821 = vmatprep.subr.mxu0 0.0
        %822 = vmatpush1.msra.mxu0 0.0
        %823 = vmatprep.subr.mxu0 0.0
        %824 = vmatpush1.msra.mxu0 0.0
        %825 = vmatprep.subr.mxu0 0.0
        %826 = vmatpush1.msra.mxu0 0.0
        %827 = vmatprep.subr.mxu0 0.0
        %828 = vmatpush1.msra.mxu0 0.0
        %829 = vmatprep.subr.mxu0 0.0
        %830 = vmatpush1.msra.mxu0 0.0
        %831 = vmatprep.subr.mxu0 0.0
        %832 = vmatpush1.msra.mxu0 0.0
        %833 = vmatprep.subr.mxu0 0.0
        %834 = vmatpush1.msra.mxu0 0.0
        %835 = vmatprep.subr.mxu0 0.0
        %836 = vmatpush1.msra.mxu0 0.0
        %837 = vmatprep.subr.mxu0 0.0
        %838 = vmatpush1.msra.mxu0 0.0
        %839 = vmatprep.subr.mxu0 0.0
        %840 = vmatpush1.msra.mxu0 0.0
        %841 = vmatprep.subr.mxu0 0.0
        %842 = vmatpush1.msra.mxu0 0.0
        %843 = vmatprep.subr.mxu0 0.0
        %844 = vmatpush1.msra.mxu0 0.0
        %845 = vmatprep.mubr.f32.mxu0 0.0
        %846 = vmatmul.mubr.f32.gmra.mrb[0].mxu0 %v768
        %v847 = vpop.f32.mrb[0].mxu0
        %v848 = vadd.f32 0.0, %v847
        %v849 = vpop.f32.mrb[0].mxu0
        %v850 = vadd.f32 0.0, %v849
        %851 = vmatprep.mubr.f32.mxu0 0.0
        %852 = vmatmul.mubr.f32.gmra.mrb[0].mxu0 %v770
        %v853 = vpop.f32.mrb[0].mxu0
        %v854 = vadd.f32 0.0, %v853
        %v855 = vpop.f32.mrb[0].mxu0
        %v856 = vadd.f32 0.0, %v855
        %857 = vmatprep.mubr.f32.mxu0 0.0
        %858 = vmatmul.mubr.f32.gmra.mrb[0].mxu0 %v772
        %v859 = vpop.f32.mrb[0].mxu0
        %v860 = vadd.f32 0.0, %v859
        %v861 = vpop.f32.mrb[0].mxu0
        %v862 = vadd.f32 0.0, %v861
        %863 = vdwg.mxu0
        %v864 = vsel %vm767, %v734, 0
        %v866 = vsel %vm767, %v735, 0
        %v868 = vsel %vm767, %v736, 0
        %v871 = vsel %vm774, %v744, 0
        %v874 = vsel %vm774, %v745, 0
        %876 = vmatprep.subr.mxu0 %v739
        %877 = vmatpush1.msra.mxu0 %v738
        %878 = vmatprep.subr.mxu0 %v741
        %879 = vmatpush1.msra.mxu0 %v740
        %880 = vmatprep.subr.mxu0 %v743
        %881 = vmatpush1.msra.mxu0 %v742
        %882 = vmatprep.subr.mxu0 %v874
        %883 = vmatpush1.msra.mxu0 %v871
        %884 = vmatprep.subr.mxu0 0.0
        %885 = vmatpush1.msra.mxu0 0.0
        %886 = vmatprep.subr.mxu0 0.0
        %887 = vmatpush1.msra.mxu0 0.0
        %888 = vmatprep.subr.mxu0 0.0
        %889 = vmatpush1.msra.mxu0 0.0
        %890 = vmatprep.subr.mxu0 0.0
        %891 = vmatpush1.msra.mxu0 0.0
        %892 = vmatprep.subr.mxu0 0.0
        %893 = vmatpush1.msra.mxu0 0.0
        %894 = vmatprep.subr.mxu0 0.0
        %895 = vmatpush1.msra.mxu0 0.0
        %896 = vmatprep.subr.mxu0 0.0
        %897 = vmatpush1.msra.mxu0 0.0
        %898 = vmatprep.subr.mxu0 0.0
        %899 = vmatpush1.msra.mxu0 0.0
        %900 = vmatprep.subr.mxu0 0.0
        %901 = vmatpush1.msra.mxu0 0.0
        %902 = vmatprep.subr.mxu0 0.0
        %903 = vmatpush1.msra.mxu0 0.0
        %904 = vmatprep.subr.mxu0 0.0
        %905 = vmatpush1.msra.mxu0 0.0
        %906 = vmatprep.subr.mxu0 0.0
        %907 = vmatpush1.msra.mxu0 0.0
        %908 = vmatprep.subr.mxu0 0.0
        %909 = vmatpush1.msra.mxu0 0.0
        %910 = vmatprep.subr.mxu0 0.0
        %911 = vmatpush1.msra.mxu0 0.0
        %912 = vmatprep.subr.mxu0 0.0
        %913 = vmatpush1.msra.mxu0 0.0
        %914 = vmatprep.subr.mxu0 0.0
        %915 = vmatpush1.msra.mxu0 0.0
        %916 = vmatprep.subr.mxu0 0.0
        %917 = vmatpush1.msra.mxu0 0.0
        %918 = vmatprep.subr.mxu0 0.0
        %919 = vmatpush1.msra.mxu0 0.0
        %920 = vmatprep.subr.mxu0 0.0
        %921 = vmatpush1.msra.mxu0 0.0
        %922 = vmatprep.subr.mxu0 0.0
        %923 = vmatpush1.msra.mxu0 0.0
        %924 = vmatprep.subr.mxu0 0.0
        %925 = vmatpush1.msra.mxu0 0.0
        %926 = vmatprep.subr.mxu0 0.0
        %927 = vmatpush1.msra.mxu0 0.0
        %928 = vmatprep.subr.mxu0 0.0
        %929 = vmatpush1.msra.mxu0 0.0
        %930 = vmatprep.subr.mxu0 0.0
        %931 = vmatpush1.msra.mxu0 0.0
        %932 = vmatprep.subr.mxu0 0.0
        %933 = vmatpush1.msra.mxu0 0.0
        %934 = vmatprep.subr.mxu0 0.0
        %935 = vmatpush1.msra.mxu0 0.0
        %936 = vmatprep.subr.mxu0 0.0
        %937 = vmatpush1.msra.mxu0 0.0
        %938 = vmatprep.subr.mxu0 0.0
        %939 = vmatpush1.msra.mxu0 0.0
        %940 = vmatprep.mubr.f32.mxu0 0.0
        %941 = vmatmul.mubr.f32.gmra.mrb[0].mxu0 %v864
        %v942 = vpop.f32.mrb[0].mxu0
        %v943 = vadd.f32 %v848, %v942
        %v944 = vpop.f32.mrb[0].mxu0
        %v945 = vadd.f32 %v850, %v944
        %946 = vmatprep.mubr.f32.mxu0 0.0
        %947 = vmatmul.mubr.f32.gmra.mrb[0].mxu0 %v866
        %v948 = vpop.f32.mrb[0].mxu0
        %v949 = vadd.f32 %v854, %v948
        %v950 = vpop.f32.mrb[0].mxu0
        %v951 = vadd.f32 %v856, %v950
        %952 = vmatprep.mubr.f32.mxu0 0.0
        %953 = vmatmul.mubr.f32.gmra.mrb[0].mxu0 %v868
        %v954 = vpop.f32.mrb[0].mxu0
        %v955 = vadd.f32 %v860, %v954
        %v956 = vpop.f32.mrb[0].mxu0
        %v957 = vadd.f32 %v862, %v956
        %958 = vdwg.mxu0
        %s959 = scalar_lea.vmem %s1, 128
        %v960 = vld [vmem:[%s959] sm:$0xff]
        %v961 = vld [vmem:[%s959 + $0x8] sm:$0xff]
        %v962 = vld [vmem:[%s959 + $0x10] sm:$0xff]
        %v963 = vld [vmem:[%s959 + $0x18] sm:$0xff]
        %v964 = vld [vmem:[%s959 + $0x20] sm:$0xff]
        %v965 = vld [vmem:[%s959 + $0x28] sm:$0xff]
        %v966 = vld [vmem:[%s959 + $0x30] sm:$0xf]
        %v967 = vld [vmem:[%s959 + $0x38] sm:$0xf]
        %vm968 = vcmask 1045504
        %v969 = vrot.slane %v734, 2
        %v970 = vrot.slane %v735, 2
        %v971 = vsel %vm968, %v969, %v970
        %v972 = vrot.slane %v736, 2
        %v973 = vsel %vm968, %v970, %v972
        %v974 = vrot.slane %v737, 2
        %v975 = vsel %vm968, %v972, %v974
        %v976 = vsel %vm767, %v971, 0
        %v978 = vsel %vm767, %v973, 0
        %v980 = vsel %vm767, %v975, 0
        %v983 = vsel %vm774, %v966, 0
        %v986 = vsel %vm774, %v967, 0
        %988 = vmatprep.subr.mxu0 %v961
        %989 = vmatpush1.msra.mxu0 %v960
        %990 = vmatprep.subr.mxu0 %v963
        %991 = vmatpush1.msra.mxu0 %v962
        %992 = vmatprep.subr.mxu0 %v965
        %993 = vmatpush1.msra.mxu0 %v964
        %994 = vmatprep.subr.mxu0 %v986
        %995 = vmatpush1.msra.mxu0 %v983
        %996 = vmatprep.subr.mxu0 0.0
        %997 = vmatpush1.msra.mxu0 0.0
        %998 = vmatprep.subr.mxu0 0.0
        %999 = vmatpush1.msra.mxu0 0.0
        %1000 = vmatprep.subr.mxu0 0.0
        %1001 = vmatpush1.msra.mxu0 0.0
        %1002 = vmatprep.subr.mxu0 0.0
        %1003 = vmatpush1.msra.mxu0 0.0
        %1004 = vmatprep.subr.mxu0 0.0
        %1005 = vmatpush1.msra.mxu0 0.0
        %1006 = vmatprep.subr.mxu0 0.0
        %1007 = vmatpush1.msra.mxu0 0.0
        %1008 = vmatprep.subr.mxu0 0.0
        %1009 = vmatpush1.msra.mxu0 0.0
        %1010 = vmatprep.subr.mxu0 0.0
        %1011 = vmatpush1.msra.mxu0 0.0
        %1012 = vmatprep.subr.mxu0 0.0
        %1013 = vmatpush1.msra.mxu0 0.0
        %1014 = vmatprep.subr.mxu0 0.0
        %1015 = vmatpush1.msra.mxu0 0.0
        %1016 = vmatprep.subr.mxu0 0.0
        %1017 = vmatpush1.msra.mxu0 0.0
        %1018 = vmatprep.subr.mxu0 0.0
        %1019 = vmatpush1.msra.mxu0 0.0
        %1020 = vmatprep.subr.mxu0 0.0
        %1021 = vmatpush1.msra.mxu0 0.0
        %1022 = vmatprep.subr.mxu0 0.0
        %1023 = vmatpush1.msra.mxu0 0.0
        %1024 = vmatprep.subr.mxu0 0.0
        %1025 = vmatpush1.msra.mxu0 0.0
        %1026 = vmatprep.subr.mxu0 0.0
        %1027 = vmatpush1.msra.mxu0 0.0
        %1028 = vmatprep.subr.mxu0 0.0
        %1029 = vmatpush1.msra.mxu0 0.0
        %1030 = vmatprep.subr.mxu0 0.0
        %1031 = vmatpush1.msra.mxu0 0.0
        %1032 = vmatprep.subr.mxu0 0.0
        %1033 = vmatpush1.msra.mxu0 0.0
        %1034 = vmatprep.subr.mxu0 0.0
        %1035 = vmatpush1.msra.mxu0 0.0
        %1036 = vmatprep.subr.mxu0 0.0
        %1037 = vmatpush1.msra.mxu0 0.0
        %1038 = vmatprep.subr.mxu0 0.0
        %1039 = vmatpush1.msra.mxu0 0.0
        %1040 = vmatprep.subr.mxu0 0.0
        %1041 = vmatpush1.msra.mxu0 0.0
        %1042 = vmatprep.subr.mxu0 0.0
        %1043 = vmatpush1.msra.mxu0 0.0
        %1044 = vmatprep.subr.mxu0 0.0
        %1045 = vmatpush1.msra.mxu0 0.0
        %1046 = vmatprep.subr.mxu0 0.0
        %1047 = vmatpush1.msra.mxu0 0.0
        %1048 = vmatprep.subr.mxu0 0.0
        %1049 = vmatpush1.msra.mxu0 0.0
        %1050 = vmatprep.subr.mxu0 0.0
        %1051 = vmatpush1.msra.mxu0 0.0
        %1052 = vmatprep.mubr.f32.mxu0 0.0
        %1053 = vmatmul.mubr.f32.gmra.mrb[0].mxu0 %v976
        %v1054 = vpop.f32.mrb[0].mxu0
        %v1055 = vadd.f32 0.0, %v1054
        %v1056 = vpop.f32.mrb[0].mxu0
        %v1057 = vadd.f32 0.0, %v1056
        %1058 = vmatprep.mubr.f32.mxu0 0.0
        %1059 = vmatmul.mubr.f32.gmra.mrb[0].mxu0 %v978
        %v1060 = vpop.f32.mrb[0].mxu0
        %v1061 = vadd.f32 0.0, %v1060
        %v1062 = vpop.f32.mrb[0].mxu0
        %v1063 = vadd.f32 0.0, %v1062
        %1064 = vmatprep.mubr.f32.mxu0 0.0
        %1065 = vmatmul.mubr.f32.gmra.mrb[0].mxu0 %v980
        %v1066 = vpop.f32.mrb[0].mxu0
        %v1067 = vadd.f32 0.0, %v1066
        %v1068 = vpop.f32.mrb[0].mxu0
        %v1069 = vadd.f32 0.0, %v1068
        %1070 = vdwg.mxu0
        %v1071 = vadd.f32 %v943, %v1055
        %v1072 = vadd.f32 %v945, %v1057
        %v1073 = vadd.f32 %v949, %v1061
        %v1074 = vadd.f32 %v951, %v1063
        %v1075 = vadd.f32 %v955, %v1067
        %v1076 = vadd.f32 %v957, %v1069
        %s1077 = scalar_lea.vmem %s1, 192
        %v1078 = vld [vmem:[%s1077] sm:$0xff]
        %v1079 = vld [vmem:[%s1077 + $0x8] sm:$0xff]
        %v1080 = vld [vmem:[%s1077 + $0x10] sm:$0xff]
        %v1081 = vld [vmem:[%s1077 + $0x18] sm:$0xff]
        %v1082 = vld [vmem:[%s1077 + $0x20] sm:$0xff]
        %v1083 = vld [vmem:[%s1077 + $0x28] sm:$0xff]
        %v1084 = vld [vmem:[%s1077 + $0x30] sm:$0xf]
        %v1085 = vld [vmem:[%s1077 + $0x38] sm:$0xf]
        %vm1086 = vcmask 1044480
        %v1087 = vrot.slane %v734, 3
        %v1088 = vrot.slane %v735, 3
        %v1089 = vsel %vm1086, %v1087, %v1088
        %v1090 = vrot.slane %v736, 3
        %v1091 = vsel %vm1086, %v1088, %v1090
        %v1092 = vrot.slane %v737, 3
        %v1093 = vsel %vm1086, %v1090, %v1092
        %v1094 = vsel %vm767, %v1089, 0
        %v1096 = vsel %vm767, %v1091, 0
        %v1098 = vsel %vm767, %v1093, 0
        %v1101 = vsel %vm774, %v1084, 0
        %v1104 = vsel %vm774, %v1085, 0
        %1106 = vmatprep.subr.mxu0 %v1079
        %1107 = vmatpush1.msra.mxu0 %v1078
        %1108 = vmatprep.subr.mxu0 %v1081
        %1109 = vmatpush1.msra.mxu0 %v1080
        %1110 = vmatprep.subr.mxu0 %v1083
        %1111 = vmatpush1.msra.mxu0 %v1082
        %1112 = vmatprep.subr.mxu0 %v1104
        %1113 = vmatpush1.msra.mxu0 %v1101
        %1114 = vmatprep.subr.mxu0 0.0
        %1115 = vmatpush1.msra.mxu0 0.0
        %1116 = vmatprep.subr.mxu0 0.0
        %1117 = vmatpush1.msra.mxu0 0.0
        %1118 = vmatprep.subr.mxu0 0.0
        %1119 = vmatpush1.msra.mxu0 0.0
        %1120 = vmatprep.subr.mxu0 0.0
        %1121 = vmatpush1.msra.mxu0 0.0
        %1122 = vmatprep.subr.mxu0 0.0
        %1123 = vmatpush1.msra.mxu0 0.0
        %1124 = vmatprep.subr.mxu0 0.0
        %1125 = vmatpush1.msra.mxu0 0.0
        %1126 = vmatprep.subr.mxu0 0.0
        %1127 = vmatpush1.msra.mxu0 0.0
        %1128 = vmatprep.subr.mxu0 0.0
        %1129 = vmatpush1.msra.mxu0 0.0
        %1130 = vmatprep.subr.mxu0 0.0
        %1131 = vmatpush1.msra.mxu0 0.0
        %1132 = vmatprep.subr.mxu0 0.0
        %1133 = vmatpush1.msra.mxu0 0.0
        %1134 = vmatprep.subr.mxu0 0.0
        %1135 = vmatpush1.msra.mxu0 0.0
        %1136 = vmatprep.subr.mxu0 0.0
        %1137 = vmatpush1.msra.mxu0 0.0
        %1138 = vmatprep.subr.mxu0 0.0
        %1139 = vmatpush1.msra.mxu0 0.0
        %1140 = vmatprep.subr.mxu0 0.0
        %1141 = vmatpush1.msra.mxu0 0.0
        %1142 = vmatprep.subr.mxu0 0.0
        %1143 = vmatpush1.msra.mxu0 0.0
        %1144 = vmatprep.subr.mxu0 0.0
        %1145 = vmatpush1.msra.mxu0 0.0
        %1146 = vmatprep.subr.mxu0 0.0
        %1147 = vmatpush1.msra.mxu0 0.0
        %1148 = vmatprep.subr.mxu0 0.0
        %1149 = vmatpush1.msra.mxu0 0.0
        %1150 = vmatprep.subr.mxu0 0.0
        %1151 = vmatpush1.msra.mxu0 0.0
        %1152 = vmatprep.subr.mxu0 0.0
        %1153 = vmatpush1.msra.mxu0 0.0
        %1154 = vmatprep.subr.mxu0 0.0
        %1155 = vmatpush1.msra.mxu0 0.0
        %1156 = vmatprep.subr.mxu0 0.0
        %1157 = vmatpush1.msra.mxu0 0.0
        %1158 = vmatprep.subr.mxu0 0.0
        %1159 = vmatpush1.msra.mxu0 0.0
        %1160 = vmatprep.subr.mxu0 0.0
        %1161 = vmatpush1.msra.mxu0 0.0
        %1162 = vmatprep.subr.mxu0 0.0
        %1163 = vmatpush1.msra.mxu0 0.0
        %1164 = vmatprep.subr.mxu0 0.0
        %1165 = vmatpush1.msra.mxu0 0.0
        %1166 = vmatprep.subr.mxu0 0.0
        %1167 = vmatpush1.msra.mxu0 0.0
        %1168 = vmatprep.subr.mxu0 0.0
        %1169 = vmatpush1.msra.mxu0 0.0
        %1170 = vmatprep.mubr.f32.mxu0 0.0
        %1171 = vmatmul.mubr.f32.gmra.mrb[0].mxu0 %v1094
        %v1172 = vpop.f32.mrb[0].mxu0
        %v1173 = vadd.f32 0.0, %v1172
        %v1174 = vpop.f32.mrb[0].mxu0
        %v1175 = vadd.f32 0.0, %v1174
        %1176 = vmatprep.mubr.f32.mxu0 0.0
        %1177 = vmatmul.mubr.f32.gmra.mrb[0].mxu0 %v1096
        %v1178 = vpop.f32.mrb[0].mxu0
        %v1179 = vadd.f32 0.0, %v1178
        %v1180 = vpop.f32.mrb[0].mxu0
        %v1181 = vadd.f32 0.0, %v1180
        %1182 = vmatprep.mubr.f32.mxu0 0.0
        %1183 = vmatmul.mubr.f32.gmra.mrb[0].mxu0 %v1098
        %v1184 = vpop.f32.mrb[0].mxu0
        %v1185 = vadd.f32 0.0, %v1184
        %v1186 = vpop.f32.mrb[0].mxu0
        %v1187 = vadd.f32 0.0, %v1186
        %1188 = vdwg.mxu0
        %v1189 = vadd.f32 %v1071, %v1173
        %v1190 = vadd.f32 %v1072, %v1175
        %v1191 = vadd.f32 %v1073, %v1179
        %v1192 = vadd.f32 %v1074, %v1181
        %v1193 = vadd.f32 %v1075, %v1185
        %v1194 = vadd.f32 %v1076, %v1187
        %s1195 = scalar_lea.vmem %s1, 256
        %v1196 = vld [vmem:[%s1195] sm:$0xff]
        %v1197 = vld [vmem:[%s1195 + $0x8] sm:$0xff]
        %v1198 = vld [vmem:[%s1195 + $0x10] sm:$0xff]
        %v1199 = vld [vmem:[%s1195 + $0x18] sm:$0xff]
        %v1200 = vld [vmem:[%s1195 + $0x20] sm:$0xff]
        %v1201 = vld [vmem:[%s1195 + $0x28] sm:$0xff]
        %v1202 = vld [vmem:[%s1195 + $0x30] sm:$0xf]
        %v1203 = vld [vmem:[%s1195 + $0x38] sm:$0xf]
        %v1204 = vrot.slane %v734, 4
        %v1205 = vrot.slane %v735, 4
        %v1206 = vsel %vm774, %v1204, %v1205
        %v1207 = vrot.slane %v736, 4
        %v1208 = vsel %vm774, %v1205, %v1207
        %v1209 = vrot.slane %v737, 4
        %v1210 = vsel %vm774, %v1207, %v1209
        %v1211 = vsel %vm767, %v1206, 0
        %v1213 = vsel %vm767, %v1208, 0
        %v1215 = vsel %vm767, %v1210, 0
        %v1218 = vsel %vm774, %v1202, 0
        %v1221 = vsel %vm774, %v1203, 0
        %1223 = vmatprep.subr.mxu0 %v1197
        %1224 = vmatpush1.msra.mxu0 %v1196
        %1225 = vmatprep.subr.mxu0 %v1199
        %1226 = vmatpush1.msra.mxu0 %v1198
        %1227 = vmatprep.subr.mxu0 %v1201
        %1228 = vmatpush1.msra.mxu0 %v1200
        %1229 = vmatprep.subr.mxu0 %v1221
        %1230 = vmatpush1.msra.mxu0 %v1218
        %1231 = vmatprep.subr.mxu0 0.0
        %1232 = vmatpush1.msra.mxu0 0.0
        %1233 = vmatprep.subr.mxu0 0.0
        %1234 = vmatpush1.msra.mxu0 0.0
        %1235 = vmatprep.subr.mxu0 0.0
        %1236 = vmatpush1.msra.mxu0 0.0
        %1237 = vmatprep.subr.mxu0 0.0
        %1238 = vmatpush1.msra.mxu0 0.0
        %1239 = vmatprep.subr.mxu0 0.0
        %1240 = vmatpush1.msra.mxu0 0.0
        %1241 = vmatprep.subr.mxu0 0.0
        %1242 = vmatpush1.msra.mxu0 0.0
        %1243 = vmatprep.subr.mxu0 0.0
        %1244 = vmatpush1.msra.mxu0 0.0
        %1245 = vmatprep.subr.mxu0 0.0
        %1246 = vmatpush1.msra.mxu0 0.0
        %1247 = vmatprep.subr.mxu0 0.0
        %1248 = vmatpush1.msra.mxu0 0.0
        %1249 = vmatprep.subr.mxu0 0.0
        %1250 = vmatpush1.msra.mxu0 0.0
        %1251 = vmatprep.subr.mxu0 0.0
        %1252 = vmatpush1.msra.mxu0 0.0
        %1253 = vmatprep.subr.mxu0 0.0
        %1254 = vmatpush1.msra.mxu0 0.0
        %1255 = vmatprep.subr.mxu0 0.0
        %1256 = vmatpush1.msra.mxu0 0.0
        %1257 = vmatprep.subr.mxu0 0.0
        %1258 = vmatpush1.msra.mxu0 0.0
        %1259 = vmatprep.subr.mxu0 0.0
        %1260 = vmatpush1.msra.mxu0 0.0
        %1261 = vmatprep.subr.mxu0 0.0
        %1262 = vmatpush1.msra.mxu0 0.0
        %1263 = vmatprep.subr.mxu0 0.0
        %1264 = vmatpush1.msra.mxu0 0.0
        %1265 = vmatprep.subr.mxu0 0.0
        %1266 = vmatpush1.msra.mxu0 0.0
        %1267 = vmatprep.subr.mxu0 0.0
        %1268 = vmatpush1.msra.mxu0 0.0
        %1269 = vmatprep.subr.mxu0 0.0
        %1270 = vmatpush1.msra.mxu0 0.0
        %1271 = vmatprep.subr.mxu0 0.0
        %1272 = vmatpush1.msra.mxu0 0.0
        %1273 = vmatprep.subr.mxu0 0.0
        %1274 = vmatpush1.msra.mxu0 0.0
        %1275 = vmatprep.subr.mxu0 0.0
        %1276 = vmatpush1.msra.mxu0 0.0
        %1277 = vmatprep.subr.mxu0 0.0
        %1278 = vmatpush1.msra.mxu0 0.0
        %1279 = vmatprep.subr.mxu0 0.0
        %1280 = vmatpush1.msra.mxu0 0.0
        %1281 = vmatprep.subr.mxu0 0.0
        %1282 = vmatpush1.msra.mxu0 0.0
        %1283 = vmatprep.subr.mxu0 0.0
        %1284 = vmatpush1.msra.mxu0 0.0
        %1285 = vmatprep.subr.mxu0 0.0
        %1286 = vmatpush1.msra.mxu0 0.0
        %1287 = vmatprep.mubr.f32.mxu0 0.0
        %1288 = vmatmul.mubr.f32.gmra.mrb[0].mxu0 %v1211
        %v1289 = vpop.f32.mrb[0].mxu0
        %v1290 = vadd.f32 0.0, %v1289
        %v1291 = vpop.f32.mrb[0].mxu0
        %v1292 = vadd.f32 0.0, %v1291
        %1293 = vmatprep.mubr.f32.mxu0 0.0
        %1294 = vmatmul.mubr.f32.gmra.mrb[0].mxu0 %v1213
        %v1295 = vpop.f32.mrb[0].mxu0
        %v1296 = vadd.f32 0.0, %v1295
        %v1297 = vpop.f32.mrb[0].mxu0
        %v1298 = vadd.f32 0.0, %v1297
        %1299 = vmatprep.mubr.f32.mxu0 0.0
        %1300 = vmatmul.mubr.f32.gmra.mrb[0].mxu0 %v1215
        %v1301 = vpop.f32.mrb[0].mxu0
        %v1302 = vadd.f32 0.0, %v1301
        %v1303 = vpop.f32.mrb[0].mxu0
        %v1304 = vadd.f32 0.0, %v1303
        %1305 = vdwg.mxu0
        %v1306 = vadd.f32 %v1189, %v1290
        %v1307 = vadd.f32 %v1190, %v1292
        %v1308 = vadd.f32 %v1191, %v1296
        %v1309 = vadd.f32 %v1192, %v1298
        %v1310 = vadd.f32 %v1193, %v1302
        %v1311 = vadd.f32 %v1194, %v1304
        %v1312 = vld [vmem:[#allocation10] sm:$0xff]
        %v1313 = vld [vmem:[#allocation10 + $0x8] sm:$0xff]
        %v1314 = vld [vmem:[#allocation10 + $0x10] sm:$0xff]
        %v1315 = vld [vmem:[#allocation10 + $0x18] sm:$0xff]
        %v1316 = vld [vmem:[#allocation10 + $0x20] sm:$0xff]
        %v1317 = vld [vmem:[#allocation10 + $0x28] sm:$0xff]
        %v1318 = vld [vmem:[#allocation10 + $0x30] sm:$0xff]
        %v1319 = vld [vmem:[#allocation10 + $0x38] sm:$0xff]
        %v1320 = vld [vmem:[#allocation10 + $0x40] sm:$0xff]
        %v1321 = vld [vmem:[#allocation10 + $0x48] sm:$0xff]
        %v1322 = vld [vmem:[#allocation10 + $0x50] sm:$0xff]
        %v1323 = vld [vmem:[#allocation10 + $0x58] sm:$0xff]
        %v1324 = vld [vmem:[#allocation10 + $0x60] sm:$0xff]
        %v1325 = vld [vmem:[#allocation10 + $0x68] sm:$0xff]
        %v1326 = vld [vmem:[#allocation10 + $0x70] sm:$0xff]
        %v1327 = vld [vmem:[#allocation10 + $0x78] sm:$0xff]
        %v1328 = vld [vmem:[#allocation10 + $0x80] sm:$0xff]
        %v1329 = vld [vmem:[#allocation10 + $0x88] sm:$0xff]
        %vm1330 = vcmask 130048
        %v1332 = vsel %vm1330, %v1307, 0
        %v1335 = vsel %vm1330, %v1309, 0
        %v1338 = vsel %vm1330, %v1311, 0
        %1340 = vmatprep.subr.mxu0 0.0
        %1341 = vmatpush1.msra.mxu0 %v1312
        %1342 = vmatprep.subr.mxu0 0.0
        %1343 = vmatpush1.msra.mxu0 %v1313
        %1344 = vmatprep.subr.mxu0 0.0
        %1345 = vmatpush1.msra.mxu0 %v1314
        %1346 = vmatprep.subr.mxu0 0.0
        %1347 = vmatpush1.msra.mxu0 %v1315
        %1348 = vmatprep.subr.mxu0 0.0
        %1349 = vmatpush1.msra.mxu0 %v1316
        %1350 = vmatprep.subr.mxu0 0.0
        %1351 = vmatpush1.msra.mxu0 %v1317
        %1352 = vmatprep.subr.mxu0 0.0
        %1353 = vmatpush1.msra.mxu0 %v1318
        %1354 = vmatprep.subr.mxu0 0.0
        %1355 = vmatpush1.msra.mxu0 %v1319
        %1356 = vmatprep.subr.mxu0 0.0
        %1357 = vmatpush1.msra.mxu0 %v1320
        %1358 = vmatprep.subr.mxu0 0.0
        %1359 = vmatpush1.msra.mxu0 %v1321
        %1360 = vmatprep.subr.mxu0 0.0
        %1361 = vmatpush1.msra.mxu0 %v1322
        %1362 = vmatprep.subr.mxu0 0.0
        %1363 = vmatpush1.msra.mxu0 %v1323
        %1364 = vmatprep.subr.mxu0 0.0
        %1365 = vmatpush1.msra.mxu0 %v1324
        %1366 = vmatprep.subr.mxu0 0.0
        %1367 = vmatpush1.msra.mxu0 %v1325
        %1368 = vmatprep.subr.mxu0 0.0
        %1369 = vmatpush1.msra.mxu0 %v1326
        %1370 = vmatprep.subr.mxu0 0.0
        %1371 = vmatpush1.msra.mxu0 %v1327
        %1372 = vmatprep.subr.mxu0 0.0
        %1373 = vmatpush1.msra.mxu0 %v1328
        %1374 = vmatprep.subr.mxu0 0.0
        %1375 = vmatpush1.msra.mxu0 %v1329
        %1376 = vmatprep.subr.mxu0 0.0
        %1377 = vmatpush1.msra.mxu0 0.0
        %1378 = vmatprep.subr.mxu0 0.0
        %1379 = vmatpush1.msra.mxu0 0.0
        %1380 = vmatprep.subr.mxu0 0.0
        %1381 = vmatpush1.msra.mxu0 0.0
        %1382 = vmatprep.subr.mxu0 0.0
        %1383 = vmatpush1.msra.mxu0 0.0
        %1384 = vmatprep.subr.mxu0 0.0
        %1385 = vmatpush1.msra.mxu0 0.0
        %1386 = vmatprep.subr.mxu0 0.0
        %1387 = vmatpush1.msra.mxu0 0.0
        %1388 = vmatprep.subr.mxu0 0.0
        %1389 = vmatpush1.msra.mxu0 0.0
        %1390 = vmatprep.subr.mxu0 0.0
        %1391 = vmatpush1.msra.mxu0 0.0
        %1392 = vmatprep.subr.mxu0 0.0
        %1393 = vmatpush1.msra.mxu0 0.0
        %1394 = vmatprep.subr.mxu0 0.0
        %1395 = vmatpush1.msra.mxu0 0.0
        %1396 = vmatprep.subr.mxu0 0.0
        %1397 = vmatpush1.msra.mxu0 0.0
        %1398 = vmatprep.subr.mxu0 0.0
        %1399 = vmatpush1.msra.mxu0 0.0
        %1400 = vmatprep.subr.mxu0 0.0
        %1401 = vmatpush1.msra.mxu0 0.0
        %1402 = vmatprep.subr.mxu0 0.0
        %1403 = vmatpush1.msra.mxu0 0.0
        %1404 = vmatprep.mubr.f32.mxu0 %v1332
        %1405 = vmatmul.mubr.f32.gmra.mrb[0].mxu0 %v1306
        %v1406 = vpop.f32.mrb[0].mxu0
        %v1407 = vadd.f32 0.0, %v1406
        %v1408 = vpop.f32.mrb[0].mxu0
        %1409 = vmatprep.mubr.f32.mxu0 %v1335
        %1410 = vmatmul.mubr.f32.gmra.mrb[0].mxu0 %v1308
        %v1411 = vpop.f32.mrb[0].mxu0
        %v1412 = vadd.f32 0.0, %v1411
        %v1413 = vpop.f32.mrb[0].mxu0
        %1414 = vmatprep.mubr.f32.mxu0 %v1338
        %1415 = vmatmul.mubr.f32.gmra.mrb[0].mxu0 %v1310
        %v1416 = vpop.f32.mrb[0].mxu0
        %v1417 = vadd.f32 0.0, %v1416
        %v1418 = vpop.f32.mrb[0].mxu0
        %1419 = vdwg.mxu0
        %v1420 = vld [vmem:[#allocation11] sm:$0xff]
        %v1421 = vld [vmem:[#allocation11 + $0x8] sm:$0xff]
        %v1422 = vld [vmem:[#allocation11 + $0x10] sm:$0xff]
        %v1423 = vld [vmem:[#allocation11 + $0x18] sm:$0xff]
        %v1424 = vld [vmem:[#allocation11 + $0x20] sm:$0xff]
        %v1425 = vld [vmem:[#allocation11 + $0x28] sm:$0xff]
        %v1426 = vld [vmem:[#allocation11 + $0x30] sm:$0xff]
        %v1427 = vld [vmem:[#allocation11 + $0x38] sm:$0xff]
        %v1428 = vld [vmem:[#allocation11 + $0x40] sm:$0xff]
        %v1429 = vld [vmem:[#allocation11 + $0x48] sm:$0xff]
        %v1430 = vld [vmem:[#allocation11 + $0x50] sm:$0xff]
        %v1431 = vld [vmem:[#allocation11 + $0x58] sm:$0xff]
        %v1432 = vld [vmem:[#allocation11 + $0x60] sm:$0xff]
        %v1433 = vld [vmem:[#allocation11 + $0x68] sm:$0xff]
        %v1434 = vld [vmem:[#allocation11 + $0x70] sm:$0xff]
        %v1435 = vld [vmem:[#allocation11 + $0x78] sm:$0xff]
        %v1436 = vld [vmem:[#allocation11 + $0x80] sm:$0xff]
        %v1437 = vld [vmem:[#allocation11 + $0x88] sm:$0xff]
        %1438 = vmatprep.subr.mxu0 0.0
        %1439 = vmatpush1.msra.mxu0 %v1420
        %1440 = vmatprep.subr.mxu0 0.0
        %1441 = vmatpush1.msra.mxu0 %v1421
        %1442 = vmatprep.subr.mxu0 0.0
        %1443 = vmatpush1.msra.mxu0 %v1422
        %1444 = vmatprep.subr.mxu0 0.0
        %1445 = vmatpush1.msra.mxu0 %v1423
        %1446 = vmatprep.subr.mxu0 0.0
        %1447 = vmatpush1.msra.mxu0 %v1424
        %1448 = vmatprep.subr.mxu0 0.0
        %1449 = vmatpush1.msra.mxu0 %v1425
        %1450 = vmatprep.subr.mxu0 0.0
        %1451 = vmatpush1.msra.mxu0 %v1426
        %1452 = vmatprep.subr.mxu0 0.0
        %1453 = vmatpush1.msra.mxu0 %v1427
        %1454 = vmatprep.subr.mxu0 0.0
        %1455 = vmatpush1.msra.mxu0 %v1428
        %1456 = vmatprep.subr.mxu0 0.0
        %1457 = vmatpush1.msra.mxu0 %v1429
        %1458 = vmatprep.subr.mxu0 0.0
        %1459 = vmatpush1.msra.mxu0 %v1430
        %1460 = vmatprep.subr.mxu0 0.0
        %1461 = vmatpush1.msra.mxu0 %v1431
        %1462 = vmatprep.subr.mxu0 0.0
        %1463 = vmatpush1.msra.mxu0 %v1432
        %1464 = vmatprep.subr.mxu0 0.0
        %1465 = vmatpush1.msra.mxu0 %v1433
        %1466 = vmatprep.subr.mxu0 0.0
        %1467 = vmatpush1.msra.mxu0 %v1434
        %1468 = vmatprep.subr.mxu0 0.0
        %1469 = vmatpush1.msra.mxu0 %v1435
        %1470 = vmatprep.subr.mxu0 0.0
        %1471 = vmatpush1.msra.mxu0 %v1436
        %1472 = vmatprep.subr.mxu0 0.0
        %1473 = vmatpush1.msra.mxu0 %v1437
        %1474 = vmatprep.subr.mxu0 0.0
        %1475 = vmatpush1.msra.mxu0 0.0
        %1476 = vmatprep.subr.mxu0 0.0
        %1477 = vmatpush1.msra.mxu0 0.0
        %1478 = vmatprep.subr.mxu0 0.0
        %1479 = vmatpush1.msra.mxu0 0.0
        %1480 = vmatprep.subr.mxu0 0.0
        %1481 = vmatpush1.msra.mxu0 0.0
        %1482 = vmatprep.subr.mxu0 0.0
        %1483 = vmatpush1.msra.mxu0 0.0
        %1484 = vmatprep.subr.mxu0 0.0
        %1485 = vmatpush1.msra.mxu0 0.0
        %1486 = vmatprep.subr.mxu0 0.0
        %1487 = vmatpush1.msra.mxu0 0.0
        %1488 = vmatprep.subr.mxu0 0.0
        %1489 = vmatpush1.msra.mxu0 0.0
        %1490 = vmatprep.subr.mxu0 0.0
        %1491 = vmatpush1.msra.mxu0 0.0
        %1492 = vmatprep.subr.mxu0 0.0
        %1493 = vmatpush1.msra.mxu0 0.0
        %1494 = vmatprep.subr.mxu0 0.0
        %1495 = vmatpush1.msra.mxu0 0.0
        %1496 = vmatprep.subr.mxu0 0.0
        %1497 = vmatpush1.msra.mxu0 0.0
        %1498 = vmatprep.subr.mxu0 0.0
        %1499 = vmatpush1.msra.mxu0 0.0
        %1500 = vmatprep.subr.mxu0 0.0
        %1501 = vmatpush1.msra.mxu0 0.0
        %1502 = vmatprep.mubr.f32.mxu0 %v1332
        %1503 = vmatmul.mubr.f32.gmra.mrb[0].mxu0 %v1306
        %v1504 = vpop.f32.mrb[0].mxu0
        %v1505 = vadd.f32 0.0, %v1504
        %v1506 = vpop.f32.mrb[0].mxu0
        %1507 = vmatprep.mubr.f32.mxu0 %v1335
        %1508 = vmatmul.mubr.f32.gmra.mrb[0].mxu0 %v1308
        %v1509 = vpop.f32.mrb[0].mxu0
        %v1510 = vadd.f32 0.0, %v1509
        %v1511 = vpop.f32.mrb[0].mxu0
        %1512 = vmatprep.mubr.f32.mxu0 %v1338
        %1513 = vmatmul.mubr.f32.gmra.mrb[0].mxu0 %v1310
        %v1514 = vpop.f32.mrb[0].mxu0
        %v1515 = vadd.f32 0.0, %v1514
        %v1516 = vpop.f32.mrb[0].mxu0
        %1517 = vdwg.mxu0
        %v1518 = vmax.f32 %v1407, %v1505
        %v1519 = vmax.f32 %v1412, %v1510
        %v1520 = vmax.f32 %v1417, %v1515
        %v1521 = vld [vmem:[#allocation7] sm:$0xff]
        %v1522 = vld [vmem:[#allocation7 + $0x8] sm:$0xf]
        %vm1523 = vcmask 195584
        %v1525 = vsel %vm1523, %v1521, 0
        %v1528 = vsel %vm1523, %v1522, 0
        %1530 = vmatprep.subr.mxu0 0.0
        %1531 = vmatpush1.msra.mxu0 %v1518
        %1532 = vmatprep.subr.mxu0 0.0
        %1533 = vmatpush1.msra.mxu0 %v1519
        %1534 = vmatprep.subr.mxu0 0.0
        %1535 = vmatpush1.msra.mxu0 %v1520
        %1536 = vmatprep.subr.mxu0 0.0
        %1537 = vmatpush1.msra.mxu0 0.0
        %1538 = vmatprep.subr.mxu0 0.0
        %1539 = vmatpush1.msra.mxu0 0.0
        %1540 = vmatprep.subr.mxu0 0.0
        %1541 = vmatpush1.msra.mxu0 0.0
        %1542 = vmatprep.subr.mxu0 0.0
        %1543 = vmatpush1.msra.mxu0 0.0
        %1544 = vmatprep.subr.mxu0 0.0
        %1545 = vmatpush1.msra.mxu0 0.0
        %1546 = vmatprep.subr.mxu0 0.0
        %1547 = vmatpush1.msra.mxu0 0.0
        %1548 = vmatprep.subr.mxu0 0.0
        %1549 = vmatpush1.msra.mxu0 0.0
        %1550 = vmatprep.subr.mxu0 0.0
        %1551 = vmatpush1.msra.mxu0 0.0
        %1552 = vmatprep.subr.mxu0 0.0
        %1553 = vmatpush1.msra.mxu0 0.0
        %1554 = vmatprep.subr.mxu0 0.0
        %1555 = vmatpush1.msra.mxu0 0.0
        %1556 = vmatprep.subr.mxu0 0.0
        %1557 = vmatpush1.msra.mxu0 0.0
        %1558 = vmatprep.subr.mxu0 0.0
        %1559 = vmatpush1.msra.mxu0 0.0
        %1560 = vmatprep.subr.mxu0 0.0
        %1561 = vmatpush1.msra.mxu0 0.0
        %1562 = vmatprep.subr.mxu0 0.0
        %1563 = vmatpush1.msra.mxu0 0.0
        %1564 = vmatprep.subr.mxu0 0.0
        %1565 = vmatpush1.msra.mxu0 0.0
        %1566 = vmatprep.subr.mxu0 0.0
        %1567 = vmatpush1.msra.mxu0 0.0
        %1568 = vmatprep.subr.mxu0 0.0
        %1569 = vmatpush1.msra.mxu0 0.0
        %1570 = vmatprep.subr.mxu0 0.0
        %1571 = vmatpush1.msra.mxu0 0.0
        %1572 = vmatprep.subr.mxu0 0.0
        %1573 = vmatpush1.msra.mxu0 0.0
        %1574 = vmatprep.subr.mxu0 0.0
        %1575 = vmatpush1.msra.mxu0 0.0
        %1576 = vmatprep.subr.mxu0 0.0
        %1577 = vmatpush1.msra.mxu0 0.0
        %1578 = vmatprep.subr.mxu0 0.0
        %1579 = vmatpush1.msra.mxu0 0.0
        %1580 = vmatprep.subr.mxu0 0.0
        %1581 = vmatpush1.msra.mxu0 0.0
        %1582 = vmatprep.subr.mxu0 0.0
        %1583 = vmatpush1.msra.mxu0 0.0
        %1584 = vmatprep.subr.mxu0 0.0
        %1585 = vmatpush1.msra.mxu0 0.0
        %1586 = vmatprep.subr.mxu0 0.0
        %1587 = vmatpush1.msra.mxu0 0.0
        %1588 = vmatprep.subr.mxu0 0.0
        %1589 = vmatpush1.msra.mxu0 0.0
        %1590 = vmatprep.subr.mxu0 0.0
        %1591 = vmatpush1.msra.mxu0 0.0
        %1592 = vmatprep.subr.mxu0 0.0
        %1593 = vmatpush1.msra.mxu0 0.0
        %1594 = vmatprep.mubr.f32.mxu0 0.0
        %1595 = vmatmul.mubr.f32.gmra.mrb[0].mxu0 %v1525
        %v1596 = vpop.f32.mrb[0].mxu0
        %v1597 = vadd.f32 0.0, %v1596
        %v1598 = vpop.f32.mrb[0].mxu0
        %1599 = vmatprep.mubr.f32.mxu0 0.0
        %1600 = vmatmul.mubr.f32.gmra.mrb[0].mxu0 %v1528
        %v1601 = vpop.f32.mrb[0].mxu0
        %v1602 = vadd.f32 0.0, %v1601
        %v1603 = vpop.f32.mrb[0].mxu0
        %1604 = vdwg.mxu0
        %v1605 = vld [vmem:[#allocation8] sm:$0xff]
        %v1606 = vld [vmem:[#allocation8 + $0x8] sm:$0xf]
        %v1608 = vsel %vm1523, %v1605, 0
        %v1611 = vsel %vm1523, %v1606, 0
        %1613 = vmatprep.subr.mxu0 0.0
        %1614 = vmatpush1.msra.mxu0 %v1518
        %1615 = vmatprep.subr.mxu0 0.0
        %1616 = vmatpush1.msra.mxu0 %v1519
        %1617 = vmatprep.subr.mxu0 0.0
        %1618 = vmatpush1.msra.mxu0 %v1520
        %1619 = vmatprep.subr.mxu0 0.0
        %1620 = vmatpush1.msra.mxu0 0.0
        %1621 = vmatprep.subr.mxu0 0.0
        %1622 = vmatpush1.msra.mxu0 0.0
        %1623 = vmatprep.subr.mxu0 0.0
        %1624 = vmatpush1.msra.mxu0 0.0
        %1625 = vmatprep.subr.mxu0 0.0
        %1626 = vmatpush1.msra.mxu0 0.0
        %1627 = vmatprep.subr.mxu0 0.0
        %1628 = vmatpush1.msra.mxu0 0.0
        %1629 = vmatprep.subr.mxu0 0.0
        %1630 = vmatpush1.msra.mxu0 0.0
        %1631 = vmatprep.subr.mxu0 0.0
        %1632 = vmatpush1.msra.mxu0 0.0
        %1633 = vmatprep.subr.mxu0 0.0
        %1634 = vmatpush1.msra.mxu0 0.0
        %1635 = vmatprep.subr.mxu0 0.0
        %1636 = vmatpush1.msra.mxu0 0.0
        %1637 = vmatprep.subr.mxu0 0.0
        %1638 = vmatpush1.msra.mxu0 0.0
        %1639 = vmatprep.subr.mxu0 0.0
        %1640 = vmatpush1.msra.mxu0 0.0
        %1641 = vmatprep.subr.mxu0 0.0
        %1642 = vmatpush1.msra.mxu0 0.0
        %1643 = vmatprep.subr.mxu0 0.0
        %1644 = vmatpush1.msra.mxu0 0.0
        %1645 = vmatprep.subr.mxu0 0.0
        %1646 = vmatpush1.msra.mxu0 0.0
        %1647 = vmatprep.subr.mxu0 0.0
        %1648 = vmatpush1.msra.mxu0 0.0
        %1649 = vmatprep.subr.mxu0 0.0
        %1650 = vmatpush1.msra.mxu0 0.0
        %1651 = vmatprep.subr.mxu0 0.0
        %1652 = vmatpush1.msra.mxu0 0.0
        %1653 = vmatprep.subr.mxu0 0.0
        %1654 = vmatpush1.msra.mxu0 0.0
        %1655 = vmatprep.subr.mxu0 0.0
        %1656 = vmatpush1.msra.mxu0 0.0
        %1657 = vmatprep.subr.mxu0 0.0
        %1658 = vmatpush1.msra.mxu0 0.0
        %1659 = vmatprep.subr.mxu0 0.0
        %1660 = vmatpush1.msra.mxu0 0.0
        %1661 = vmatprep.subr.mxu0 0.0
        %1662 = vmatpush1.msra.mxu0 0.0
        %1663 = vmatprep.subr.mxu0 0.0
        %1664 = vmatpush1.msra.mxu0 0.0
        %1665 = vmatprep.subr.mxu0 0.0
        %1666 = vmatpush1.msra.mxu0 0.0
        %1667 = vmatprep.subr.mxu0 0.0
        %1668 = vmatpush1.msra.mxu0 0.0
        %1669 = vmatprep.subr.mxu0 0.0
        %1670 = vmatpush1.msra.mxu0 0.0
        %1671 = vmatprep.subr.mxu0 0.0
        %1672 = vmatpush1.msra.mxu0 0.0
        %1673 = vmatprep.subr.mxu0 0.0
        %1674 = vmatpush1.msra.mxu0 0.0
        %1675 = vmatprep.subr.mxu0 0.0
        %1676 = vmatpush1.msra.mxu0 0.0
        %1677 = vmatprep.mubr.f32.mxu0 0.0
        %1678 = vmatmul.mubr.f32.gmra.mrb[0].mxu0 %v1608
        %v1679 = vpop.f32.mrb[0].mxu0
        %v1680 = vadd.f32 0.0, %v1679
        %v1681 = vpop.f32.mrb[0].mxu0
        %1682 = vmatprep.mubr.f32.mxu0 0.0
        %1683 = vmatmul.mubr.f32.gmra.mrb[0].mxu0 %v1611
        %v1684 = vpop.f32.mrb[0].mxu0
        %v1685 = vadd.f32 0.0, %v1684
        %v1686 = vpop.f32.mrb[0].mxu0
        %1687 = vdwg.mxu0
        %v1688 = vmax.f32 %v1597, %v1680
        %v1689 = vmax.f32 %v1602, %v1685
        %v1690 = vld [vmem:[#allocation2] sm:$0x1]
        %v1692 = vlaneseq
        %v1693 = vshrl.u32 %v1692, 7
        %v1694 = vsub.s32 0, %v1693
        %v1695 = vrot.slane %v1690, %v1694
        %v1697 = vadd.f32 %v1688, %v1695
        %v1698 = vadd.f32 %v1689, %v1695
        %v1699 = vmax.f32 %v1697, 0.0
        %v1700 = vmax.f32 %v1698, 0.0
        %v1701 = vld [vmem:[%s3] sm:$0xff]
        %v1702 = vld [vmem:[%s3 + $0x8] sm:$0xff]
        %v1703 = vld [vmem:[%s3 + $0x10] sm:$0xff]
        %v1704 = vld [vmem:[%s3 + $0x18] sm:$0xff]
        %v1705 = vld [vmem:[%s3 + $0x20] sm:$0xff]
        %v1706 = vld [vmem:[%s3 + $0x28] sm:$0xff]
        %v1707 = vld [vmem:[%s3 + $0x30] sm:$0xff]
        %v1708 = vld [vmem:[%s3 + $0x38] sm:$0xff]
        %v1709 = vld [vmem:[%s3 + $0x40] sm:$0xff]
        %s1710 = scalar_lea.vmem %s3, 72
        %v1711 = vld [vmem:[%s1710] sm:$0xff]
        %v1712 = vld [vmem:[%s1710 + $0x8] sm:$0xff]
        %v1713 = vld [vmem:[%s1710 + $0x10] sm:$0xff]
        %v1714 = vld [vmem:[%s1710 + $0x18] sm:$0xff]
        %v1715 = vld [vmem:[%s1710 + $0x20] sm:$0xff]
        %v1716 = vld [vmem:[%s1710 + $0x28] sm:$0xff]
        %v1717 = vld [vmem:[%s1710 + $0x30] sm:$0xff]
        %v1718 = vld [vmem:[%s1710 + $0x38] sm:$0xff]
        %v1719 = vld [vmem:[%s1710 + $0x40] sm:$0xff]
        %v1722 = vrot.slane %v1699, 1
        %v1723 = vrot.slane %v1700, 1
        %v1724 = vsel %vm759, %v1722, %v1723
        %vm1725 = vcmask 588800
        %v1726 = vsel %vm1725, %v1724, 0
        %1728 = vmatprep.subr.mxu0 0.0
        %1729 = vmatpush1.msra.mxu0 %v1711
        %1730 = vmatprep.subr.mxu0 0.0
        %1731 = vmatpush1.msra.mxu0 %v1712
        %1732 = vmatprep.subr.mxu0 0.0
        %1733 = vmatpush1.msra.mxu0 %v1713
        %1734 = vmatprep.subr.mxu0 0.0
        %1735 = vmatpush1.msra.mxu0 %v1714
        %1736 = vmatprep.subr.mxu0 0.0
        %1737 = vmatpush1.msra.mxu0 %v1715
        %1738 = vmatprep.subr.mxu0 0.0
        %1739 = vmatpush1.msra.mxu0 %v1716
        %1740 = vmatprep.subr.mxu0 0.0
        %1741 = vmatpush1.msra.mxu0 %v1717
        %1742 = vmatprep.subr.mxu0 0.0
        %1743 = vmatpush1.msra.mxu0 %v1718
        %1744 = vmatprep.subr.mxu0 0.0
        %1745 = vmatpush1.msra.mxu0 %v1719
        %1746 = vmatprep.subr.mxu0 0.0
        %1747 = vmatpush1.msra.mxu0 0.0
        %1748 = vmatprep.subr.mxu0 0.0
        %1749 = vmatpush1.msra.mxu0 0.0
        %1750 = vmatprep.subr.mxu0 0.0
        %1751 = vmatpush1.msra.mxu0 0.0
        %1752 = vmatprep.subr.mxu0 0.0
        %1753 = vmatpush1.msra.mxu0 0.0
        %1754 = vmatprep.subr.mxu0 0.0
        %1755 = vmatpush1.msra.mxu0 0.0
        %1756 = vmatprep.subr.mxu0 0.0
        %1757 = vmatpush1.msra.mxu0 0.0
        %1758 = vmatprep.subr.mxu0 0.0
        %1759 = vmatpush1.msra.mxu0 0.0
        %1760 = vmatprep.subr.mxu0 0.0
        %1761 = vmatpush1.msra.mxu0 0.0
        %1762 = vmatprep.subr.mxu0 0.0
        %1763 = vmatpush1.msra.mxu0 0.0
        %1764 = vmatprep.subr.mxu0 0.0
        %1765 = vmatpush1.msra.mxu0 0.0
        %1766 = vmatprep.subr.mxu0 0.0
        %1767 = vmatpush1.msra.mxu0 0.0
        %1768 = vmatprep.subr.mxu0 0.0
        %1769 = vmatpush1.msra.mxu0 0.0
        %1770 = vmatprep.subr.mxu0 0.0
        %1771 = vmatpush1.msra.mxu0 0.0
        %1772 = vmatprep.subr.mxu0 0.0
        %1773 = vmatpush1.msra.mxu0 0.0
        %1774 = vmatprep.subr.mxu0 0.0
        %1775 = vmatpush1.msra.mxu0 0.0
        %1776 = vmatprep.subr.mxu0 0.0
        %1777 = vmatpush1.msra.mxu0 0.0
        %1778 = vmatprep.subr.mxu0 0.0
        %1779 = vmatpush1.msra.mxu0 0.0
        %1780 = vmatprep.subr.mxu0 0.0
        %1781 = vmatpush1.msra.mxu0 0.0
        %1782 = vmatprep.subr.mxu0 0.0
        %1783 = vmatpush1.msra.mxu0 0.0
        %1784 = vmatprep.subr.mxu0 0.0
        %1785 = vmatpush1.msra.mxu0 0.0
        %1786 = vmatprep.subr.mxu0 0.0
        %1787 = vmatpush1.msra.mxu0 0.0
        %1788 = vmatprep.subr.mxu0 0.0
        %1789 = vmatpush1.msra.mxu0 0.0
        %1790 = vmatprep.subr.mxu0 0.0
        %1791 = vmatpush1.msra.mxu0 0.0
        %1792 = vmatprep.mubr.f32.mxu0 0.0
        %1793 = vmatmul.mubr.f32.gmra.mrb[0].mxu0 %v1726
        %v1794 = vpop.f32.mrb[0].mxu0
        %v1795 = vadd.f32 0.0, %v1794
        %v1796 = vpop.f32.mrb[0].mxu0
        %1797 = vdwg.mxu0
        %v1798 = vsel %vm1725, %v1699, 0
        %1800 = vmatprep.subr.mxu0 0.0
        %1801 = vmatpush1.msra.mxu0 %v1701
        %1802 = vmatprep.subr.mxu0 0.0
        %1803 = vmatpush1.msra.mxu0 %v1702
        %1804 = vmatprep.subr.mxu0 0.0
        %1805 = vmatpush1.msra.mxu0 %v1703
        %1806 = vmatprep.subr.mxu0 0.0
        %1807 = vmatpush1.msra.mxu0 %v1704
        %1808 = vmatprep.subr.mxu0 0.0
        %1809 = vmatpush1.msra.mxu0 %v1705
        %1810 = vmatprep.subr.mxu0 0.0
        %1811 = vmatpush1.msra.mxu0 %v1706
        %1812 = vmatprep.subr.mxu0 0.0
        %1813 = vmatpush1.msra.mxu0 %v1707
        %1814 = vmatprep.subr.mxu0 0.0
        %1815 = vmatpush1.msra.mxu0 %v1708
        %1816 = vmatprep.subr.mxu0 0.0
        %1817 = vmatpush1.msra.mxu0 %v1709
        %1818 = vmatprep.subr.mxu0 0.0
        %1819 = vmatpush1.msra.mxu0 0.0
        %1820 = vmatprep.subr.mxu0 0.0
        %1821 = vmatpush1.msra.mxu0 0.0
        %1822 = vmatprep.subr.mxu0 0.0
        %1823 = vmatpush1.msra.mxu0 0.0
        %1824 = vmatprep.subr.mxu0 0.0
        %1825 = vmatpush1.msra.mxu0 0.0
        %1826 = vmatprep.subr.mxu0 0.0
        %1827 = vmatpush1.msra.mxu0 0.0
        %1828 = vmatprep.subr.mxu0 0.0
        %1829 = vmatpush1.msra.mxu0 0.0
        %1830 = vmatprep.subr.mxu0 0.0
        %1831 = vmatpush1.msra.mxu0 0.0
        %1832 = vmatprep.subr.mxu0 0.0
        %1833 = vmatpush1.msra.mxu0 0.0
        %1834 = vmatprep.subr.mxu0 0.0
        %1835 = vmatpush1.msra.mxu0 0.0
        %1836 = vmatprep.subr.mxu0 0.0
        %1837 = vmatpush1.msra.mxu0 0.0
        %1838 = vmatprep.subr.mxu0 0.0
        %1839 = vmatpush1.msra.mxu0 0.0
        %1840 = vmatprep.subr.mxu0 0.0
        %1841 = vmatpush1.msra.mxu0 0.0
        %1842 = vmatprep.subr.mxu0 0.0
        %1843 = vmatpush1.msra.mxu0 0.0
        %1844 = vmatprep.subr.mxu0 0.0
        %1845 = vmatpush1.msra.mxu0 0.0
        %1846 = vmatprep.subr.mxu0 0.0
        %1847 = vmatpush1.msra.mxu0 0.0
        %1848 = vmatprep.subr.mxu0 0.0
        %1849 = vmatpush1.msra.mxu0 0.0
        %1850 = vmatprep.subr.mxu0 0.0
        %1851 = vmatpush1.msra.mxu0 0.0
        %1852 = vmatprep.subr.mxu0 0.0
        %1853 = vmatpush1.msra.mxu0 0.0
        %1854 = vmatprep.subr.mxu0 0.0
        %1855 = vmatpush1.msra.mxu0 0.0
        %1856 = vmatprep.subr.mxu0 0.0
        %1857 = vmatpush1.msra.mxu0 0.0
        %1858 = vmatprep.subr.mxu0 0.0
        %1859 = vmatpush1.msra.mxu0 0.0
        %1860 = vmatprep.subr.mxu0 0.0
        %1861 = vmatpush1.msra.mxu0 0.0
        %1862 = vmatprep.subr.mxu0 0.0
        %1863 = vmatpush1.msra.mxu0 0.0
        %1864 = vmatprep.mubr.f32.mxu0 0.0
        %1865 = vmatmul.mubr.f32.gmra.mrb[0].mxu0 %v1798
        %v1866 = vpop.f32.mrb[0].mxu0
        %v1867 = vadd.f32 %v1795, %v1866
        %v1868 = vpop.f32.mrb[0].mxu0
        %1869 = vdwg.mxu0
        %s1870 = scalar_lea.vmem %s3, 144
        %v1871 = vld [vmem:[%s1870] sm:$0xff]
        %v1872 = vld [vmem:[%s1870 + $0x8] sm:$0xff]
        %v1873 = vld [vmem:[%s1870 + $0x10] sm:$0xff]
        %v1874 = vld [vmem:[%s1870 + $0x18] sm:$0xff]
        %v1875 = vld [vmem:[%s1870 + $0x20] sm:$0xff]
        %v1876 = vld [vmem:[%s1870 + $0x28] sm:$0xff]
        %v1877 = vld [vmem:[%s1870 + $0x30] sm:$0xff]
        %v1878 = vld [vmem:[%s1870 + $0x38] sm:$0xff]
        %v1879 = vld [vmem:[%s1870 + $0x40] sm:$0xff]
        %v1880 = vrot.slane %v1699, 2
        %v1881 = vrot.slane %v1700, 2
        %v1882 = vsel %vm968, %v1880, %v1881
        %v1883 = vsel %vm1725, %v1882, 0
        %1885 = vmatprep.subr.mxu0 0.0
        %1886 = vmatpush1.msra.mxu0 %v1871
        %1887 = vmatprep.subr.mxu0 0.0
        %1888 = vmatpush1.msra.mxu0 %v1872
        %1889 = vmatprep.subr.mxu0 0.0
        %1890 = vmatpush1.msra.mxu0 %v1873
        %1891 = vmatprep.subr.mxu0 0.0
        %1892 = vmatpush1.msra.mxu0 %v1874
        %1893 = vmatprep.subr.mxu0 0.0
        %1894 = vmatpush1.msra.mxu0 %v1875
        %1895 = vmatprep.subr.mxu0 0.0
        %1896 = vmatpush1.msra.mxu0 %v1876
        %1897 = vmatprep.subr.mxu0 0.0
        %1898 = vmatpush1.msra.mxu0 %v1877
        %1899 = vmatprep.subr.mxu0 0.0
        %1900 = vmatpush1.msra.mxu0 %v1878
        %1901 = vmatprep.subr.mxu0 0.0
        %1902 = vmatpush1.msra.mxu0 %v1879
        %1903 = vmatprep.subr.mxu0 0.0
        %1904 = vmatpush1.msra.mxu0 0.0
        %1905 = vmatprep.subr.mxu0 0.0
        %1906 = vmatpush1.msra.mxu0 0.0
        %1907 = vmatprep.subr.mxu0 0.0
        %1908 = vmatpush1.msra.mxu0 0.0
        %1909 = vmatprep.subr.mxu0 0.0
        %1910 = vmatpush1.msra.mxu0 0.0
        %1911 = vmatprep.subr.mxu0 0.0
        %1912 = vmatpush1.msra.mxu0 0.0
        %1913 = vmatprep.subr.mxu0 0.0
        %1914 = vmatpush1.msra.mxu0 0.0
        %1915 = vmatprep.subr.mxu0 0.0
        %1916 = vmatpush1.msra.mxu0 0.0
        %1917 = vmatprep.subr.mxu0 0.0
        %1918 = vmatpush1.msra.mxu0 0.0
        %1919 = vmatprep.subr.mxu0 0.0
        %1920 = vmatpush1.msra.mxu0 0.0
        %1921 = vmatprep.subr.mxu0 0.0
        %1922 = vmatpush1.msra.mxu0 0.0
        %1923 = vmatprep.subr.mxu0 0.0
        %1924 = vmatpush1.msra.mxu0 0.0
        %1925 = vmatprep.subr.mxu0 0.0
        %1926 = vmatpush1.msra.mxu0 0.0
        %1927 = vmatprep.subr.mxu0 0.0
        %1928 = vmatpush1.msra.mxu0 0.0
        %1929 = vmatprep.subr.mxu0 0.0
        %1930 = vmatpush1.msra.mxu0 0.0
        %1931 = vmatprep.subr.mxu0 0.0
        %1932 = vmatpush1.msra.mxu0 0.0
        %1933 = vmatprep.subr.mxu0 0.0
        %1934 = vmatpush1.msra.mxu0 0.0
        %1935 = vmatprep.subr.mxu0 0.0
        %1936 = vmatpush1.msra.mxu0 0.0
        %1937 = vmatprep.subr.mxu0 0.0
        %1938 = vmatpush1.msra.mxu0 0.0
        %1939 = vmatprep.subr.mxu0 0.0
        %1940 = vmatpush1.msra.mxu0 0.0
        %1941 = vmatprep.subr.mxu0 0.0
        %1942 = vmatpush1.msra.mxu0 0.0
        %1943 = vmatprep.subr.mxu0 0.0
        %1944 = vmatpush1.msra.mxu0 0.0
        %1945 = vmatprep.subr.mxu0 0.0
        %1946 = vmatpush1.msra.mxu0 0.0
        %1947 = vmatprep.subr.mxu0 0.0
        %1948 = vmatpush1.msra.mxu0 0.0
        %1949 = vmatprep.mubr.f32.mxu0 0.0
        %1950 = vmatmul.mubr.f32.gmra.mrb[0].mxu0 %v1883
        %v1951 = vpop.f32.mrb[0].mxu0
        %v1952 = vadd.f32 0.0, %v1951
        %v1953 = vpop.f32.mrb[0].mxu0
        %1954 = vdwg.mxu0
        %v1955 = vadd.f32 %v1867, %v1952
        %s1956 = scalar_lea.vmem %s3, 216
        %v1957 = vld [vmem:[%s1956] sm:$0xff]
        %v1958 = vld [vmem:[%s1956 + $0x8] sm:$0xff]
        %v1959 = vld [vmem:[%s1956 + $0x10] sm:$0xff]
        %v1960 = vld [vmem:[%s1956 + $0x18] sm:$0xff]
        %v1961 = vld [vmem:[%s1956 + $0x20] sm:$0xff]
        %v1962 = vld [vmem:[%s1956 + $0x28] sm:$0xff]
        %v1963 = vld [vmem:[%s1956 + $0x30] sm:$0xff]
        %v1964 = vld [vmem:[%s1956 + $0x38] sm:$0xff]
        %v1965 = vld [vmem:[%s1956 + $0x40] sm:$0xff]
        %v1966 = vrot.slane %v1699, 3
        %v1967 = vrot.slane %v1700, 3
        %v1968 = vsel %vm1086, %v1966, %v1967
        %v1969 = vsel %vm1725, %v1968, 0
        %1971 = vmatprep.subr.mxu0 0.0
        %1972 = vmatpush1.msra.mxu0 %v1957
        %1973 = vmatprep.subr.mxu0 0.0
        %1974 = vmatpush1.msra.mxu0 %v1958
        %1975 = vmatprep.subr.mxu0 0.0
        %1976 = vmatpush1.msra.mxu0 %v1959
        %1977 = vmatprep.subr.mxu0 0.0
        %1978 = vmatpush1.msra.mxu0 %v1960
        %1979 = vmatprep.subr.mxu0 0.0
        %1980 = vmatpush1.msra.mxu0 %v1961
        %1981 = vmatprep.subr.mxu0 0.0
        %1982 = vmatpush1.msra.mxu0 %v1962
        %1983 = vmatprep.subr.mxu0 0.0
        %1984 = vmatpush1.msra.mxu0 %v1963
        %1985 = vmatprep.subr.mxu0 0.0
        %1986 = vmatpush1.msra.mxu0 %v1964
        %1987 = vmatprep.subr.mxu0 0.0
        %1988 = vmatpush1.msra.mxu0 %v1965
        %1989 = vmatprep.subr.mxu0 0.0
        %1990 = vmatpush1.msra.mxu0 0.0
        %1991 = vmatprep.subr.mxu0 0.0
        %1992 = vmatpush1.msra.mxu0 0.0
        %1993 = vmatprep.subr.mxu0 0.0
        %1994 = vmatpush1.msra.mxu0 0.0
        %1995 = vmatprep.subr.mxu0 0.0
        %1996 = vmatpush1.msra.mxu0 0.0
        %1997 = vmatprep.subr.mxu0 0.0
        %1998 = vmatpush1.msra.mxu0 0.0
        %1999 = vmatprep.subr.mxu0 0.0
        %2000 = vmatpush1.msra.mxu0 0.0
        %2001 = vmatprep.subr.mxu0 0.0
        %2002 = vmatpush1.msra.mxu0 0.0
        %2003 = vmatprep.subr.mxu0 0.0
        %2004 = vmatpush1.msra.mxu0 0.0
        %2005 = vmatprep.subr.mxu0 0.0
        %2006 = vmatpush1.msra.mxu0 0.0
        %2007 = vmatprep.subr.mxu0 0.0
        %2008 = vmatpush1.msra.mxu0 0.0
        %2009 = vmatprep.subr.mxu0 0.0
        %2010 = vmatpush1.msra.mxu0 0.0
        %2011 = vmatprep.subr.mxu0 0.0
        %2012 = vmatpush1.msra.mxu0 0.0
        %2013 = vmatprep.subr.mxu0 0.0
        %2014 = vmatpush1.msra.mxu0 0.0
        %2015 = vmatprep.subr.mxu0 0.0
        %2016 = vmatpush1.msra.mxu0 0.0
        %2017 = vmatprep.subr.mxu0 0.0
        %2018 = vmatpush1.msra.mxu0 0.0
        %2019 = vmatprep.subr.mxu0 0.0
        %2020 = vmatpush1.msra.mxu0 0.0
        %2021 = vmatprep.subr.mxu0 0.0
        %2022 = vmatpush1.msra.mxu0 0.0
        %2023 = vmatprep.subr.mxu0 0.0
        %2024 = vmatpush1.msra.mxu0 0.0
        %2025 = vmatprep.subr.mxu0 0.0
        %2026 = vmatpush1.msra.mxu0 0.0
        %2027 = vmatprep.subr.mxu0 0.0
        %2028 = vmatpush1.msra.mxu0 0.0
        %2029 = vmatprep.subr.mxu0 0.0
        %2030 = vmatpush1.msra.mxu0 0.0
        %2031 = vmatprep.subr.mxu0 0.0
        %2032 = vmatpush1.msra.mxu0 0.0
        %2033 = vmatprep.subr.mxu0 0.0
        %2034 = vmatpush1.msra.mxu0 0.0
        %2035 = vmatprep.mubr.f32.mxu0 0.0
        %2036 = vmatmul.mubr.f32.gmra.mrb[0].mxu0 %v1969
        %v2037 = vpop.f32.mrb[0].mxu0
        %v2038 = vadd.f32 0.0, %v2037
        %v2039 = vpop.f32.mrb[0].mxu0
        %2040 = vdwg.mxu0
        %v2041 = vadd.f32 %v1955, %v2038
        %s2042 = scalar_lea.vmem %s3, 288
        %v2043 = vld [vmem:[%s2042] sm:$0xff]
        %v2044 = vld [vmem:[%s2042 + $0x8] sm:$0xff]
        %v2045 = vld [vmem:[%s2042 + $0x10] sm:$0xff]
        %v2046 = vld [vmem:[%s2042 + $0x18] sm:$0xff]
        %v2047 = vld [vmem:[%s2042 + $0x20] sm:$0xff]
        %v2048 = vld [vmem:[%s2042 + $0x28] sm:$0xff]
        %v2049 = vld [vmem:[%s2042 + $0x30] sm:$0xff]
        %v2050 = vld [vmem:[%s2042 + $0x38] sm:$0xff]
        %v2051 = vld [vmem:[%s2042 + $0x40] sm:$0xff]
        %v2052 = vrot.slane %v1699, 4
        %v2053 = vrot.slane %v1700, 4
        %v2054 = vsel %vm774, %v2052, %v2053
        %v2055 = vsel %vm1725, %v2054, 0
        %2057 = vmatprep.subr.mxu0 0.0
        %2058 = vmatpush1.msra.mxu0 %v2043
        %2059 = vmatprep.subr.mxu0 0.0
        %2060 = vmatpush1.msra.mxu0 %v2044
        %2061 = vmatprep.subr.mxu0 0.0
        %2062 = vmatpush1.msra.mxu0 %v2045
        %2063 = vmatprep.subr.mxu0 0.0
        %2064 = vmatpush1.msra.mxu0 %v2046
        %2065 = vmatprep.subr.mxu0 0.0
        %2066 = vmatpush1.msra.mxu0 %v2047
        %2067 = vmatprep.subr.mxu0 0.0
        %2068 = vmatpush1.msra.mxu0 %v2048
        %2069 = vmatprep.subr.mxu0 0.0
        %2070 = vmatpush1.msra.mxu0 %v2049
        %2071 = vmatprep.subr.mxu0 0.0
        %2072 = vmatpush1.msra.mxu0 %v2050
        %2073 = vmatprep.subr.mxu0 0.0
        %2074 = vmatpush1.msra.mxu0 %v2051
        %2075 = vmatprep.subr.mxu0 0.0
        %2076 = vmatpush1.msra.mxu0 0.0
        %2077 = vmatprep.subr.mxu0 0.0
        %2078 = vmatpush1.msra.mxu0 0.0
        %2079 = vmatprep.subr.mxu0 0.0
        %2080 = vmatpush1.msra.mxu0 0.0
        %2081 = vmatprep.subr.mxu0 0.0
        %2082 = vmatpush1.msra.mxu0 0.0
        %2083 = vmatprep.subr.mxu0 0.0
        %2084 = vmatpush1.msra.mxu0 0.0
        %2085 = vmatprep.subr.mxu0 0.0
        %2086 = vmatpush1.msra.mxu0 0.0
        %2087 = vmatprep.subr.mxu0 0.0
        %2088 = vmatpush1.msra.mxu0 0.0
        %2089 = vmatprep.subr.mxu0 0.0
        %2090 = vmatpush1.msra.mxu0 0.0
        %2091 = vmatprep.subr.mxu0 0.0
        %2092 = vmatpush1.msra.mxu0 0.0
        %2093 = vmatprep.subr.mxu0 0.0
        %2094 = vmatpush1.msra.mxu0 0.0
        %2095 = vmatprep.subr.mxu0 0.0
        %2096 = vmatpush1.msra.mxu0 0.0
        %2097 = vmatprep.subr.mxu0 0.0
        %2098 = vmatpush1.msra.mxu0 0.0
        %2099 = vmatprep.subr.mxu0 0.0
        %2100 = vmatpush1.msra.mxu0 0.0
        %2101 = vmatprep.subr.mxu0 0.0
        %2102 = vmatpush1.msra.mxu0 0.0
        %2103 = vmatprep.subr.mxu0 0.0
        %2104 = vmatpush1.msra.mxu0 0.0
        %2105 = vmatprep.subr.mxu0 0.0
        %2106 = vmatpush1.msra.mxu0 0.0
        %2107 = vmatprep.subr.mxu0 0.0
        %2108 = vmatpush1.msra.mxu0 0.0
        %2109 = vmatprep.subr.mxu0 0.0
        %2110 = vmatpush1.msra.mxu0 0.0
        %2111 = vmatprep.subr.mxu0 0.0
        %2112 = vmatpush1.msra.mxu0 0.0
        %2113 = vmatprep.subr.mxu0 0.0
        %2114 = vmatpush1.msra.mxu0 0.0
        %2115 = vmatprep.subr.mxu0 0.0
        %2116 = vmatpush1.msra.mxu0 0.0
        %2117 = vmatprep.subr.mxu0 0.0
        %2118 = vmatpush1.msra.mxu0 0.0
        %2119 = vmatprep.subr.mxu0 0.0
        %2120 = vmatpush1.msra.mxu0 0.0
        %2121 = vmatprep.mubr.f32.mxu0 0.0
        %2122 = vmatmul.mubr.f32.gmra.mrb[0].mxu0 %v2055
        %v2123 = vpop.f32.mrb[0].mxu0
        %v2124 = vadd.f32 0.0, %v2123
        %v2125 = vpop.f32.mrb[0].mxu0
        %2126 = vdwg.mxu0
        %v2127 = vadd.f32 %v2041, %v2124
        %v2128 = vld [vmem:[%s11] sm:$0xff]
        %v2129 = vld [vmem:[%s11 + $0x8] sm:$0xff]
        %v2130 = vld [vmem:[%s11 + $0x10] sm:$0xff]
        %v2131 = vld [vmem:[%s11 + $0x18] sm:$0xff]
        %v2132 = vld [vmem:[%s11 + $0x20] sm:$0xff]
        %v2133 = vld [vmem:[%s11 + $0x28] sm:$0xff]
        %v2134 = vld [vmem:[%s11 + $0x30] sm:$0xff]
        %v2135 = vld [vmem:[%s11 + $0x38] sm:$0xff]
        %v2136 = vld [vmem:[%s11 + $0x40] sm:$0xff]
        %v2137 = vld [vmem:[%s11 + $0x48] sm:$0xff]
        %v2138 = vld [vmem:[%s11 + $0x50] sm:$0xff]
        %v2139 = vld [vmem:[%s11 + $0x58] sm:$0xff]
        %v2140 = vld [vmem:[%s11 + $0x60] sm:$0xff]
        %v2141 = vld [vmem:[%s11 + $0x68] sm:$0xff]
        %v2142 = vld [vmem:[%s11 + $0x70] sm:$0xff]
        %v2143 = vld [vmem:[%s11 + $0x78] sm:$0xff]
        %2144 = vmatprep.subr.mxu0 0.0
        %2145 = vmatpush1.msra.mxu0 %v2128
        %2146 = vmatprep.subr.mxu0 0.0
        %2147 = vmatpush1.msra.mxu0 %v2129
        %2148 = vmatprep.subr.mxu0 0.0
        %2149 = vmatpush1.msra.mxu0 %v2130
        %2150 = vmatprep.subr.mxu0 0.0
        %2151 = vmatpush1.msra.mxu0 %v2131
        %2152 = vmatprep.subr.mxu0 0.0
        %2153 = vmatpush1.msra.mxu0 %v2132
        %2154 = vmatprep.subr.mxu0 0.0
        %2155 = vmatpush1.msra.mxu0 %v2133
        %2156 = vmatprep.subr.mxu0 0.0
        %2157 = vmatpush1.msra.mxu0 %v2134
        %2158 = vmatprep.subr.mxu0 0.0
        %2159 = vmatpush1.msra.mxu0 %v2135
        %2160 = vmatprep.subr.mxu0 0.0
        %2161 = vmatpush1.msra.mxu0 %v2136
        %2162 = vmatprep.subr.mxu0 0.0
        %2163 = vmatpush1.msra.mxu0 %v2137
        %2164 = vmatprep.subr.mxu0 0.0
        %2165 = vmatpush1.msra.mxu0 %v2138
        %2166 = vmatprep.subr.mxu0 0.0
        %2167 = vmatpush1.msra.mxu0 %v2139
        %2168 = vmatprep.subr.mxu0 0.0
        %2169 = vmatpush1.msra.mxu0 %v2140
        %2170 = vmatprep.subr.mxu0 0.0
        %2171 = vmatpush1.msra.mxu0 %v2141
        %2172 = vmatprep.subr.mxu0 0.0
        %2173 = vmatpush1.msra.mxu0 %v2142
        %2174 = vmatprep.subr.mxu0 0.0
        %2175 = vmatpush1.msra.mxu0 %v2143
        %2176 = vmatprep.subr.mxu0 0.0
        %2177 = vmatpush1.msra.mxu0 0.0
        %2178 = vmatprep.subr.mxu0 0.0
        %2179 = vmatpush1.msra.mxu0 0.0
        %2180 = vmatprep.subr.mxu0 0.0
        %2181 = vmatpush1.msra.mxu0 0.0
        %2182 = vmatprep.subr.mxu0 0.0
        %2183 = vmatpush1.msra.mxu0 0.0
        %2184 = vmatprep.subr.mxu0 0.0
        %2185 = vmatpush1.msra.mxu0 0.0
        %2186 = vmatprep.subr.mxu0 0.0
        %2187 = vmatpush1.msra.mxu0 0.0
        %2188 = vmatprep.subr.mxu0 0.0
        %2189 = vmatpush1.msra.mxu0 0.0
        %2190 = vmatprep.subr.mxu0 0.0
        %2191 = vmatpush1.msra.mxu0 0.0
        %2192 = vmatprep.subr.mxu0 0.0
        %2193 = vmatpush1.msra.mxu0 0.0
        %2194 = vmatprep.subr.mxu0 0.0
        %2195 = vmatpush1.msra.mxu0 0.0
        %2196 = vmatprep.subr.mxu0 0.0
        %2197 = vmatpush1.msra.mxu0 0.0
        %2198 = vmatprep.subr.mxu0 0.0
        %2199 = vmatpush1.msra.mxu0 0.0
        %2200 = vmatprep.subr.mxu0 0.0
        %2201 = vmatpush1.msra.mxu0 0.0
        %2202 = vmatprep.subr.mxu0 0.0
        %2203 = vmatpush1.msra.mxu0 0.0
        %2204 = vmatprep.subr.mxu0 0.0
        %2205 = vmatpush1.msra.mxu0 0.0
        %2206 = vmatprep.subr.mxu0 0.0
        %2207 = vmatpush1.msra.mxu0 0.0
        %2208 = vmatprep.mubr.f32.mxu0 0.0
        %2209 = vmatmul.mubr.f32.gmra.mrb[0].mxu0 %v2127
        %v2210 = vpop.f32.mrb[0].mxu0
        %v2211 = vadd.f32 0.0, %v2210
        %v2212 = vpop.f32.mrb[0].mxu0
        %2213 = vdwg.mxu0
        %v2214 = vld [vmem:[%s12] sm:$0xff]
        %v2215 = vld [vmem:[%s12 + $0x8] sm:$0xff]
        %v2216 = vld [vmem:[%s12 + $0x10] sm:$0xff]
        %v2217 = vld [vmem:[%s12 + $0x18] sm:$0xff]
        %v2218 = vld [vmem:[%s12 + $0x20] sm:$0xff]
        %v2219 = vld [vmem:[%s12 + $0x28] sm:$0xff]
        %v2220 = vld [vmem:[%s12 + $0x30] sm:$0xff]
        %v2221 = vld [vmem:[%s12 + $0x38] sm:$0xff]
        %v2222 = vld [vmem:[%s12 + $0x40] sm:$0xff]
        %v2223 = vld [vmem:[%s12 + $0x48] sm:$0xff]
        %v2224 = vld [vmem:[%s12 + $0x50] sm:$0xff]
        %v2225 = vld [vmem:[%s12 + $0x58] sm:$0xff]
        %v2226 = vld [vmem:[%s12 + $0x60] sm:$0xff]
        %v2227 = vld [vmem:[%s12 + $0x68] sm:$0xff]
        %v2228 = vld [vmem:[%s12 + $0x70] sm:$0xff]
        %v2229 = vld [vmem:[%s12 + $0x78] sm:$0xff]
        %2230 = vmatprep.subr.mxu0 0.0
        %2231 = vmatpush1.msra.mxu0 %v2214
        %2232 = vmatprep.subr.mxu0 0.0
        %2233 = vmatpush1.msra.mxu0 %v2215
        %2234 = vmatprep.subr.mxu0 0.0
        %2235 = vmatpush1.msra.mxu0 %v2216
        %2236 = vmatprep.subr.mxu0 0.0
        %2237 = vmatpush1.msra.mxu0 %v2217
        %2238 = vmatprep.subr.mxu0 0.0
        %2239 = vmatpush1.msra.mxu0 %v2218
        %2240 = vmatprep.subr.mxu0 0.0
        %2241 = vmatpush1.msra.mxu0 %v2219
        %2242 = vmatprep.subr.mxu0 0.0
        %2243 = vmatpush1.msra.mxu0 %v2220
        %2244 = vmatprep.subr.mxu0 0.0
        %2245 = vmatpush1.msra.mxu0 %v2221
        %2246 = vmatprep.subr.mxu0 0.0
        %2247 = vmatpush1.msra.mxu0 %v2222
        %2248 = vmatprep.subr.mxu0 0.0
        %2249 = vmatpush1.msra.mxu0 %v2223
        %2250 = vmatprep.subr.mxu0 0.0
        %2251 = vmatpush1.msra.mxu0 %v2224
        %2252 = vmatprep.subr.mxu0 0.0
        %2253 = vmatpush1.msra.mxu0 %v2225
        %2254 = vmatprep.subr.mxu0 0.0
        %2255 = vmatpush1.msra.mxu0 %v2226
        %2256 = vmatprep.subr.mxu0 0.0
        %2257 = vmatpush1.msra.mxu0 %v2227
        %2258 = vmatprep.subr.mxu0 0.0
        %2259 = vmatpush1.msra.mxu0 %v2228
        %2260 = vmatprep.subr.mxu0 0.0
        %2261 = vmatpush1.msra.mxu0 %v2229
        %2262 = vmatprep.subr.mxu0 0.0
        %2263 = vmatpush1.msra.mxu0 0.0
        %2264 = vmatprep.subr.mxu0 0.0
        %2265 = vmatpush1.msra.mxu0 0.0
        %2266 = vmatprep.subr.mxu0 0.0
        %2267 = vmatpush1.msra.mxu0 0.0
        %2268 = vmatprep.subr.mxu0 0.0
        %2269 = vmatpush1.msra.mxu0 0.0
        %2270 = vmatprep.subr.mxu0 0.0
        %2271 = vmatpush1.msra.mxu0 0.0
        %2272 = vmatprep.subr.mxu0 0.0
        %2273 = vmatpush1.msra.mxu0 0.0
        %2274 = vmatprep.subr.mxu0 0.0
        %2275 = vmatpush1.msra.mxu0 0.0
        %2276 = vmatprep.subr.mxu0 0.0
        %2277 = vmatpush1.msra.mxu0 0.0
        %2278 = vmatprep.subr.mxu0 0.0
        %2279 = vmatpush1.msra.mxu0 0.0
        %2280 = vmatprep.subr.mxu0 0.0
        %2281 = vmatpush1.msra.mxu0 0.0
        %2282 = vmatprep.subr.mxu0 0.0
        %2283 = vmatpush1.msra.mxu0 0.0
        %2284 = vmatprep.subr.mxu0 0.0
        %2285 = vmatpush1.msra.mxu0 0.0
        %2286 = vmatprep.subr.mxu0 0.0
        %2287 = vmatpush1.msra.mxu0 0.0
        %2288 = vmatprep.subr.mxu0 0.0
        %2289 = vmatpush1.msra.mxu0 0.0
        %2290 = vmatprep.subr.mxu0 0.0
        %2291 = vmatpush1.msra.mxu0 0.0
        %2292 = vmatprep.subr.mxu0 0.0
        %2293 = vmatpush1.msra.mxu0 0.0
        %2294 = vmatprep.mubr.f32.mxu0 0.0
        %2295 = vmatmul.mubr.f32.gmra.mrb[0].mxu0 %v2127
        %v2296 = vpop.f32.mrb[0].mxu0
        %v2297 = vadd.f32 0.0, %v2296
        %v2298 = vpop.f32.mrb[0].mxu0
        %2299 = vdwg.mxu0
        %v2300 = vmax.f32 %v2211, %v2297
        %v2301 = vld [vmem:[%s9] sm:$0xf]
        %vm2302 = vcmask 64512
        %v2304 = vsel %vm2302, %v2301, 0
        %2306 = vmatprep.subr.mxu0 0.0
        %2307 = vmatpush1.msra.mxu0 %v2300
        %2308 = vmatprep.subr.mxu0 0.0
        %2309 = vmatpush1.msra.mxu0 0.0
        %2310 = vmatprep.subr.mxu0 0.0
        %2311 = vmatpush1.msra.mxu0 0.0
        %2312 = vmatprep.subr.mxu0 0.0
        %2313 = vmatpush1.msra.mxu0 0.0
        %2314 = vmatprep.subr.mxu0 0.0
        %2315 = vmatpush1.msra.mxu0 0.0
        %2316 = vmatprep.subr.mxu0 0.0
        %2317 = vmatpush1.msra.mxu0 0.0
        %2318 = vmatprep.subr.mxu0 0.0
        %2319 = vmatpush1.msra.mxu0 0.0
        %2320 = vmatprep.subr.mxu0 0.0
        %2321 = vmatpush1.msra.mxu0 0.0
        %2322 = vmatprep.subr.mxu0 0.0
        %2323 = vmatpush1.msra.mxu0 0.0
        %2324 = vmatprep.subr.mxu0 0.0
        %2325 = vmatpush1.msra.mxu0 0.0
        %2326 = vmatprep.subr.mxu0 0.0
        %2327 = vmatpush1.msra.mxu0 0.0
        %2328 = vmatprep.subr.mxu0 0.0
        %2329 = vmatpush1.msra.mxu0 0.0
        %2330 = vmatprep.subr.mxu0 0.0
        %2331 = vmatpush1.msra.mxu0 0.0
        %2332 = vmatprep.subr.mxu0 0.0
        %2333 = vmatpush1.msra.mxu0 0.0
        %2334 = vmatprep.subr.mxu0 0.0
        %2335 = vmatpush1.msra.mxu0 0.0
        %2336 = vmatprep.subr.mxu0 0.0
        %2337 = vmatpush1.msra.mxu0 0.0
        %2338 = vmatprep.subr.mxu0 0.0
        %2339 = vmatpush1.msra.mxu0 0.0
        %2340 = vmatprep.subr.mxu0 0.0
        %2341 = vmatpush1.msra.mxu0 0.0
        %2342 = vmatprep.subr.mxu0 0.0
        %2343 = vmatpush1.msra.mxu0 0.0
        %2344 = vmatprep.subr.mxu0 0.0
        %2345 = vmatpush1.msra.mxu0 0.0
        %2346 = vmatprep.subr.mxu0 0.0
        %2347 = vmatpush1.msra.mxu0 0.0
        %2348 = vmatprep.subr.mxu0 0.0
        %2349 = vmatpush1.msra.mxu0 0.0
        %2350 = vmatprep.subr.mxu0 0.0
        %2351 = vmatpush1.msra.mxu0 0.0
        %2352 = vmatprep.subr.mxu0 0.0
        %2353 = vmatpush1.msra.mxu0 0.0
        %2354 = vmatprep.subr.mxu0 0.0
        %2355 = vmatpush1.msra.mxu0 0.0
        %2356 = vmatprep.subr.mxu0 0.0
        %2357 = vmatpush1.msra.mxu0 0.0
        %2358 = vmatprep.subr.mxu0 0.0
        %2359 = vmatpush1.msra.mxu0 0.0
        %2360 = vmatprep.subr.mxu0 0.0
        %2361 = vmatpush1.msra.mxu0 0.0
        %2362 = vmatprep.subr.mxu0 0.0
        %2363 = vmatpush1.msra.mxu0 0.0
        %2364 = vmatprep.subr.mxu0 0.0
        %2365 = vmatpush1.msra.mxu0 0.0
        %2366 = vmatprep.subr.mxu0 0.0
        %2367 = vmatpush1.msra.mxu0 0.0
        %2368 = vmatprep.subr.mxu0 0.0
        %2369 = vmatpush1.msra.mxu0 0.0
        %2370 = vmatprep.mubr.f32.mxu0 0.0
        %2371 = vmatmul.mubr.f32.gmra.mrb[0].mxu0 %v2304
        %v2372 = vpop.f32.mrb[0].mxu0
        %v2373 = vadd.f32 0.0, %v2372
        %v2374 = vpop.f32.mrb[0].mxu0
        %2375 = vdwg.mxu0
        %v2376 = vld [vmem:[#allocation13] sm:$0xf]
        %v2378 = vsel %vm2302, %v2376, 0
        %2380 = vmatprep.subr.mxu0 0.0
        %2381 = vmatpush1.msra.mxu0 %v2300
        %2382 = vmatprep.subr.mxu0 0.0
        %2383 = vmatpush1.msra.mxu0 0.0
        %2384 = vmatprep.subr.mxu0 0.0
        %2385 = vmatpush1.msra.mxu0 0.0
        %2386 = vmatprep.subr.mxu0 0.0
        %2387 = vmatpush1.msra.mxu0 0.0
        %2388 = vmatprep.subr.mxu0 0.0
        %2389 = vmatpush1.msra.mxu0 0.0
        %2390 = vmatprep.subr.mxu0 0.0
        %2391 = vmatpush1.msra.mxu0 0.0
        %2392 = vmatprep.subr.mxu0 0.0
        %2393 = vmatpush1.msra.mxu0 0.0
        %2394 = vmatprep.subr.mxu0 0.0
        %2395 = vmatpush1.msra.mxu0 0.0
        %2396 = vmatprep.subr.mxu0 0.0
        %2397 = vmatpush1.msra.mxu0 0.0
        %2398 = vmatprep.subr.mxu0 0.0
        %2399 = vmatpush1.msra.mxu0 0.0
        %2400 = vmatprep.subr.mxu0 0.0
        %2401 = vmatpush1.msra.mxu0 0.0
        %2402 = vmatprep.subr.mxu0 0.0
        %2403 = vmatpush1.msra.mxu0 0.0
        %2404 = vmatprep.subr.mxu0 0.0
        %2405 = vmatpush1.msra.mxu0 0.0
        %2406 = vmatprep.subr.mxu0 0.0
        %2407 = vmatpush1.msra.mxu0 0.0
        %2408 = vmatprep.subr.mxu0 0.0
        %2409 = vmatpush1.msra.mxu0 0.0
        %2410 = vmatprep.subr.mxu0 0.0
        %2411 = vmatpush1.msra.mxu0 0.0
        %2412 = vmatprep.subr.mxu0 0.0
        %2413 = vmatpush1.msra.mxu0 0.0
        %2414 = vmatprep.subr.mxu0 0.0
        %2415 = vmatpush1.msra.mxu0 0.0
        %2416 = vmatprep.subr.mxu0 0.0
        %2417 = vmatpush1.msra.mxu0 0.0
        %2418 = vmatprep.subr.mxu0 0.0
        %2419 = vmatpush1.msra.mxu0 0.0
        %2420 = vmatprep.subr.mxu0 0.0
        %2421 = vmatpush1.msra.mxu0 0.0
        %2422 = vmatprep.subr.mxu0 0.0
        %2423 = vmatpush1.msra.mxu0 0.0
        %2424 = vmatprep.subr.mxu0 0.0
        %2425 = vmatpush1.msra.mxu0 0.0
        %2426 = vmatprep.subr.mxu0 0.0
        %2427 = vmatpush1.msra.mxu0 0.0
        %2428 = vmatprep.subr.mxu0 0.0
        %2429 = vmatpush1.msra.mxu0 0.0
        %2430 = vmatprep.subr.mxu0 0.0
        %2431 = vmatpush1.msra.mxu0 0.0
        %2432 = vmatprep.subr.mxu0 0.0
        %2433 = vmatpush1.msra.mxu0 0.0
        %2434 = vmatprep.subr.mxu0 0.0
        %2435 = vmatpush1.msra.mxu0 0.0
        %2436 = vmatprep.subr.mxu0 0.0
        %2437 = vmatpush1.msra.mxu0 0.0
        %2438 = vmatprep.subr.mxu0 0.0
        %2439 = vmatpush1.msra.mxu0 0.0
        %2440 = vmatprep.subr.mxu0 0.0
        %2441 = vmatpush1.msra.mxu0 0.0
        %2442 = vmatprep.subr.mxu0 0.0
        %2443 = vmatpush1.msra.mxu0 0.0
        %2444 = vmatprep.mubr.f32.mxu0 0.0
        %2445 = vmatmul.mubr.f32.gmra.mrb[0].mxu0 %v2378
        %v2446 = vpop.f32.mrb[0].mxu0
        %v2447 = vadd.f32 0.0, %v2446
        %v2448 = vpop.f32.mrb[0].mxu0
        %2449 = vdwg.mxu0
        %v2450 = vmax.f32 %v2373, %v2447
        %v2451 = vld [vmem:[#allocation5] sm:$0x1]
        %v2453 = vlaneseq
        %v2454 = vshrl.u32 %v2453, 7
        %v2455 = vsub.s32 0, %v2454
        %v2456 = vrot.slane %v2451, %v2455
        %v2458 = vadd.f32 %v2450, %v2456
        %v2459 = vmax.f32 %v2458, 0.0
        %v2460 = vld [vmem:[%s13] sm:$0xff]
        %v2461 = vld [vmem:[%s13 + $0x8] sm:$0xff]
        %v2462 = vld [vmem:[%s13 + $0x10] sm:$0xff]
        %v2463 = vld [vmem:[%s13 + $0x18] sm:$0xff]
        %v2464 = vld [vmem:[%s13 + $0x20] sm:$0xff]
        %v2465 = vld [vmem:[%s13 + $0x28] sm:$0xff]
        %v2466 = vld [vmem:[%s13 + $0x30] sm:$0xff]
        %v2467 = vld [vmem:[%s13 + $0x38] sm:$0xff]
        %s2468 = scalar_lea.vmem %s13, 64
        %v2469 = vld [vmem:[%s2468] sm:$0xff]
        %v2470 = vld [vmem:[%s2468 + $0x8] sm:$0xff]
        %v2471 = vld [vmem:[%s2468 + $0x10] sm:$0xff]
        %v2472 = vld [vmem:[%s2468 + $0x18] sm:$0xff]
        %v2473 = vld [vmem:[%s2468 + $0x20] sm:$0xff]
        %v2474 = vld [vmem:[%s2468 + $0x28] sm:$0xff]
        %v2475 = vld [vmem:[%s2468 + $0x30] sm:$0xff]
        %v2476 = vld [vmem:[%s2468 + $0x38] sm:$0xff]
        %v2478 = vrot.slane %v2459, 1
        %vm2479 = vcmask 523264
        %v2480 = vsel %vm2479, %v2478, 0
        %2482 = vmatprep.subr.mxu0 0.0
        %2483 = vmatpush1.msra.mxu0 %v2469
        %2484 = vmatprep.subr.mxu0 0.0
        %2485 = vmatpush1.msra.mxu0 %v2470
        %2486 = vmatprep.subr.mxu0 0.0
        %2487 = vmatpush1.msra.mxu0 %v2471
        %2488 = vmatprep.subr.mxu0 0.0
        %2489 = vmatpush1.msra.mxu0 %v2472
        %2490 = vmatprep.subr.mxu0 0.0
        %2491 = vmatpush1.msra.mxu0 %v2473
        %2492 = vmatprep.subr.mxu0 0.0
        %2493 = vmatpush1.msra.mxu0 %v2474
        %2494 = vmatprep.subr.mxu0 0.0
        %2495 = vmatpush1.msra.mxu0 %v2475
        %2496 = vmatprep.subr.mxu0 0.0
        %2497 = vmatpush1.msra.mxu0 %v2476
        %2498 = vmatprep.subr.mxu0 0.0
        %2499 = vmatpush1.msra.mxu0 0.0
        %2500 = vmatprep.subr.mxu0 0.0
        %2501 = vmatpush1.msra.mxu0 0.0
        %2502 = vmatprep.subr.mxu0 0.0
        %2503 = vmatpush1.msra.mxu0 0.0
        %2504 = vmatprep.subr.mxu0 0.0
        %2505 = vmatpush1.msra.mxu0 0.0
        %2506 = vmatprep.subr.mxu0 0.0
        %2507 = vmatpush1.msra.mxu0 0.0
        %2508 = vmatprep.subr.mxu0 0.0
        %2509 = vmatpush1.msra.mxu0 0.0
        %2510 = vmatprep.subr.mxu0 0.0
        %2511 = vmatpush1.msra.mxu0 0.0
        %2512 = vmatprep.subr.mxu0 0.0
        %2513 = vmatpush1.msra.mxu0 0.0
        %2514 = vmatprep.subr.mxu0 0.0
        %2515 = vmatpush1.msra.mxu0 0.0
        %2516 = vmatprep.subr.mxu0 0.0
        %2517 = vmatpush1.msra.mxu0 0.0
        %2518 = vmatprep.subr.mxu0 0.0
        %2519 = vmatpush1.msra.mxu0 0.0
        %2520 = vmatprep.subr.mxu0 0.0
        %2521 = vmatpush1.msra.mxu0 0.0
        %2522 = vmatprep.subr.mxu0 0.0
        %2523 = vmatpush1.msra.mxu0 0.0
        %2524 = vmatprep.subr.mxu0 0.0
        %2525 = vmatpush1.msra.mxu0 0.0
        %2526 = vmatprep.subr.mxu0 0.0
        %2527 = vmatpush1.msra.mxu0 0.0
        %2528 = vmatprep.subr.mxu0 0.0
        %2529 = vmatpush1.msra.mxu0 0.0
        %2530 = vmatprep.subr.mxu0 0.0
        %2531 = vmatpush1.msra.mxu0 0.0
        %2532 = vmatprep.subr.mxu0 0.0
        %2533 = vmatpush1.msra.mxu0 0.0
        %2534 = vmatprep.subr.mxu0 0.0
        %2535 = vmatpush1.msra.mxu0 0.0
        %2536 = vmatprep.subr.mxu0 0.0
        %2537 = vmatpush1.msra.mxu0 0.0
        %2538 = vmatprep.subr.mxu0 0.0
        %2539 = vmatpush1.msra.mxu0 0.0
        %2540 = vmatprep.subr.mxu0 0.0
        %2541 = vmatpush1.msra.mxu0 0.0
        %2542 = vmatprep.subr.mxu0 0.0
        %2543 = vmatpush1.msra.mxu0 0.0
        %2544 = vmatprep.subr.mxu0 0.0
        %2545 = vmatpush1.msra.mxu0 0.0
        %2546 = vmatprep.mubr.f32.mxu0 0.0
        %2547 = vmatmul.mubr.f32.gmra.mrb[0].mxu0 %v2480
        %v2548 = vpop.f32.mrb[0].mxu0
        %v2549 = vadd.f32 0.0, %v2548
        %v2550 = vpop.f32.mrb[0].mxu0
        %2551 = vdwg.mxu0
        %v2552 = vsel %vm2479, %v2459, 0
        %2554 = vmatprep.subr.mxu0 0.0
        %2555 = vmatpush1.msra.mxu0 %v2460
        %2556 = vmatprep.subr.mxu0 0.0
        %2557 = vmatpush1.msra.mxu0 %v2461
        %2558 = vmatprep.subr.mxu0 0.0
        %2559 = vmatpush1.msra.mxu0 %v2462
        %2560 = vmatprep.subr.mxu0 0.0
        %2561 = vmatpush1.msra.mxu0 %v2463
        %2562 = vmatprep.subr.mxu0 0.0
        %2563 = vmatpush1.msra.mxu0 %v2464
        %2564 = vmatprep.subr.mxu0 0.0
        %2565 = vmatpush1.msra.mxu0 %v2465
        %2566 = vmatprep.subr.mxu0 0.0
        %2567 = vmatpush1.msra.mxu0 %v2466
        %2568 = vmatprep.subr.mxu0 0.0
        %2569 = vmatpush1.msra.mxu0 %v2467
        %2570 = vmatprep.subr.mxu0 0.0
        %2571 = vmatpush1.msra.mxu0 0.0
        %2572 = vmatprep.subr.mxu0 0.0
        %2573 = vmatpush1.msra.mxu0 0.0
        %2574 = vmatprep.subr.mxu0 0.0
        %2575 = vmatpush1.msra.mxu0 0.0
        %2576 = vmatprep.subr.mxu0 0.0
        %2577 = vmatpush1.msra.mxu0 0.0
        %2578 = vmatprep.subr.mxu0 0.0
        %2579 = vmatpush1.msra.mxu0 0.0
        %2580 = vmatprep.subr.mxu0 0.0
        %2581 = vmatpush1.msra.mxu0 0.0
        %2582 = vmatprep.subr.mxu0 0.0
        %2583 = vmatpush1.msra.mxu0 0.0
        %2584 = vmatprep.subr.mxu0 0.0
        %2585 = vmatpush1.msra.mxu0 0.0
        %2586 = vmatprep.subr.mxu0 0.0
        %2587 = vmatpush1.msra.mxu0 0.0
        %2588 = vmatprep.subr.mxu0 0.0
        %2589 = vmatpush1.msra.mxu0 0.0
        %2590 = vmatprep.subr.mxu0 0.0
        %2591 = vmatpush1.msra.mxu0 0.0
        %2592 = vmatprep.subr.mxu0 0.0
        %2593 = vmatpush1.msra.mxu0 0.0
        %2594 = vmatprep.subr.mxu0 0.0
        %2595 = vmatpush1.msra.mxu0 0.0
        %2596 = vmatprep.subr.mxu0 0.0
        %2597 = vmatpush1.msra.mxu0 0.0
        %2598 = vmatprep.subr.mxu0 0.0
        %2599 = vmatpush1.msra.mxu0 0.0
        %2600 = vmatprep.subr.mxu0 0.0
        %2601 = vmatpush1.msra.mxu0 0.0
        %2602 = vmatprep.subr.mxu0 0.0
        %2603 = vmatpush1.msra.mxu0 0.0
        %2604 = vmatprep.subr.mxu0 0.0
        %2605 = vmatpush1.msra.mxu0 0.0
        %2606 = vmatprep.subr.mxu0 0.0
        %2607 = vmatpush1.msra.mxu0 0.0
        %2608 = vmatprep.subr.mxu0 0.0
        %2609 = vmatpush1.msra.mxu0 0.0
        %2610 = vmatprep.subr.mxu0 0.0
        %2611 = vmatpush1.msra.mxu0 0.0
        %2612 = vmatprep.subr.mxu0 0.0
        %2613 = vmatpush1.msra.mxu0 0.0
        %2614 = vmatprep.subr.mxu0 0.0
        %2615 = vmatpush1.msra.mxu0 0.0
        %2616 = vmatprep.subr.mxu0 0.0
        %2617 = vmatpush1.msra.mxu0 0.0
        %2618 = vmatprep.mubr.f32.mxu0 0.0
        %2619 = vmatmul.mubr.f32.gmra.mrb[0].mxu0 %v2552
        %v2620 = vpop.f32.mrb[0].mxu0
        %v2621 = vadd.f32 %v2549, %v2620
        %v2622 = vpop.f32.mrb[0].mxu0
        %2623 = vdwg.mxu0
        %s2624 = scalar_lea.vmem %s13, 128
        %v2625 = vld [vmem:[%s2624] sm:$0xff]
        %v2626 = vld [vmem:[%s2624 + $0x8] sm:$0xff]
        %v2627 = vld [vmem:[%s2624 + $0x10] sm:$0xff]
        %v2628 = vld [vmem:[%s2624 + $0x18] sm:$0xff]
        %v2629 = vld [vmem:[%s2624 + $0x20] sm:$0xff]
        %v2630 = vld [vmem:[%s2624 + $0x28] sm:$0xff]
        %v2631 = vld [vmem:[%s2624 + $0x30] sm:$0xff]
        %v2632 = vld [vmem:[%s2624 + $0x38] sm:$0xff]
        %v2633 = vrot.slane %v2459, 2
        %v2634 = vsel %vm2479, %v2633, 0
        %2636 = vmatprep.subr.mxu0 0.0
        %2637 = vmatpush1.msra.mxu0 %v2625
        %2638 = vmatprep.subr.mxu0 0.0
        %2639 = vmatpush1.msra.mxu0 %v2626
        %2640 = vmatprep.subr.mxu0 0.0
        %2641 = vmatpush1.msra.mxu0 %v2627
        %2642 = vmatprep.subr.mxu0 0.0
        %2643 = vmatpush1.msra.mxu0 %v2628
        %2644 = vmatprep.subr.mxu0 0.0
        %2645 = vmatpush1.msra.mxu0 %v2629
        %2646 = vmatprep.subr.mxu0 0.0
        %2647 = vmatpush1.msra.mxu0 %v2630
        %2648 = vmatprep.subr.mxu0 0.0
        %2649 = vmatpush1.msra.mxu0 %v2631
        %2650 = vmatprep.subr.mxu0 0.0
        %2651 = vmatpush1.msra.mxu0 %v2632
        %2652 = vmatprep.subr.mxu0 0.0
        %2653 = vmatpush1.msra.mxu0 0.0
        %2654 = vmatprep.subr.mxu0 0.0
        %2655 = vmatpush1.msra.mxu0 0.0
        %2656 = vmatprep.subr.mxu0 0.0
        %2657 = vmatpush1.msra.mxu0 0.0
        %2658 = vmatprep.subr.mxu0 0.0
        %2659 = vmatpush1.msra.mxu0 0.0
        %2660 = vmatprep.subr.mxu0 0.0
        %2661 = vmatpush1.msra.mxu0 0.0
        %2662 = vmatprep.subr.mxu0 0.0
        %2663 = vmatpush1.msra.mxu0 0.0
        %2664 = vmatprep.subr.mxu0 0.0
        %2665 = vmatpush1.msra.mxu0 0.0
        %2666 = vmatprep.subr.mxu0 0.0
        %2667 = vmatpush1.msra.mxu0 0.0
        %2668 = vmatprep.subr.mxu0 0.0
        %2669 = vmatpush1.msra.mxu0 0.0
        %2670 = vmatprep.subr.mxu0 0.0
        %2671 = vmatpush1.msra.mxu0 0.0
        %2672 = vmatprep.subr.mxu0 0.0
        %2673 = vmatpush1.msra.mxu0 0.0
        %2674 = vmatprep.subr.mxu0 0.0
        %2675 = vmatpush1.msra.mxu0 0.0
        %2676 = vmatprep.subr.mxu0 0.0
        %2677 = vmatpush1.msra.mxu0 0.0
        %2678 = vmatprep.subr.mxu0 0.0
        %2679 = vmatpush1.msra.mxu0 0.0
        %2680 = vmatprep.subr.mxu0 0.0
        %2681 = vmatpush1.msra.mxu0 0.0
        %2682 = vmatprep.subr.mxu0 0.0
        %2683 = vmatpush1.msra.mxu0 0.0
        %2684 = vmatprep.subr.mxu0 0.0
        %2685 = vmatpush1.msra.mxu0 0.0
        %2686 = vmatprep.subr.mxu0 0.0
        %2687 = vmatpush1.msra.mxu0 0.0
        %2688 = vmatprep.subr.mxu0 0.0
        %2689 = vmatpush1.msra.mxu0 0.0
        %2690 = vmatprep.subr.mxu0 0.0
        %2691 = vmatpush1.msra.mxu0 0.0
        %2692 = vmatprep.subr.mxu0 0.0
        %2693 = vmatpush1.msra.mxu0 0.0
        %2694 = vmatprep.subr.mxu0 0.0
        %2695 = vmatpush1.msra.mxu0 0.0
        %2696 = vmatprep.subr.mxu0 0.0
        %2697 = vmatpush1.msra.mxu0 0.0
        %2698 = vmatprep.subr.mxu0 0.0
        %2699 = vmatpush1.msra.mxu0 0.0
        %2700 = vmatprep.mubr.f32.mxu0 0.0
        %2701 = vmatmul.mubr.f32.gmra.mrb[0].mxu0 %v2634
        %v2702 = vpop.f32.mrb[0].mxu0
        %v2703 = vadd.f32 0.0, %v2702
        %v2704 = vpop.f32.mrb[0].mxu0
        %2705 = vdwg.mxu0
        %v2706 = vadd.f32 %v2621, %v2703
        %s2707 = scalar_lea.vmem %s13, 192
        %v2708 = vld [vmem:[%s2707] sm:$0xff]
        %v2709 = vld [vmem:[%s2707 + $0x8] sm:$0xff]
        %v2710 = vld [vmem:[%s2707 + $0x10] sm:$0xff]
        %v2711 = vld [vmem:[%s2707 + $0x18] sm:$0xff]
        %v2712 = vld [vmem:[%s2707 + $0x20] sm:$0xff]
        %v2713 = vld [vmem:[%s2707 + $0x28] sm:$0xff]
        %v2714 = vld [vmem:[%s2707 + $0x30] sm:$0xff]
        %v2715 = vld [vmem:[%s2707 + $0x38] sm:$0xff]
        %v2716 = vrot.slane %v2459, 3
        %v2717 = vsel %vm2479, %v2716, 0
        %2719 = vmatprep.subr.mxu0 0.0
        %2720 = vmatpush1.msra.mxu0 %v2708
        %2721 = vmatprep.subr.mxu0 0.0
        %2722 = vmatpush1.msra.mxu0 %v2709
        %2723 = vmatprep.subr.mxu0 0.0
        %2724 = vmatpush1.msra.mxu0 %v2710
        %2725 = vmatprep.subr.mxu0 0.0
        %2726 = vmatpush1.msra.mxu0 %v2711
        %2727 = vmatprep.subr.mxu0 0.0
        %2728 = vmatpush1.msra.mxu0 %v2712
        %2729 = vmatprep.subr.mxu0 0.0
        %2730 = vmatpush1.msra.mxu0 %v2713
        %2731 = vmatprep.subr.mxu0 0.0
        %2732 = vmatpush1.msra.mxu0 %v2714
        %2733 = vmatprep.subr.mxu0 0.0
        %2734 = vmatpush1.msra.mxu0 %v2715
        %2735 = vmatprep.subr.mxu0 0.0
        %2736 = vmatpush1.msra.mxu0 0.0
        %2737 = vmatprep.subr.mxu0 0.0
        %2738 = vmatpush1.msra.mxu0 0.0
        %2739 = vmatprep.subr.mxu0 0.0
        %2740 = vmatpush1.msra.mxu0 0.0
        %2741 = vmatprep.subr.mxu0 0.0
        %2742 = vmatpush1.msra.mxu0 0.0
        %2743 = vmatprep.subr.mxu0 0.0
        %2744 = vmatpush1.msra.mxu0 0.0
        %2745 = vmatprep.subr.mxu0 0.0
        %2746 = vmatpush1.msra.mxu0 0.0
        %2747 = vmatprep.subr.mxu0 0.0
        %2748 = vmatpush1.msra.mxu0 0.0
        %2749 = vmatprep.subr.mxu0 0.0
        %2750 = vmatpush1.msra.mxu0 0.0
        %2751 = vmatprep.subr.mxu0 0.0
        %2752 = vmatpush1.msra.mxu0 0.0
        %2753 = vmatprep.subr.mxu0 0.0
        %2754 = vmatpush1.msra.mxu0 0.0
        %2755 = vmatprep.subr.mxu0 0.0
        %2756 = vmatpush1.msra.mxu0 0.0
        %2757 = vmatprep.subr.mxu0 0.0
        %2758 = vmatpush1.msra.mxu0 0.0
        %2759 = vmatprep.subr.mxu0 0.0
        %2760 = vmatpush1.msra.mxu0 0.0
        %2761 = vmatprep.subr.mxu0 0.0
        %2762 = vmatpush1.msra.mxu0 0.0
        %2763 = vmatprep.subr.mxu0 0.0
        %2764 = vmatpush1.msra.mxu0 0.0
        %2765 = vmatprep.subr.mxu0 0.0
        %2766 = vmatpush1.msra.mxu0 0.0
        %2767 = vmatprep.subr.mxu0 0.0
        %2768 = vmatpush1.msra.mxu0 0.0
        %2769 = vmatprep.subr.mxu0 0.0
        %2770 = vmatpush1.msra.mxu0 0.0
        %2771 = vmatprep.subr.mxu0 0.0
        %2772 = vmatpush1.msra.mxu0 0.0
        %2773 = vmatprep.subr.mxu0 0.0
        %2774 = vmatpush1.msra.mxu0 0.0
        %2775 = vmatprep.subr.mxu0 0.0
        %2776 = vmatpush1.msra.mxu0 0.0
        %2777 = vmatprep.subr.mxu0 0.0
        %2778 = vmatpush1.msra.mxu0 0.0
        %2779 = vmatprep.subr.mxu0 0.0
        %2780 = vmatpush1.msra.mxu0 0.0
        %2781 = vmatprep.subr.mxu0 0.0
        %2782 = vmatpush1.msra.mxu0 0.0
        %2783 = vmatprep.mubr.f32.mxu0 0.0
        %2784 = vmatmul.mubr.f32.gmra.mrb[0].mxu0 %v2717
        %v2785 = vpop.f32.mrb[0].mxu0
        %v2786 = vadd.f32 0.0, %v2785
        %v2787 = vpop.f32.mrb[0].mxu0
        %2788 = vdwg.mxu0
        %v2789 = vadd.f32 %v2706, %v2786
        %v2790 = vld [vmem:[#allocation14] sm:$0x1]
        %v2791 = vadd.f32 %v2789, %v2790
        %v2792 = vmax.f32 %v2791, 0.0
        %v2793 = vld [vmem:[%s15] sm:$0xff]
        %v2794 = vld [vmem:[%s15 + $0x8] sm:$0xff]
        %v2795 = vld [vmem:[%s15 + $0x10] sm:$0xff]
        %v2796 = vld [vmem:[%s15 + $0x18] sm:$0xff]
        %v2797 = vld [vmem:[%s15 + $0x20] sm:$0xff]
        %v2798 = vld [vmem:[%s15 + $0x28] sm:$0xff]
        %v2799 = vld [vmem:[%s15 + $0x30] sm:$0xff]
        %v2800 = vld [vmem:[%s15 + $0x38] sm:$0xff]
        %v2801 = vld [vmem:[%s15 + $0x40] sm:$0xff]
        %v2802 = vld [vmem:[%s15 + $0x48] sm:$0xff]
        %v2803 = vld [vmem:[%s15 + $0x50] sm:$0xff]
        %v2804 = vld [vmem:[%s15 + $0x58] sm:$0xff]
        %v2805 = vld [vmem:[%s15 + $0x60] sm:$0xff]
        %v2806 = vld [vmem:[%s15 + $0x68] sm:$0xff]
        %v2807 = vld [vmem:[%s15 + $0x70] sm:$0xff]
        %v2808 = vld [vmem:[#allocation16] sm:$0x1]
        %vm2809 = vcmask 982016
        %v2811 = vsel %vm2809, %v2792, 0
        %2813 = vmatprep.subr.mxu0 0.0
        %2814 = vmatpush1.msra.mxu0 %v2793
        %2815 = vmatprep.subr.mxu0 0.0
        %2816 = vmatpush1.msra.mxu0 %v2794
        %2817 = vmatprep.subr.mxu0 0.0
        %2818 = vmatpush1.msra.mxu0 %v2795
        %2819 = vmatprep.subr.mxu0 0.0
        %2820 = vmatpush1.msra.mxu0 %v2796
        %2821 = vmatprep.subr.mxu0 0.0
        %2822 = vmatpush1.msra.mxu0 %v2797
        %2823 = vmatprep.subr.mxu0 0.0
        %2824 = vmatpush1.msra.mxu0 %v2798
        %2825 = vmatprep.subr.mxu0 0.0
        %2826 = vmatpush1.msra.mxu0 %v2799
        %2827 = vmatprep.subr.mxu0 0.0
        %2828 = vmatpush1.msra.mxu0 %v2800
        %2829 = vmatprep.subr.mxu0 0.0
        %2830 = vmatpush1.msra.mxu0 %v2801
        %2831 = vmatprep.subr.mxu0 0.0
        %2832 = vmatpush1.msra.mxu0 %v2802
        %2833 = vmatprep.subr.mxu0 0.0
        %2834 = vmatpush1.msra.mxu0 %v2803
        %2835 = vmatprep.subr.mxu0 0.0
        %2836 = vmatpush1.msra.mxu0 %v2804
        %2837 = vmatprep.subr.mxu0 0.0
        %2838 = vmatpush1.msra.mxu0 %v2805
        %2839 = vmatprep.subr.mxu0 0.0
        %2840 = vmatpush1.msra.mxu0 %v2806
        %2841 = vmatprep.subr.mxu0 0.0
        %2842 = vmatpush1.msra.mxu0 %v2807
        %2843 = vmatprep.subr.mxu0 0.0
        %2844 = vmatpush1.msra.mxu0 0.0
        %2845 = vmatprep.subr.mxu0 0.0
        %2846 = vmatpush1.msra.mxu0 0.0
        %2847 = vmatprep.subr.mxu0 0.0
        %2848 = vmatpush1.msra.mxu0 0.0
        %2849 = vmatprep.subr.mxu0 0.0
        %2850 = vmatpush1.msra.mxu0 0.0
        %2851 = vmatprep.subr.mxu0 0.0
        %2852 = vmatpush1.msra.mxu0 0.0
        %2853 = vmatprep.subr.mxu0 0.0
        %2854 = vmatpush1.msra.mxu0 0.0
        %2855 = vmatprep.subr.mxu0 0.0
        %2856 = vmatpush1.msra.mxu0 0.0
        %2857 = vmatprep.subr.mxu0 0.0
        %2858 = vmatpush1.msra.mxu0 0.0
        %2859 = vmatprep.subr.mxu0 0.0
        %2860 = vmatpush1.msra.mxu0 0.0
        %2861 = vmatprep.subr.mxu0 0.0
        %2862 = vmatpush1.msra.mxu0 0.0
        %2863 = vmatprep.subr.mxu0 0.0
        %2864 = vmatpush1.msra.mxu0 0.0
        %2865 = vmatprep.subr.mxu0 0.0
        %2866 = vmatpush1.msra.mxu0 0.0
        %2867 = vmatprep.subr.mxu0 0.0
        %2868 = vmatpush1.msra.mxu0 0.0
        %2869 = vmatprep.subr.mxu0 0.0
        %2870 = vmatpush1.msra.mxu0 0.0
        %2871 = vmatprep.subr.mxu0 0.0
        %2872 = vmatpush1.msra.mxu0 0.0
        %2873 = vmatprep.subr.mxu0 0.0
        %2874 = vmatpush1.msra.mxu0 0.0
        %2875 = vmatprep.subr.mxu0 0.0
        %2876 = vmatpush1.msra.mxu0 0.0
        %2877 = vmatprep.mubr.f32.mxu0 0.0
        %2878 = vmatmul.mubr.f32.gmra.mrb[0].mxu0 %v2811
        %v2879 = vpop.f32.mrb[0].mxu0
        %v2880 = vadd.f32 %v2808, %v2879
        %v2881 = vpop.f32.mrb[0].mxu0
        %2882 = vdwg.mxu0
        %v2883 = vmax.f32 %v2880, 0.0
        %v2884 = vld [vmem:[%s17] sm:$0xff]
        %v2885 = vld [vmem:[%s17 + $0x8] sm:$0xff]
        %v2886 = vld [vmem:[%s17 + $0x10] sm:$0xff]
        %v2887 = vld [vmem:[%s17 + $0x18] sm:$0xff]
        %v2888 = vld [vmem:[%s17 + $0x20] sm:$0xff]
        %v2889 = vld [vmem:[%s17 + $0x28] sm:$0xff]
        %v2890 = vld [vmem:[%s17 + $0x30] sm:$0xff]
        %v2891 = vld [vmem:[%s17 + $0x38] sm:$0xff]
        %v2892 = vld [vmem:[%s17 + $0x40] sm:$0xff]
        %v2893 = vld [vmem:[%s17 + $0x48] sm:$0xff]
        %v2894 = vld [vmem:[%s17 + $0x50] sm:$0xf]
        %v2895 = vld [vmem:[#allocation17] sm:$0x1]
        %vm2896 = vcmask 687104
        %v2898 = vsel %vm2896, %v2883, 0
        %v2901 = vsel %vm774, %v2894, 0
        %2903 = vmatprep.subr.mxu0 0.0
        %2904 = vmatpush1.msra.mxu0 %v2884
        %2905 = vmatprep.subr.mxu0 0.0
        %2906 = vmatpush1.msra.mxu0 %v2885
        %2907 = vmatprep.subr.mxu0 0.0
        %2908 = vmatpush1.msra.mxu0 %v2886
        %2909 = vmatprep.subr.mxu0 0.0
        %2910 = vmatpush1.msra.mxu0 %v2887
        %2911 = vmatprep.subr.mxu0 0.0
        %2912 = vmatpush1.msra.mxu0 %v2888
        %2913 = vmatprep.subr.mxu0 0.0
        %2914 = vmatpush1.msra.mxu0 %v2889
        %2915 = vmatprep.subr.mxu0 0.0
        %2916 = vmatpush1.msra.mxu0 %v2890
        %2917 = vmatprep.subr.mxu0 0.0
        %2918 = vmatpush1.msra.mxu0 %v2891
        %2919 = vmatprep.subr.mxu0 0.0
        %2920 = vmatpush1.msra.mxu0 %v2892
        %2921 = vmatprep.subr.mxu0 0.0
        %2922 = vmatpush1.msra.mxu0 %v2893
        %2923 = vmatprep.subr.mxu0 0.0
        %2924 = vmatpush1.msra.mxu0 %v2901
        %2925 = vmatprep.subr.mxu0 0.0
        %2926 = vmatpush1.msra.mxu0 0.0
        %2927 = vmatprep.subr.mxu0 0.0
        %2928 = vmatpush1.msra.mxu0 0.0
        %2929 = vmatprep.subr.mxu0 0.0
        %2930 = vmatpush1.msra.mxu0 0.0
        %2931 = vmatprep.subr.mxu0 0.0
        %2932 = vmatpush1.msra.mxu0 0.0
        %2933 = vmatprep.subr.mxu0 0.0
        %2934 = vmatpush1.msra.mxu0 0.0
        %2935 = vmatprep.subr.mxu0 0.0
        %2936 = vmatpush1.msra.mxu0 0.0
        %2937 = vmatprep.subr.mxu0 0.0
        %2938 = vmatpush1.msra.mxu0 0.0
        %2939 = vmatprep.subr.mxu0 0.0
        %2940 = vmatpush1.msra.mxu0 0.0
        %2941 = vmatprep.subr.mxu0 0.0
        %2942 = vmatpush1.msra.mxu0 0.0
        %2943 = vmatprep.subr.mxu0 0.0
        %2944 = vmatpush1.msra.mxu0 0.0
        %2945 = vmatprep.subr.mxu0 0.0
        %2946 = vmatpush1.msra.mxu0 0.0
        %2947 = vmatprep.subr.mxu0 0.0
        %2948 = vmatpush1.msra.mxu0 0.0
        %2949 = vmatprep.subr.mxu0 0.0
        %2950 = vmatpush1.msra.mxu0 0.0
        %2951 = vmatprep.subr.mxu0 0.0
        %2952 = vmatpush1.msra.mxu0 0.0
        %2953 = vmatprep.subr.mxu0 0.0
        %2954 = vmatpush1.msra.mxu0 0.0
        %2955 = vmatprep.subr.mxu0 0.0
        %2956 = vmatpush1.msra.mxu0 0.0
        %2957 = vmatprep.subr.mxu0 0.0
        %2958 = vmatpush1.msra.mxu0 0.0
        %2959 = vmatprep.subr.mxu0 0.0
        %2960 = vmatpush1.msra.mxu0 0.0
        %2961 = vmatprep.subr.mxu0 0.0
        %2962 = vmatpush1.msra.mxu0 0.0
        %2963 = vmatprep.subr.mxu0 0.0
        %2964 = vmatpush1.msra.mxu0 0.0
        %2965 = vmatprep.subr.mxu0 0.0
        %2966 = vmatpush1.msra.mxu0 0.0
        %2967 = vmatprep.mubr.f32.mxu0 0.0
        %2968 = vmatmul.mubr.f32.gmra.mrb[0].mxu0 %v2898
        %v2969 = vpop.f32.mrb[0].mxu0
        %v2970 = vadd.f32 %v2895, %v2969
        %v2971 = vpop.f32.mrb[0].mxu0
        %2972 = vdwg.mxu0
        %vm2973 = vcmask 73728
        %2974 = vst.msk [vmem:[%s728] sm:$0x1] %vm2973, %v2970
        %s2975 = sand.u32 %s451, 1
        %s2976 = scalar_lea.sflag [#allocation4], %s2975
        %s2977 = sand.u32 %s451, 1
        %s2978 = scalar_lea.vmem [#allocation19], %s2977
        // Predicated region
        $region137: #{cnn_classifier_forward.1} parent=95 // pred_check
          %p2979 = pneg %p461
        $region138: #{cnn_classifier_forward.1} parent=95 // pred_check_branch
          %2981 = sbr.rel (%p2979) target = $region140
        $region139: #{cnn_classifier_forward.1} parent=95 // pred_region
          %s2983 = ssub.s32 16, 16
          %2984 = vsyncadd %s2976, %s2983
          %s2985 = smul.addr %s39, 16
          %s2986 = scalar_lea.hbm %s19, %s2985
          %s2988 = sshll.u32 %s2978, 4
          %s2989 = int_to_ptr.vmem [resolvable:$true] %s2988
          %2991 = dma.vmem_to_hbm [thread:$0]  %s2989, 16, %s2986, %s2976
        $region140: #{cnn_classifier_forward.1} parent=95 // pred_fallthru
          _
      $region96: #{cnn_classifier_forward.1} parent=5 // pred_fallthru
        _
      %p2992 = scmp.le.s32.totalorder 2, %s34
      // Predicated region
      $region141: #{cnn_classifier_forward.1} parent=5 // pred_check
        %p2993 = pneg %p2992
      $region142: #{cnn_classifier_forward.1} parent=5 // pred_check_branch
        %2995 = sbr.rel (%p2993) target = $region144
      $region143: #{cnn_classifier_forward.1} parent=5 // pred_region
        %s2996 = ssub.s32 %s34, 2
        // Predicated region
        $region145: #{cnn_classifier_forward.1} parent=143 // pred_check
          %p2997 = pneg %p467
        $region146: #{cnn_classifier_forward.1} parent=143 // pred_check_branch
          %2999 = sbr.rel (%p2997) target = $region148
        $region147: #{cnn_classifier_forward.1} parent=143 // pred_region
          %s3000 = sand.u32 %s452, 1
          %s3001 = scalar_lea.sflag [#allocation4], %s3000
          %s3002 = sand.u32 %s452, 1
          %s3003 = scalar_lea.vmem [#allocation19], %s3002
          %3004 = dma.done %s3001, 16
        $region148: #{cnn_classifier_forward.1} parent=143 // pred_fallthru
          _
      $region144: #{cnn_classifier_forward.1} parent=5 // pred_fallthru
        _
    $region6: #{cnn_classifier_forward.1} parent=1 // loop_footer
      %s38 = sadd.s32 1, %s34
    $region7: #{cnn_classifier_forward.1} parent=1 // loop_footer_branch
      %33 = sbr.rel target = $region3
    $region8: #{cnn_classifier_forward.1} parent=1 // loop_exit
      _
    %3005 = vsyncpa [#allocation3], 1
    %s3006 = scalar_lea.sflag [#allocation3], 1
    %3007 = vsyncpa %s3006, 1
    %3008 = vsyncpa [#allocation6], 1
    %3009 = vsyncpa [#allocation9], 1
    %3010 = vsyncpa [#allocation12], 1
    %3011 = vsyncpa [#allocation15], 1
    %3012 = vsyncpa [#allocation18], 1
    %3013 = vsyncpa [#allocation4], 1
    %s3014 = scalar_lea.sflag [#allocation4], 1
    %3015 = vsyncpa %s3014, 1

</llo_original>
